<compile_context>
chip_gen: v7x
topology: tpu7x:2x2x1
jax: 0.10.0
libtpu: 0.0.40
codegen_flags: <defaults>
</compile_context>

<pallas_src>
import functools

import jax
import jax.numpy as jnp
from jax.experimental import pallas as pl
from jax.experimental.pallas import tpu as pltpu


# -----------------------------------------------------------------------------
# Pallas kernel
# -----------------------------------------------------------------------------
def _lstm_kernel(
    x_ref,                      # (T*Bp, Cp) bf16, time-major rows: row t*Bp+b = (timestep t, batch b)
    w_ih0, w_hh0, b0,           # (Cp, 4H) bf16, (H, 4H) bf16, (1, 4H) f32   layer 0
    w_ih1, w_hh1, b1,           # (H, 4H)  bf16, (H, 4H) bf16, (1, 4H) f32   layer 1
    w_ih2, w_hh2, b2,           # (H, 4H)  bf16, (H, 4H) bf16, (1, 4H) f32   layer 2
    fc_w, fc_b,                 # n_out==1: (1, H) f32 ; else (H, n_out) bf16.  fc_b: (1, n_out) f32
    out_ref,                    # (Bp, n_out) f32
    proj_ref,                   # scratch (T*Bp, 4H) f32: layer-0 batched input projection
    *, T, Bp, H, n_out,
):
    L = 3
    w_ih = (w_ih0, w_ih1, w_ih2)
    w_hh = (w_hh0, w_hh1, w_hh2)
    bias = (b0, b1, b2)

    # Layer-0 input projection for all timesteps at once (independent of the recurrence);
    # bias (with g-gate columns pre-scaled by 2) folded in here. Parked in VMEM scratch to
    # keep vreg pressure low across the unrolled wavefront.
    proj_ref[...] = (
        jnp.dot(x_ref[...], w_ih0[...], preferred_element_type=jnp.float32) + b0[...]
    )

    def cell_step(gates, c_prev):
        # gates: (Bp, 4H) f32, PyTorch gate order [i | f | g | o]; the g columns were pre-scaled
        # by 2 so tanh(x) = 2*sigmoid(2x) - 1 and a single sigmoid covers the whole 4H slab.
        s = jax.nn.sigmoid(gates)
        i = s[:, 0 * H:1 * H]
        f = s[:, 1 * H:2 * H]
        g = 2.0 * s[:, 2 * H:3 * H] - 1.0
        o = s[:, 3 * H:4 * H]
        c = i * g if c_prev is None else f * c_prev + i * g
        h = o * jnp.tanh(c)
        return h, c

    h = [None] * L
    c = [None] * L

    # Wavefront over (layer, timestep), fully unrolled (T, L static) so the LLO scheduler sees
    # the whole stream. Within a wave every active layer-step reads only states produced at the
    # previous wave (snapshotted in h_in / c_in), so the per-wave bodies are independent.
    for wave in range(T + L - 1):
        h_in = list(h)
        c_in = list(c)
        for l in range(L):
            t = wave - l
            if t < 0 or t >= T:
                continue
            if l == 0:
                # Pre-computed projection; Bp=8 row slices are sublane-tile aligned.
                gates = proj_ref[t * Bp:(t + 1) * Bp, :]
            else:
                # Input projection off this layer's recurrent hop (consumes layer l-1's h_t,
                # produced at the previous wave).
                gates = jnp.dot(
                    h_in[l - 1].astype(jnp.bfloat16), w_ih[l][...],
                    preferred_element_type=jnp.float32,
                ) + bias[l][...]
            if t > 0:
                # Recurrent matmul; skipped entirely at t == 0 (h0 = 0).
                gates = gates + jnp.dot(
                    h_in[l].astype(jnp.bfloat16), w_hh[l][...],
                    preferred_element_type=jnp.float32,
                )
            h[l], c[l] = cell_step(gates, c_in[l])

    h_last = h[L - 1]            # (Bp, H) f32: top layer's hidden state at the final timestep

    if n_out == 1:
        # fc head as VPU multiply + XLU lane reduce (avoids a 1-column MXU push/drain + masked vst).
        logits = jnp.sum(h_last * fc_w[...], axis=-1, keepdims=True) + fc_b[...]
    else:
        logits = jnp.dot(h_last.astype(jnp.bfloat16), fc_w[...],
                         preferred_element_type=jnp.float32) + fc_b[...]
    out_ref[...] = jax.nn.sigmoid(logits)


# -----------------------------------------------------------------------------
# Wrapper (glue): layout transforms + pallas_call setup.
# -----------------------------------------------------------------------------
def _prescale_g_gate(m, H):
    """Double the g-gate slab (PyTorch gate order [i|f|g|o]) along the last (4H) axis.

    Done in f32; multiplication by 2 is exact, so no extra rounding before the bf16 cast.
    """
    return m.at[..., 2 * H:3 * H].multiply(2.0)


@jax.jit
def baseline_lstm_forward(x_btc, params):
    assert len(params["lstm"]) == 3, "kernel is specialized to rnn_layers=3"
    B, T, C = x_btc.shape
    H = params["lstm"][0][1].shape[1]
    Bp = -(-B // 8) * 8                      # pad batch to the 8-sublane tile
    Cp = ((C + 63) // 64) * 64               # pad input channels (47 -> 64)

    # Time-major, zero-padded, flattened input: row t*Bp + b corresponds to (timestep t, batch b).
    x_tbc = jnp.transpose(x_btc, (1, 0, 2))
    x_tbc = jnp.pad(x_tbc, ((0, 0), (0, Bp - B), (0, Cp - C)))
    x_flat = x_tbc.reshape(T * Bp, Cp).astype(jnp.bfloat16)

    flat = []
    for li, (w_ih, w_hh, b_ih, b_hh) in enumerate(params["lstm"]):
        w_ih_t = _prescale_g_gate(w_ih.T.astype(jnp.float32), H)                # (in, 4H)
        w_hh_t = _prescale_g_gate(w_hh.T.astype(jnp.float32), H)                # (H, 4H)
        b = _prescale_g_gate((b_ih + b_hh).astype(jnp.float32), H)[None, :]     # (1, 4H)
        if li == 0:
            w_ih_t = jnp.pad(w_ih_t, ((0, Cp - C), (0, 0)))                     # zero-pad K dim
        flat += [w_ih_t.astype(jnp.bfloat16), w_hh_t.astype(jnp.bfloat16), b]

    fc_w, fc_b = params["fc"]                                                    # (n_out, H), (n_out,)
    n_out = fc_w.shape[0]
    if n_out == 1:
        fc_w_arg = fc_w.astype(jnp.float32)                                      # (1, H): reduce path
    else:
        fc_w_arg = fc_w.T.astype(jnp.bfloat16)                                   # (H, n_out): matmul path
    flat += [fc_w_arg, fc_b[None, :].astype(jnp.float32)]

    kernel = functools.partial(_lstm_kernel, T=T, Bp=Bp, H=H, n_out=n_out)
    out_padded = pl.pallas_call(
        kernel,
        out_shape=jax.ShapeDtypeStruct((Bp, n_out), jnp.float32),
        in_specs=[pl.BlockSpec(memory_space=pltpu.MemorySpace.VMEM)] * (1 + len(flat)),
        out_specs=pl.BlockSpec(memory_space=pltpu.MemorySpace.VMEM),
        scratch_shapes=[pltpu.VMEM((T * Bp, 4 * H), jnp.float32)],
    )(x_flat, *flat)
    return out_padded[:B]


# -----------------------------------------------------------------------------
# Pure-JAX reference (matches PyTorch nn.LSTM + Linear + Sigmoid semantics), f32.
# -----------------------------------------------------------------------------
def baseline_lstm_ref(x, params):
    B, T, C = x.shape
    inp = x
    for (w_ih, w_hh, b_ih, b_hh) in params["lstm"]:
        H = w_hh.shape[1]
        h = jnp.zeros((B, H), jnp.float32)
        c = jnp.zeros((B, H), jnp.float32)
        outs = []
        for t in range(T):
            gates = inp[:, t] @ w_ih.T + b_ih + h @ w_hh.T + b_hh
            i, f, g, o = jnp.split(gates, 4, axis=1)
            i = jax.nn.sigmoid(i)
            f = jax.nn.sigmoid(f)
            g = jnp.tanh(g)
            o = jax.nn.sigmoid(o)
            c = f * c + i * g
            h = o * jnp.tanh(c)
            outs.append(h)
        inp = jnp.stack(outs, axis=1)
    fc_w, fc_b = params["fc"]
    return jax.nn.sigmoid(inp[:, -1] @ fc_w.T + fc_b)


# -----------------------------------------------------------------------------
# Deterministic parameter init (He-style normal init; synthetic, no checkpoint).
# -----------------------------------------------------------------------------
def init_params(key, node_channels, hidden, n_layers, n_outputs):
    params = {"lstm": [], "fc": None}
    for layer in range(n_layers):
        in_dim = node_channels if layer == 0 else hidden
        key, k1, k2, k3, k4 = jax.random.split(key, 5)
        w_ih = jax.random.normal(k1, (4 * hidden, in_dim), jnp.float32) * jnp.sqrt(2.0 / in_dim)
        w_hh = jax.random.normal(k2, (4 * hidden, hidden), jnp.float32) * jnp.sqrt(2.0 / hidden)
        b_ih = jax.random.normal(k3, (4 * hidden,), jnp.float32) * 0.01
        b_hh = jax.random.normal(k4, (4 * hidden,), jnp.float32) * 0.01
        params["lstm"].append((w_ih, w_hh, b_ih, b_hh))
    key, k1, k2 = jax.random.split(key, 3)
    fc_w = jax.random.normal(k1, (n_outputs, hidden), jnp.float32) * jnp.sqrt(2.0 / hidden)
    fc_b = jnp.zeros((n_outputs,), jnp.float32)
    params["fc"] = (fc_w, fc_b)
    return params


if __name__ == "__main__":
    # Shapes consistent with the module: batch=2, seq=8, node_channels=47,
    # hidden_channels=64, rnn_layers=3, n_outputs=1, dropout=0 (no-op at eval).
    B, T, C = 2, 8, 47
    H, L, N_OUT = 64, 3, 1

    key = jax.random.PRNGKey(0)
    key, kx = jax.random.split(key)
    x = jax.random.normal(kx, (B, T, C), jnp.float32)
    params = init_params(key, C, H, L, N_OUT)

    out = baseline_lstm_forward(x, params)
    out = jax.block_until_ready(out)

    ref = baseline_lstm_ref(x, params)
    assert out.shape == (B, N_OUT)
    # Tolerance loosened slightly vs. pure-f32 reference because matmul operands are bf16
    # (f32 accumulation); final outputs sit behind a sigmoid so errors stay small.
    assert jnp.allclose(out, ref, atol=2e-2, rtol=2e-2), (out, ref)

    print("KERNEL_OK")
</pallas_src>

<mosaic_0001>
module attributes {stable_mosaic.version = 11 : i64} {
  func.func @_lstm_kernel(%arg0: memref<64x64xbf16, #tpu.memory_space<vmem>>, %arg1: memref<64x256xbf16, #tpu.memory_space<vmem>>, %arg2: memref<64x256xbf16, #tpu.memory_space<vmem>>, %arg3: memref<1x256xf32, #tpu.memory_space<vmem>>, %arg4: memref<64x256xbf16, #tpu.memory_space<vmem>>, %arg5: memref<64x256xbf16, #tpu.memory_space<vmem>>, %arg6: memref<1x256xf32, #tpu.memory_space<vmem>>, %arg7: memref<64x256xbf16, #tpu.memory_space<vmem>>, %arg8: memref<64x256xbf16, #tpu.memory_space<vmem>>, %arg9: memref<1x256xf32, #tpu.memory_space<vmem>>, %arg10: memref<1x64xf32, #tpu.memory_space<vmem>>, %arg11: memref<1x1xf32, #tpu.memory_space<vmem>>, %arg12: memref<8x1xf32, #tpu.memory_space<vmem>>, %arg13: memref<64x256xf32, #tpu.memory_space<vmem>>) attributes {dimension_semantics = [], scalar_prefetch = 0 : i64, scratch_operands = 1 : i64, tpu.core_type = #tpu.core_type<tc>} {
    %c0 = arith.constant 0 : index
    %c0_0 = arith.constant 0 : index
    %0 = vector.load %arg0[%c0, %c0_0] : memref<64x64xbf16, #tpu.memory_space<vmem>>, vector<64x64xbf16>
    %c0_1 = arith.constant 0 : index
    %c0_2 = arith.constant 0 : index
    %1 = vector.load %arg1[%c0_1, %c0_2] : memref<64x256xbf16, #tpu.memory_space<vmem>>, vector<64x256xbf16>
    %cst = arith.constant dense<0.000000e+00> : vector<64x256xf32>
    %2 = tpu.matmul %0, %1, %cst {dimension_numbers = #tpu.dot_dimension_numbers<[1], [0], [0], [1], [0, 0, 1, 1], [], []>} : vector<64x64xbf16>, vector<64x256xbf16>, vector<64x256xf32> -> vector<64x256xf32>
    %c0_3 = arith.constant 0 : index
    %c0_4 = arith.constant 0 : index
    %3 = vector.load %arg3[%c0_3, %c0_4] : memref<1x256xf32, #tpu.memory_space<vmem>>, vector<1x256xf32>
    %4 = vector.broadcast %3 : vector<1x256xf32> to vector<64x256xf32>
    %5 = arith.addf %2, %4 : vector<64x256xf32>
    %c0_5 = arith.constant 0 : index
    %c0_6 = arith.constant 0 : index
    %6 = vector.load %arg13[%c0_5, %c0_6] : memref<64x256xf32, #tpu.memory_space<vmem>>, vector<64x256xf32>
    tpu.vector_store %arg13[%c0_5, %c0_6], %5 {strides = array<i32>} : memref<64x256xf32, #tpu.memory_space<vmem>>, vector<64x256xf32>,
    %c0_7 = arith.constant 0 : index
    %c0_8 = arith.constant 0 : index
    %7 = vector.load %arg13[%c0_7, %c0_8] : memref<64x256xf32, #tpu.memory_space<vmem>>, vector<8x256xf32>
    %8 = arith.negf %7 : vector<8x256xf32>
    %9 = math.exp %8 : vector<8x256xf32>
    %cst_9 = arith.constant 1.000000e+00 : f32
    %10 = vector.broadcast %cst_9 : f32 to vector<8x256xf32>
    %11 = arith.addf %10, %9 : vector<8x256xf32>
    %12 = arith.divf %10, %11 : vector<8x256xf32>
    %13 = vector.extract_strided_slice %12 {offsets = [0, 0], sizes = [8, 64], strides = [1, 1]} : vector<8x256xf32> to vector<8x64xf32>
    %14 = vector.extract_strided_slice %12 {offsets = [0, 128], sizes = [8, 64], strides = [1, 1]} : vector<8x256xf32> to vector<8x64xf32>
    %cst_10 = arith.constant 2.000000e+00 : f32
    %15 = vector.broadcast %cst_10 : f32 to vector<8x64xf32>
    %16 = arith.mulf %15, %14 : vector<8x64xf32>
    %cst_11 = arith.constant 1.000000e+00 : f32
    %17 = vector.broadcast %cst_11 : f32 to vector<8x64xf32>
    %18 = arith.subf %16, %17 : vector<8x64xf32>
    %19 = vector.extract_strided_slice %12 {offsets = [0, 192], sizes = [8, 64], strides = [1, 1]} : vector<8x256xf32> to vector<8x64xf32>
    %20 = arith.mulf %13, %18 : vector<8x64xf32>
    %21 = math.tanh %20 : vector<8x64xf32>
    %22 = arith.mulf %19, %21 : vector<8x64xf32>
    %c8 = arith.constant 8 : index
    %c0_12 = arith.constant 0 : index
    %23 = vector.load %arg13[%c8, %c0_12] : memref<64x256xf32, #tpu.memory_space<vmem>>, vector<8x256xf32>
    %24 = arith.truncf %22 : vector<8x64xf32> to vector<8x64xbf16>
    %c0_13 = arith.constant 0 : index
    %c0_14 = arith.constant 0 : index
    %25 = vector.load %arg2[%c0_13, %c0_14] : memref<64x256xbf16, #tpu.memory_space<vmem>>, vector<64x256xbf16>
    %cst_15 = arith.constant dense<0.000000e+00> : vector<8x256xf32>
    %26 = tpu.matmul %24, %25, %cst_15 {dimension_numbers = #tpu.dot_dimension_numbers<[1], [0], [0], [1], [0, 0, 1, 1], [], []>} : vector<8x64xbf16>, vector<64x256xbf16>, vector<8x256xf32> -> vector<8x256xf32>
    %27 = arith.addf %23, %26 : vector<8x256xf32>
    %28 = arith.negf %27 : vector<8x256xf32>
    %29 = math.exp %28 : vector<8x256xf32>
    %cst_16 = arith.constant 1.000000e+00 : f32
    %30 = vector.broadcast %cst_16 : f32 to vector<8x256xf32>
    %31 = arith.addf %30, %29 : vector<8x256xf32>
    %32 = arith.divf %30, %31 : vector<8x256xf32>
    %33 = vector.extract_strided_slice %32 {offsets = [0, 0], sizes = [8, 64], strides = [1, 1]} : vector<8x256xf32> to vector<8x64xf32>
    %34 = vector.extract_strided_slice %32 {offsets = [0, 64], sizes = [8, 64], strides = [1, 1]} : vector<8x256xf32> to vector<8x64xf32>
    %35 = vector.extract_strided_slice %32 {offsets = [0, 128], sizes = [8, 64], strides = [1, 1]} : vector<8x256xf32> to vector<8x64xf32>
    %cst_17 = arith.constant 2.000000e+00 : f32
    %36 = vector.broadcast %cst_17 : f32 to vector<8x64xf32>
    %37 = arith.mulf %36, %35 : vector<8x64xf32>
    %cst_18 = arith.constant 1.000000e+00 : f32
    %38 = vector.broadcast %cst_18 : f32 to vector<8x64xf32>
    %39 = arith.subf %37, %38 : vector<8x64xf32>
    %40 = vector.extract_strided_slice %32 {offsets = [0, 192], sizes = [8, 64], strides = [1, 1]} : vector<8x256xf32> to vector<8x64xf32>
    %41 = arith.mulf %34, %20 : vector<8x64xf32>
    %42 = arith.mulf %33, %39 : vector<8x64xf32>
    %43 = arith.addf %41, %42 : vector<8x64xf32>
    %44 = math.tanh %43 : vector<8x64xf32>
    %45 = arith.mulf %40, %44 : vector<8x64xf32>
    %46 = arith.truncf %22 : vector<8x64xf32> to vector<8x64xbf16>
    %c0_19 = arith.constant 0 : index
    %c0_20 = arith.constant 0 : index
    %47 = vector.load %arg4[%c0_19, %c0_20] : memref<64x256xbf16, #tpu.memory_space<vmem>>, vector<64x256xbf16>
    %cst_21 = arith.constant dense<0.000000e+00> : vector<8x256xf32>
    %48 = tpu.matmul %46, %47, %cst_21 {dimension_numbers = #tpu.dot_dimension_numbers<[1], [0], [0], [1], [0, 0, 1, 1], [], []>} : vector<8x64xbf16>, vector<64x256xbf16>, vector<8x256xf32> -> vector<8x256xf32>
    %c0_22 = arith.constant 0 : index
    %c0_23 = arith.constant 0 : index
    %49 = vector.load %arg6[%c0_22, %c0_23] : memref<1x256xf32, #tpu.memory_space<vmem>>, vector<1x256xf32>
    %50 = vector.broadcast %49 : vector<1x256xf32> to vector<8x256xf32>
    %51 = arith.addf %48, %50 : vector<8x256xf32>
    %52 = arith.negf %51 : vector<8x256xf32>
    %53 = math.exp %52 : vector<8x256xf32>
    %cst_24 = arith.constant 1.000000e+00 : f32
    %54 = vector.broadcast %cst_24 : f32 to vector<8x256xf32>
    %55 = arith.addf %54, %53 : vector<8x256xf32>
    %56 = arith.divf %54, %55 : vector<8x256xf32>
    %57 = vector.extract_strided_slice %56 {offsets = [0, 0], sizes = [8, 64], strides = [1, 1]} : vector<8x256xf32> to vector<8x64xf32>
    %58 = vector.extract_strided_slice %56 {offsets = [0, 128], sizes = [8, 64], strides = [1, 1]} : vector<8x256xf32> to vector<8x64xf32>
    %cst_25 = arith.constant 2.000000e+00 : f32
    %59 = vector.broadcast %cst_25 : f32 to vector<8x64xf32>
    %60 = arith.mulf %59, %58 : vector<8x64xf32>
    %cst_26 = arith.constant 1.000000e+00 : f32
    %61 = vector.broadcast %cst_26 : f32 to vector<8x64xf32>
    %62 = arith.subf %60, %61 : vector<8x64xf32>
    %63 = vector.extract_strided_slice %56 {offsets = [0, 192], sizes = [8, 64], strides = [1, 1]} : vector<8x256xf32> to vector<8x64xf32>
    %64 = arith.mulf %57, %62 : vector<8x64xf32>
    %65 = math.tanh %64 : vector<8x64xf32>
    %66 = arith.mulf %63, %65 : vector<8x64xf32>
    %c16 = arith.constant 16 : index
    %c0_27 = arith.constant 0 : index
    %67 = vector.load %arg13[%c16, %c0_27] : memref<64x256xf32, #tpu.memory_space<vmem>>, vector<8x256xf32>
    %68 = arith.truncf %45 : vector<8x64xf32> to vector<8x64xbf16>
    %c0_28 = arith.constant 0 : index
    %c0_29 = arith.constant 0 : index
    %69 = vector.load %arg2[%c0_28, %c0_29] : memref<64x256xbf16, #tpu.memory_space<vmem>>, vector<64x256xbf16>
    %cst_30 = arith.constant dense<0.000000e+00> : vector<8x256xf32>
    %70 = tpu.matmul %68, %69, %cst_30 {dimension_numbers = #tpu.dot_dimension_numbers<[1], [0], [0], [1], [0, 0, 1, 1], [], []>} : vector<8x64xbf16>, vector<64x256xbf16>, vector<8x256xf32> -> vector<8x256xf32>
    %71 = arith.addf %67, %70 : vector<8x256xf32>
    %72 = arith.negf %71 : vector<8x256xf32>
    %73 = math.exp %72 : vector<8x256xf32>
    %cst_31 = arith.constant 1.000000e+00 : f32
    %74 = vector.broadcast %cst_31 : f32 to vector<8x256xf32>
    %75 = arith.addf %74, %73 : vector<8x256xf32>
    %76 = arith.divf %74, %75 : vector<8x256xf32>
    %77 = vector.extract_strided_slice %76 {offsets = [0, 0], sizes = [8, 64], strides = [1, 1]} : vector<8x256xf32> to vector<8x64xf32>
    %78 = vector.extract_strided_slice %76 {offsets = [0, 64], sizes = [8, 64], strides = [1, 1]} : vector<8x256xf32> to vector<8x64xf32>
    %79 = vector.extract_strided_slice %76 {offsets = [0, 128], sizes = [8, 64], strides = [1, 1]} : vector<8x256xf32> to vector<8x64xf32>
    %cst_32 = arith.constant 2.000000e+00 : f32
    %80 = vector.broadcast %cst_32 : f32 to vector<8x64xf32>
    %81 = arith.mulf %80, %79 : vector<8x64xf32>
    %cst_33 = arith.constant 1.000000e+00 : f32
    %82 = vector.broadcast %cst_33 : f32 to vector<8x64xf32>
    %83 = arith.subf %81, %82 : vector<8x64xf32>
    %84 = vector.extract_strided_slice %76 {offsets = [0, 192], sizes = [8, 64], strides = [1, 1]} : vector<8x256xf32> to vector<8x64xf32>
    %85 = arith.mulf %78, %43 : vector<8x64xf32>
    %86 = arith.mulf %77, %83 : vector<8x64xf32>
    %87 = arith.addf %85, %86 : vector<8x64xf32>
    %88 = math.tanh %87 : vector<8x64xf32>
    %89 = arith.mulf %84, %88 : vector<8x64xf32>
    %90 = arith.truncf %45 : vector<8x64xf32> to vector<8x64xbf16>
    %c0_34 = arith.constant 0 : index
    %c0_35 = arith.constant 0 : index
    %91 = vector.load %arg4[%c0_34, %c0_35] : memref<64x256xbf16, #tpu.memory_space<vmem>>, vector<64x256xbf16>
    %cst_36 = arith.constant dense<0.000000e+00> : vector<8x256xf32>
    %92 = tpu.matmul %90, %91, %cst_36 {dimension_numbers = #tpu.dot_dimension_numbers<[1], [0], [0], [1], [0, 0, 1, 1], [], []>} : vector<8x64xbf16>, vector<64x256xbf16>, vector<8x256xf32> -> vector<8x256xf32>
    %c0_37 = arith.constant 0 : index
    %c0_38 = arith.constant 0 : index
    %93 = vector.load %arg6[%c0_37, %c0_38] : memref<1x256xf32, #tpu.memory_space<vmem>>, vector<1x256xf32>
    %94 = vector.broadcast %93 : vector<1x256xf32> to vector<8x256xf32>
    %95 = arith.addf %92, %94 : vector<8x256xf32>
    %96 = arith.truncf %66 : vector<8x64xf32> to vector<8x64xbf16>
    %c0_39 = arith.constant 0 : index
    %c0_40 = arith.constant 0 : index
    %97 = vector.load %arg5[%c0_39, %c0_40] : memref<64x256xbf16, #tpu.memory_space<vmem>>, vector<64x256xbf16>
    %cst_41 = arith.constant dense<0.000000e+00> : vector<8x256xf32>
    %98 = tpu.matmul %96, %97, %cst_41 {dimension_numbers = #tpu.dot_dimension_numbers<[1], [0], [0], [1], [0, 0, 1, 1], [], []>} : vector<8x64xbf16>, vector<64x256xbf16>, vector<8x256xf32> -> vector<8x256xf32>
    %99 = arith.addf %95, %98 : vector<8x256xf32>
    %100 = arith.negf %99 : vector<8x256xf32>
    %101 = math.exp %100 : vector<8x256xf32>
    %cst_42 = arith.constant 1.000000e+00 : f32
    %102 = vector.broadcast %cst_42 : f32 to vector<8x256xf32>
    %103 = arith.addf %102, %101 : vector<8x256xf32>
    %104 = arith.divf %102, %103 : vector<8x256xf32>
    %105 = vector.extract_strided_slice %104 {offsets = [0, 0], sizes = [8, 64], strides = [1, 1]} : vector<8x256xf32> to vector<8x64xf32>
    %106 = vector.extract_strided_slice %104 {offsets = [0, 64], sizes = [8, 64], strides = [1, 1]} : vector<8x256xf32> to vector<8x64xf32>
    %107 = vector.extract_strided_slice %104 {offsets = [0, 128], sizes = [8, 64], strides = [1, 1]} : vector<8x256xf32> to vector<8x64xf32>
    %cst_43 = arith.constant 2.000000e+00 : f32
    %108 = vector.broadcast %cst_43 : f32 to vector<8x64xf32>
    %109 = arith.mulf %108, %107 : vector<8x64xf32>
    %cst_44 = arith.constant 1.000000e+00 : f32
    %110 = vector.broadcast %cst_44 : f32 to vector<8x64xf32>
    %111 = arith.subf %109, %110 : vector<8x64xf32>
    %112 = vector.extract_strided_slice %104 {offsets = [0, 192], sizes = [8, 64], strides = [1, 1]} : vector<8x256xf32> to vector<8x64xf32>
    %113 = arith.mulf %106, %64 : vector<8x64xf32>
    %114 = arith.mulf %105, %111 : vector<8x64xf32>
    %115 = arith.addf %113, %114 : vector<8x64xf32>
    %116 = math.tanh %115 : vector<8x64xf32>
    %117 = arith.mulf %112, %116 : vector<8x64xf32>
    %118 = arith.truncf %66 : vector<8x64xf32> to vector<8x64xbf16>
    %c0_45 = arith.constant 0 : index
    %c0_46 = arith.constant 0 : index
    %119 = vector.load %arg7[%c0_45, %c0_46] : memref<64x256xbf16, #tpu.memory_space<vmem>>, vector<64x256xbf16>
    %cst_47 = arith.constant dense<0.000000e+00> : vector<8x256xf32>
    %120 = tpu.matmul %118, %119, %cst_47 {dimension_numbers = #tpu.dot_dimension_numbers<[1], [0], [0], [1], [0, 0, 1, 1], [], []>} : vector<8x64xbf16>, vector<64x256xbf16>, vector<8x256xf32> -> vector<8x256xf32>
    %c0_48 = arith.constant 0 : index
    %c0_49 = arith.constant 0 : index
    %121 = vector.load %arg9[%c0_48, %c0_49] : memref<1x256xf32, #tpu.memory_space<vmem>>, vector<1x256xf32>
    %122 = vector.broadcast %121 : vector<1x256xf32> to vector<8x256xf32>
    %123 = arith.addf %120, %122 : vector<8x256xf32>
    %124 = arith.negf %123 : vector<8x256xf32>
    %125 = math.exp %124 : vector<8x256xf32>
    %cst_50 = arith.constant 1.000000e+00 : f32
    %126 = vector.broadcast %cst_50 : f32 to vector<8x256xf32>
    %127 = arith.addf %126, %125 : vector<8x256xf32>
    %128 = arith.divf %126, %127 : vector<8x256xf32>
    %129 = vector.extract_strided_slice %128 {offsets = [0, 0], sizes = [8, 64], strides = [1, 1]} : vector<8x256xf32> to vector<8x64xf32>
    %130 = vector.extract_strided_slice %128 {offsets = [0, 128], sizes = [8, 64], strides = [1, 1]} : vector<8x256xf32> to vector<8x64xf32>
    %cst_51 = arith.constant 2.000000e+00 : f32
    %131 = vector.broadcast %cst_51 : f32 to vector<8x64xf32>
    %132 = arith.mulf %131, %130 : vector<8x64xf32>
    %cst_52 = arith.constant 1.000000e+00 : f32
    %133 = vector.broadcast %cst_52 : f32 to vector<8x64xf32>
    %134 = arith.subf %132, %133 : vector<8x64xf32>
    %135 = vector.extract_strided_slice %128 {offsets = [0, 192], sizes = [8, 64], strides = [1, 1]} : vector<8x256xf32> to vector<8x64xf32>
    %136 = arith.mulf %129, %134 : vector<8x64xf32>
    %137 = math.tanh %136 : vector<8x64xf32>
    %138 = arith.mulf %135, %137 : vector<8x64xf32>
    %c24 = arith.constant 24 : index
    %c0_53 = arith.constant 0 : index
    %139 = vector.load %arg13[%c24, %c0_53] : memref<64x256xf32, #tpu.memory_space<vmem>>, vector<8x256xf32>
    %140 = arith.truncf %89 : vector<8x64xf32> to vector<8x64xbf16>
    %c0_54 = arith.constant 0 : index
    %c0_55 = arith.constant 0 : index
    %141 = vector.load %arg2[%c0_54, %c0_55] : memref<64x256xbf16, #tpu.memory_space<vmem>>, vector<64x256xbf16>
    %cst_56 = arith.constant dense<0.000000e+00> : vector<8x256xf32>
    %142 = tpu.matmul %140, %141, %cst_56 {dimension_numbers = #tpu.dot_dimension_numbers<[1], [0], [0], [1], [0, 0, 1, 1], [], []>} : vector<8x64xbf16>, vector<64x256xbf16>, vector<8x256xf32> -> vector<8x256xf32>
    %143 = arith.addf %139, %142 : vector<8x256xf32>
    %144 = arith.negf %143 : vector<8x256xf32>
    %145 = math.exp %144 : vector<8x256xf32>
    %cst_57 = arith.constant 1.000000e+00 : f32
    %146 = vector.broadcast %cst_57 : f32 to vector<8x256xf32>
    %147 = arith.addf %146, %145 : vector<8x256xf32>
    %148 = arith.divf %146, %147 : vector<8x256xf32>
    %149 = vector.extract_strided_slice %148 {offsets = [0, 0], sizes = [8, 64], strides = [1, 1]} : vector<8x256xf32> to vector<8x64xf32>
    %150 = vector.extract_strided_slice %148 {offsets = [0, 64], sizes = [8, 64], strides = [1, 1]} : vector<8x256xf32> to vector<8x64xf32>
    %151 = vector.extract_strided_slice %148 {offsets = [0, 128], sizes = [8, 64], strides = [1, 1]} : vector<8x256xf32> to vector<8x64xf32>
    %cst_58 = arith.constant 2.000000e+00 : f32
    %152 = vector.broadcast %cst_58 : f32 to vector<8x64xf32>
    %153 = arith.mulf %152, %151 : vector<8x64xf32>
    %cst_59 = arith.constant 1.000000e+00 : f32
    %154 = vector.broadcast %cst_59 : f32 to vector<8x64xf32>
    %155 = arith.subf %153, %154 : vector<8x64xf32>
    %156 = vector.extract_strided_slice %148 {offsets = [0, 192], sizes = [8, 64], strides = [1, 1]} : vector<8x256xf32> to vector<8x64xf32>
    %157 = arith.mulf %150, %87 : vector<8x64xf32>
    %158 = arith.mulf %149, %155 : vector<8x64xf32>
    %159 = arith.addf %157, %158 : vector<8x64xf32>
    %160 = math.tanh %159 : vector<8x64xf32>
    %161 = arith.mulf %156, %160 : vector<8x64xf32>
    %162 = arith.truncf %89 : vector<8x64xf32> to vector<8x64xbf16>
    %c0_60 = arith.constant 0 : index
    %c0_61 = arith.constant 0 : index
    %163 = vector.load %arg4[%c0_60, %c0_61] : memref<64x256xbf16, #tpu.memory_space<vmem>>, vector<64x256xbf16>
    %cst_62 = arith.constant dense<0.000000e+00> : vector<8x256xf32>
    %164 = tpu.matmul %162, %163, %cst_62 {dimension_numbers = #tpu.dot_dimension_numbers<[1], [0], [0], [1], [0, 0, 1, 1], [], []>} : vector<8x64xbf16>, vector<64x256xbf16>, vector<8x256xf32> -> vector<8x256xf32>
    %c0_63 = arith.constant 0 : index
    %c0_64 = arith.constant 0 : index
    %165 = vector.load %arg6[%c0_63, %c0_64] : memref<1x256xf32, #tpu.memory_space<vmem>>, vector<1x256xf32>
    %166 = vector.broadcast %165 : vector<1x256xf32> to vector<8x256xf32>
    %167 = arith.addf %164, %166 : vector<8x256xf32>
    %168 = arith.truncf %117 : vector<8x64xf32> to vector<8x64xbf16>
    %c0_65 = arith.constant 0 : index
    %c0_66 = arith.constant 0 : index
    %169 = vector.load %arg5[%c0_65, %c0_66] : memref<64x256xbf16, #tpu.memory_space<vmem>>, vector<64x256xbf16>
    %cst_67 = arith.constant dense<0.000000e+00> : vector<8x256xf32>
    %170 = tpu.matmul %168, %169, %cst_67 {dimension_numbers = #tpu.dot_dimension_numbers<[1], [0], [0], [1], [0, 0, 1, 1], [], []>} : vector<8x64xbf16>, vector<64x256xbf16>, vector<8x256xf32> -> vector<8x256xf32>
    %171 = arith.addf %167, %170 : vector<8x256xf32>
    %172 = arith.negf %171 : vector<8x256xf32>
    %173 = math.exp %172 : vector<8x256xf32>
    %cst_68 = arith.constant 1.000000e+00 : f32
    %174 = vector.broadcast %cst_68 : f32 to vector<8x256xf32>
    %175 = arith.addf %174, %173 : vector<8x256xf32>
    %176 = arith.divf %174, %175 : vector<8x256xf32>
    %177 = vector.extract_strided_slice %176 {offsets = [0, 0], sizes = [8, 64], strides = [1, 1]} : vector<8x256xf32> to vector<8x64xf32>
    %178 = vector.extract_strided_slice %176 {offsets = [0, 64], sizes = [8, 64], strides = [1, 1]} : vector<8x256xf32> to vector<8x64xf32>
    %179 = vector.extract_strided_slice %176 {offsets = [0, 128], sizes = [8, 64], strides = [1, 1]} : vector<8x256xf32> to vector<8x64xf32>
    %cst_69 = arith.constant 2.000000e+00 : f32
    %180 = vector.broadcast %cst_69 : f32 to vector<8x64xf32>
    %181 = arith.mulf %180, %179 : vector<8x64xf32>
    %cst_70 = arith.constant 1.000000e+00 : f32
    %182 = vector.broadcast %cst_70 : f32 to vector<8x64xf32>
    %183 = arith.subf %181, %182 : vector<8x64xf32>
    %184 = vector.extract_strided_slice %176 {offsets = [0, 192], sizes = [8, 64], strides = [1, 1]} : vector<8x256xf32> to vector<8x64xf32>
    %185 = arith.mulf %178, %115 : vector<8x64xf32>
    %186 = arith.mulf %177, %183 : vector<8x64xf32>
    %187 = arith.addf %185, %186 : vector<8x64xf32>
    %188 = math.tanh %187 : vector<8x64xf32>
    %189 = arith.mulf %184, %188 : vector<8x64xf32>
    %190 = arith.truncf %117 : vector<8x64xf32> to vector<8x64xbf16>
    %c0_71 = arith.constant 0 : index
    %c0_72 = arith.constant 0 : index
    %191 = vector.load %arg7[%c0_71, %c0_72] : memref<64x256xbf16, #tpu.memory_space<vmem>>, vector<64x256xbf16>
    %cst_73 = arith.constant dense<0.000000e+00> : vector<8x256xf32>
    %192 = tpu.matmul %190, %191, %cst_73 {dimension_numbers = #tpu.dot_dimension_numbers<[1], [0], [0], [1], [0, 0, 1, 1], [], []>} : vector<8x64xbf16>, vector<64x256xbf16>, vector<8x256xf32> -> vector<8x256xf32>
    %c0_74 = arith.constant 0 : index
    %c0_75 = arith.constant 0 : index
    %193 = vector.load %arg9[%c0_74, %c0_75] : memref<1x256xf32, #tpu.memory_space<vmem>>, vector<1x256xf32>
    %194 = vector.broadcast %193 : vector<1x256xf32> to vector<8x256xf32>
    %195 = arith.addf %192, %194 : vector<8x256xf32>
    %196 = arith.truncf %138 : vector<8x64xf32> to vector<8x64xbf16>
    %c0_76 = arith.constant 0 : index
    %c0_77 = arith.constant 0 : index
    %197 = vector.load %arg8[%c0_76, %c0_77] : memref<64x256xbf16, #tpu.memory_space<vmem>>, vector<64x256xbf16>
    %cst_78 = arith.constant dense<0.000000e+00> : vector<8x256xf32>
    %198 = tpu.matmul %196, %197, %cst_78 {dimension_numbers = #tpu.dot_dimension_numbers<[1], [0], [0], [1], [0, 0, 1, 1], [], []>} : vector<8x64xbf16>, vector<64x256xbf16>, vector<8x256xf32> -> vector<8x256xf32>
    %199 = arith.addf %195, %198 : vector<8x256xf32>
    %200 = arith.negf %199 : vector<8x256xf32>
    %201 = math.exp %200 : vector<8x256xf32>
    %cst_79 = arith.constant 1.000000e+00 : f32
    %202 = vector.broadcast %cst_79 : f32 to vector<8x256xf32>
    %203 = arith.addf %202, %201 : vector<8x256xf32>
    %204 = arith.divf %202, %203 : vector<8x256xf32>
    %205 = vector.extract_strided_slice %204 {offsets = [0, 0], sizes = [8, 64], strides = [1, 1]} : vector<8x256xf32> to vector<8x64xf32>
    %206 = vector.extract_strided_slice %204 {offsets = [0, 64], sizes = [8, 64], strides = [1, 1]} : vector<8x256xf32> to vector<8x64xf32>
    %207 = vector.extract_strided_slice %204 {offsets = [0, 128], sizes = [8, 64], strides = [1, 1]} : vector<8x256xf32> to vector<8x64xf32>
    %cst_80 = arith.constant 2.000000e+00 : f32
    %208 = vector.broadcast %cst_80 : f32 to vector<8x64xf32>
    %209 = arith.mulf %208, %207 : vector<8x64xf32>
    %cst_81 = arith.constant 1.000000e+00 : f32
    %210 = vector.broadcast %cst_81 : f32 to vector<8x64xf32>
    %211 = arith.subf %209, %210 : vector<8x64xf32>
    %212 = vector.extract_strided_slice %204 {offsets = [0, 192], sizes = [8, 64], strides = [1, 1]} : vector<8x256xf32> to vector<8x64xf32>
    %213 = arith.mulf %206, %136 : vector<8x64xf32>
    %214 = arith.mulf %205, %211 : vector<8x64xf32>
    %215 = arith.addf %213, %214 : vector<8x64xf32>
    %216 = math.tanh %215 : vector<8x64xf32>
    %217 = arith.mulf %212, %216 : vector<8x64xf32>
    %c32 = arith.constant 32 : index
    %c0_82 = arith.constant 0 : index
    %218 = vector.load %arg13[%c32, %c0_82] : memref<64x256xf32, #tpu.memory_space<vmem>>, vector<8x256xf32>
    %219 = arith.truncf %161 : vector<8x64xf32> to vector<8x64xbf16>
    %c0_83 = arith.constant 0 : index
    %c0_84 = arith.constant 0 : index
    %220 = vector.load %arg2[%c0_83, %c0_84] : memref<64x256xbf16, #tpu.memory_space<vmem>>, vector<64x256xbf16>
    %cst_85 = arith.constant dense<0.000000e+00> : vector<8x256xf32>
    %221 = tpu.matmul %219, %220, %cst_85 {dimension_numbers = #tpu.dot_dimension_numbers<[1], [0], [0], [1], [0, 0, 1, 1], [], []>} : vector<8x64xbf16>, vector<64x256xbf16>, vector<8x256xf32> -> vector<8x256xf32>
    %222 = arith.addf %218, %221 : vector<8x256xf32>
    %223 = arith.negf %222 : vector<8x256xf32>
    %224 = math.exp %223 : vector<8x256xf32>
    %cst_86 = arith.constant 1.000000e+00 : f32
    %225 = vector.broadcast %cst_86 : f32 to vector<8x256xf32>
    %226 = arith.addf %225, %224 : vector<8x256xf32>
    %227 = arith.divf %225, %226 : vector<8x256xf32>
    %228 = vector.extract_strided_slice %227 {offsets = [0, 0], sizes = [8, 64], strides = [1, 1]} : vector<8x256xf32> to vector<8x64xf32>
    %229 = vector.extract_strided_slice %227 {offsets = [0, 64], sizes = [8, 64], strides = [1, 1]} : vector<8x256xf32> to vector<8x64xf32>
    %230 = vector.extract_strided_slice %227 {offsets = [0, 128], sizes = [8, 64], strides = [1, 1]} : vector<8x256xf32> to vector<8x64xf32>
    %cst_87 = arith.constant 2.000000e+00 : f32
    %231 = vector.broadcast %cst_87 : f32 to vector<8x64xf32>
    %232 = arith.mulf %231, %230 : vector<8x64xf32>
    %cst_88 = arith.constant 1.000000e+00 : f32
    %233 = vector.broadcast %cst_88 : f32 to vector<8x64xf32>
    %234 = arith.subf %232, %233 : vector<8x64xf32>
    %235 = vector.extract_strided_slice %227 {offsets = [0, 192], sizes = [8, 64], strides = [1, 1]} : vector<8x256xf32> to vector<8x64xf32>
    %236 = arith.mulf %229, %159 : vector<8x64xf32>
    %237 = arith.mulf %228, %234 : vector<8x64xf32>
    %238 = arith.addf %236, %237 : vector<8x64xf32>
    %239 = math.tanh %238 : vector<8x64xf32>
    %240 = arith.mulf %235, %239 : vector<8x64xf32>
    %241 = arith.truncf %161 : vector<8x64xf32> to vector<8x64xbf16>
    %c0_89 = arith.constant 0 : index
    %c0_90 = arith.constant 0 : index
    %242 = vector.load %arg4[%c0_89, %c0_90] : memref<64x256xbf16, #tpu.memory_space<vmem>>, vector<64x256xbf16>
    %cst_91 = arith.constant dense<0.000000e+00> : vector<8x256xf32>
    %243 = tpu.matmul %241, %242, %cst_91 {dimension_numbers = #tpu.dot_dimension_numbers<[1], [0], [0], [1], [0, 0, 1, 1], [], []>} : vector<8x64xbf16>, vector<64x256xbf16>, vector<8x256xf32> -> vector<8x256xf32>
    %c0_92 = arith.constant 0 : index
    %c0_93 = arith.constant 0 : index
    %244 = vector.load %arg6[%c0_92, %c0_93] : memref<1x256xf32, #tpu.memory_space<vmem>>, vector<1x256xf32>
    %245 = vector.broadcast %244 : vector<1x256xf32> to vector<8x256xf32>
    %246 = arith.addf %243, %245 : vector<8x256xf32>
    %247 = arith.truncf %189 : vector<8x64xf32> to vector<8x64xbf16>
    %c0_94 = arith.constant 0 : index
    %c0_95 = arith.constant 0 : index
    %248 = vector.load %arg5[%c0_94, %c0_95] : memref<64x256xbf16, #tpu.memory_space<vmem>>, vector<64x256xbf16>
    %cst_96 = arith.constant dense<0.000000e+00> : vector<8x256xf32>
    %249 = tpu.matmul %247, %248, %cst_96 {dimension_numbers = #tpu.dot_dimension_numbers<[1], [0], [0], [1], [0, 0, 1, 1], [], []>} : vector<8x64xbf16>, vector<64x256xbf16>, vector<8x256xf32> -> vector<8x256xf32>
    %250 = arith.addf %246, %249 : vector<8x256xf32>
    %251 = arith.negf %250 : vector<8x256xf32>
    %252 = math.exp %251 : vector<8x256xf32>
    %cst_97 = arith.constant 1.000000e+00 : f32
    %253 = vector.broadcast %cst_97 : f32 to vector<8x256xf32>
    %254 = arith.addf %253, %252 : vector<8x256xf32>
    %255 = arith.divf %253, %254 : vector<8x256xf32>
    %256 = vector.extract_strided_slice %255 {offsets = [0, 0], sizes = [8, 64], strides = [1, 1]} : vector<8x256xf32> to vector<8x64xf32>
    %257 = vector.extract_strided_slice %255 {offsets = [0, 64], sizes = [8, 64], strides = [1, 1]} : vector<8x256xf32> to vector<8x64xf32>
    %258 = vector.extract_strided_slice %255 {offsets = [0, 128], sizes = [8, 64], strides = [1, 1]} : vector<8x256xf32> to vector<8x64xf32>
    %cst_98 = arith.constant 2.000000e+00 : f32
    %259 = vector.broadcast %cst_98 : f32 to vector<8x64xf32>
    %260 = arith.mulf %259, %258 : vector<8x64xf32>
    %cst_99 = arith.constant 1.000000e+00 : f32
    %261 = vector.broadcast %cst_99 : f32 to vector<8x64xf32>
    %262 = arith.subf %260, %261 : vector<8x64xf32>
    %263 = vector.extract_strided_slice %255 {offsets = [0, 192], sizes = [8, 64], strides = [1, 1]} : vector<8x256xf32> to vector<8x64xf32>
    %264 = arith.mulf %257, %187 : vector<8x64xf32>
    %265 = arith.mulf %256, %262 : vector<8x64xf32>
    %266 = arith.addf %264, %265 : vector<8x64xf32>
    %267 = math.tanh %266 : vector<8x64xf32>
    %268 = arith.mulf %263, %267 : vector<8x64xf32>
    %269 = arith.truncf %189 : vector<8x64xf32> to vector<8x64xbf16>
    %c0_100 = arith.constant 0 : index
    %c0_101 = arith.constant 0 : index
    %270 = vector.load %arg7[%c0_100, %c0_101] : memref<64x256xbf16, #tpu.memory_space<vmem>>, vector<64x256xbf16>
    %cst_102 = arith.constant dense<0.000000e+00> : vector<8x256xf32>
    %271 = tpu.matmul %269, %270, %cst_102 {dimension_numbers = #tpu.dot_dimension_numbers<[1], [0], [0], [1], [0, 0, 1, 1], [], []>} : vector<8x64xbf16>, vector<64x256xbf16>, vector<8x256xf32> -> vector<8x256xf32>
    %c0_103 = arith.constant 0 : index
    %c0_104 = arith.constant 0 : index
    %272 = vector.load %arg9[%c0_103, %c0_104] : memref<1x256xf32, #tpu.memory_space<vmem>>, vector<1x256xf32>
    %273 = vector.broadcast %272 : vector<1x256xf32> to vector<8x256xf32>
    %274 = arith.addf %271, %273 : vector<8x256xf32>
    %275 = arith.truncf %217 : vector<8x64xf32> to vector<8x64xbf16>
    %c0_105 = arith.constant 0 : index
    %c0_106 = arith.constant 0 : index
    %276 = vector.load %arg8[%c0_105, %c0_106] : memref<64x256xbf16, #tpu.memory_space<vmem>>, vector<64x256xbf16>
    %cst_107 = arith.constant dense<0.000000e+00> : vector<8x256xf32>
    %277 = tpu.matmul %275, %276, %cst_107 {dimension_numbers = #tpu.dot_dimension_numbers<[1], [0], [0], [1], [0, 0, 1, 1], [], []>} : vector<8x64xbf16>, vector<64x256xbf16>, vector<8x256xf32> -> vector<8x256xf32>
    %278 = arith.addf %274, %277 : vector<8x256xf32>
    %279 = arith.negf %278 : vector<8x256xf32>
    %280 = math.exp %279 : vector<8x256xf32>
    %cst_108 = arith.constant 1.000000e+00 : f32
    %281 = vector.broadcast %cst_108 : f32 to vector<8x256xf32>
    %282 = arith.addf %281, %280 : vector<8x256xf32>
    %283 = arith.divf %281, %282 : vector<8x256xf32>
    %284 = vector.extract_strided_slice %283 {offsets = [0, 0], sizes = [8, 64], strides = [1, 1]} : vector<8x256xf32> to vector<8x64xf32>
    %285 = vector.extract_strided_slice %283 {offsets = [0, 64], sizes = [8, 64], strides = [1, 1]} : vector<8x256xf32> to vector<8x64xf32>
    %286 = vector.extract_strided_slice %283 {offsets = [0, 128], sizes = [8, 64], strides = [1, 1]} : vector<8x256xf32> to vector<8x64xf32>
    %cst_109 = arith.constant 2.000000e+00 : f32
    %287 = vector.broadcast %cst_109 : f32 to vector<8x64xf32>
    %288 = arith.mulf %287, %286 : vector<8x64xf32>
    %cst_110 = arith.constant 1.000000e+00 : f32
    %289 = vector.broadcast %cst_110 : f32 to vector<8x64xf32>
    %290 = arith.subf %288, %289 : vector<8x64xf32>
    %291 = vector.extract_strided_slice %283 {offsets = [0, 192], sizes = [8, 64], strides = [1, 1]} : vector<8x256xf32> to vector<8x64xf32>
    %292 = arith.mulf %285, %215 : vector<8x64xf32>
    %293 = arith.mulf %284, %290 : vector<8x64xf32>
    %294 = arith.addf %292, %293 : vector<8x64xf32>
    %295 = math.tanh %294 : vector<8x64xf32>
    %296 = arith.mulf %291, %295 : vector<8x64xf32>
    %c40 = arith.constant 40 : index
    %c0_111 = arith.constant 0 : index
    %297 = vector.load %arg13[%c40, %c0_111] : memref<64x256xf32, #tpu.memory_space<vmem>>, vector<8x256xf32>
    %298 = arith.truncf %240 : vector<8x64xf32> to vector<8x64xbf16>
    %c0_112 = arith.constant 0 : index
    %c0_113 = arith.constant 0 : index
    %299 = vector.load %arg2[%c0_112, %c0_113] : memref<64x256xbf16, #tpu.memory_space<vmem>>, vector<64x256xbf16>
    %cst_114 = arith.constant dense<0.000000e+00> : vector<8x256xf32>
    %300 = tpu.matmul %298, %299, %cst_114 {dimension_numbers = #tpu.dot_dimension_numbers<[1], [0], [0], [1], [0, 0, 1, 1], [], []>} : vector<8x64xbf16>, vector<64x256xbf16>, vector<8x256xf32> -> vector<8x256xf32>
    %301 = arith.addf %297, %300 : vector<8x256xf32>
    %302 = arith.negf %301 : vector<8x256xf32>
    %303 = math.exp %302 : vector<8x256xf32>
    %cst_115 = arith.constant 1.000000e+00 : f32
    %304 = vector.broadcast %cst_115 : f32 to vector<8x256xf32>
    %305 = arith.addf %304, %303 : vector<8x256xf32>
    %306 = arith.divf %304, %305 : vector<8x256xf32>
    %307 = vector.extract_strided_slice %306 {offsets = [0, 0], sizes = [8, 64], strides = [1, 1]} : vector<8x256xf32> to vector<8x64xf32>
    %308 = vector.extract_strided_slice %306 {offsets = [0, 64], sizes = [8, 64], strides = [1, 1]} : vector<8x256xf32> to vector<8x64xf32>
    %309 = vector.extract_strided_slice %306 {offsets = [0, 128], sizes = [8, 64], strides = [1, 1]} : vector<8x256xf32> to vector<8x64xf32>
    %cst_116 = arith.constant 2.000000e+00 : f32
    %310 = vector.broadcast %cst_116 : f32 to vector<8x64xf32>
    %311 = arith.mulf %310, %309 : vector<8x64xf32>
    %cst_117 = arith.constant 1.000000e+00 : f32
    %312 = vector.broadcast %cst_117 : f32 to vector<8x64xf32>
    %313 = arith.subf %311, %312 : vector<8x64xf32>
    %314 = vector.extract_strided_slice %306 {offsets = [0, 192], sizes = [8, 64], strides = [1, 1]} : vector<8x256xf32> to vector<8x64xf32>
    %315 = arith.mulf %308, %238 : vector<8x64xf32>
    %316 = arith.mulf %307, %313 : vector<8x64xf32>
    %317 = arith.addf %315, %316 : vector<8x64xf32>
    %318 = math.tanh %317 : vector<8x64xf32>
    %319 = arith.mulf %314, %318 : vector<8x64xf32>
    %320 = arith.truncf %240 : vector<8x64xf32> to vector<8x64xbf16>
    %c0_118 = arith.constant 0 : index
    %c0_119 = arith.constant 0 : index
    %321 = vector.load %arg4[%c0_118, %c0_119] : memref<64x256xbf16, #tpu.memory_space<vmem>>, vector<64x256xbf16>
    %cst_120 = arith.constant dense<0.000000e+00> : vector<8x256xf32>
    %322 = tpu.matmul %320, %321, %cst_120 {dimension_numbers = #tpu.dot_dimension_numbers<[1], [0], [0], [1], [0, 0, 1, 1], [], []>} : vector<8x64xbf16>, vector<64x256xbf16>, vector<8x256xf32> -> vector<8x256xf32>
    %c0_121 = arith.constant 0 : index
    %c0_122 = arith.constant 0 : index
    %323 = vector.load %arg6[%c0_121, %c0_122] : memref<1x256xf32, #tpu.memory_space<vmem>>, vector<1x256xf32>
    %324 = vector.broadcast %323 : vector<1x256xf32> to vector<8x256xf32>
    %325 = arith.addf %322, %324 : vector<8x256xf32>
    %326 = arith.truncf %268 : vector<8x64xf32> to vector<8x64xbf16>
    %c0_123 = arith.constant 0 : index
    %c0_124 = arith.constant 0 : index
    %327 = vector.load %arg5[%c0_123, %c0_124] : memref<64x256xbf16, #tpu.memory_space<vmem>>, vector<64x256xbf16>
    %cst_125 = arith.constant dense<0.000000e+00> : vector<8x256xf32>
    %328 = tpu.matmul %326, %327, %cst_125 {dimension_numbers = #tpu.dot_dimension_numbers<[1], [0], [0], [1], [0, 0, 1, 1], [], []>} : vector<8x64xbf16>, vector<64x256xbf16>, vector<8x256xf32> -> vector<8x256xf32>
    %329 = arith.addf %325, %328 : vector<8x256xf32>
    %330 = arith.negf %329 : vector<8x256xf32>
    %331 = math.exp %330 : vector<8x256xf32>
    %cst_126 = arith.constant 1.000000e+00 : f32
    %332 = vector.broadcast %cst_126 : f32 to vector<8x256xf32>
    %333 = arith.addf %332, %331 : vector<8x256xf32>
    %334 = arith.divf %332, %333 : vector<8x256xf32>
    %335 = vector.extract_strided_slice %334 {offsets = [0, 0], sizes = [8, 64], strides = [1, 1]} : vector<8x256xf32> to vector<8x64xf32>
    %336 = vector.extract_strided_slice %334 {offsets = [0, 64], sizes = [8, 64], strides = [1, 1]} : vector<8x256xf32> to vector<8x64xf32>
    %337 = vector.extract_strided_slice %334 {offsets = [0, 128], sizes = [8, 64], strides = [1, 1]} : vector<8x256xf32> to vector<8x64xf32>
    %cst_127 = arith.constant 2.000000e+00 : f32
    %338 = vector.broadcast %cst_127 : f32 to vector<8x64xf32>
    %339 = arith.mulf %338, %337 : vector<8x64xf32>
    %cst_128 = arith.constant 1.000000e+00 : f32
    %340 = vector.broadcast %cst_128 : f32 to vector<8x64xf32>
    %341 = arith.subf %339, %340 : vector<8x64xf32>
    %342 = vector.extract_strided_slice %334 {offsets = [0, 192], sizes = [8, 64], strides = [1, 1]} : vector<8x256xf32> to vector<8x64xf32>
    %343 = arith.mulf %336, %266 : vector<8x64xf32>
    %344 = arith.mulf %335, %341 : vector<8x64xf32>
    %345 = arith.addf %343, %344 : vector<8x64xf32>
    %346 = math.tanh %345 : vector<8x64xf32>
    %347 = arith.mulf %342, %346 : vector<8x64xf32>
    %348 = arith.truncf %268 : vector<8x64xf32> to vector<8x64xbf16>
    %c0_129 = arith.constant 0 : index
    %c0_130 = arith.constant 0 : index
    %349 = vector.load %arg7[%c0_129, %c0_130] : memref<64x256xbf16, #tpu.memory_space<vmem>>, vector<64x256xbf16>
    %cst_131 = arith.constant dense<0.000000e+00> : vector<8x256xf32>
    %350 = tpu.matmul %348, %349, %cst_131 {dimension_numbers = #tpu.dot_dimension_numbers<[1], [0], [0], [1], [0, 0, 1, 1], [], []>} : vector<8x64xbf16>, vector<64x256xbf16>, vector<8x256xf32> -> vector<8x256xf32>
    %c0_132 = arith.constant 0 : index
    %c0_133 = arith.constant 0 : index
    %351 = vector.load %arg9[%c0_132, %c0_133] : memref<1x256xf32, #tpu.memory_space<vmem>>, vector<1x256xf32>
    %352 = vector.broadcast %351 : vector<1x256xf32> to vector<8x256xf32>
    %353 = arith.addf %350, %352 : vector<8x256xf32>
    %354 = arith.truncf %296 : vector<8x64xf32> to vector<8x64xbf16>
    %c0_134 = arith.constant 0 : index
    %c0_135 = arith.constant 0 : index
    %355 = vector.load %arg8[%c0_134, %c0_135] : memref<64x256xbf16, #tpu.memory_space<vmem>>, vector<64x256xbf16>
    %cst_136 = arith.constant dense<0.000000e+00> : vector<8x256xf32>
    %356 = tpu.matmul %354, %355, %cst_136 {dimension_numbers = #tpu.dot_dimension_numbers<[1], [0], [0], [1], [0, 0, 1, 1], [], []>} : vector<8x64xbf16>, vector<64x256xbf16>, vector<8x256xf32> -> vector<8x256xf32>
    %357 = arith.addf %353, %356 : vector<8x256xf32>
    %358 = arith.negf %357 : vector<8x256xf32>
    %359 = math.exp %358 : vector<8x256xf32>
    %cst_137 = arith.constant 1.000000e+00 : f32
    %360 = vector.broadcast %cst_137 : f32 to vector<8x256xf32>
    %361 = arith.addf %360, %359 : vector<8x256xf32>
    %362 = arith.divf %360, %361 : vector<8x256xf32>
    %363 = vector.extract_strided_slice %362 {offsets = [0, 0], sizes = [8, 64], strides = [1, 1]} : vector<8x256xf32> to vector<8x64xf32>
    %364 = vector.extract_strided_slice %362 {offsets = [0, 64], sizes = [8, 64], strides = [1, 1]} : vector<8x256xf32> to vector<8x64xf32>
    %365 = vector.extract_strided_slice %362 {offsets = [0, 128], sizes = [8, 64], strides = [1, 1]} : vector<8x256xf32> to vector<8x64xf32>
    %cst_138 = arith.constant 2.000000e+00 : f32
    %366 = vector.broadcast %cst_138 : f32 to vector<8x64xf32>
    %367 = arith.mulf %366, %365 : vector<8x64xf32>
    %cst_139 = arith.constant 1.000000e+00 : f32
    %368 = vector.broadcast %cst_139 : f32 to vector<8x64xf32>
    %369 = arith.subf %367, %368 : vector<8x64xf32>
    %370 = vector.extract_strided_slice %362 {offsets = [0, 192], sizes = [8, 64], strides = [1, 1]} : vector<8x256xf32> to vector<8x64xf32>
    %371 = arith.mulf %364, %294 : vector<8x64xf32>
    %372 = arith.mulf %363, %369 : vector<8x64xf32>
    %373 = arith.addf %371, %372 : vector<8x64xf32>
    %374 = math.tanh %373 : vector<8x64xf32>
    %375 = arith.mulf %370, %374 : vector<8x64xf32>
    %c48 = arith.constant 48 : index
    %c0_140 = arith.constant 0 : index
    %376 = vector.load %arg13[%c48, %c0_140] : memref<64x256xf32, #tpu.memory_space<vmem>>, vector<8x256xf32>
    %377 = arith.truncf %319 : vector<8x64xf32> to vector<8x64xbf16>
    %c0_141 = arith.constant 0 : index
    %c0_142 = arith.constant 0 : index
    %378 = vector.load %arg2[%c0_141, %c0_142] : memref<64x256xbf16, #tpu.memory_space<vmem>>, vector<64x256xbf16>
    %cst_143 = arith.constant dense<0.000000e+00> : vector<8x256xf32>
    %379 = tpu.matmul %377, %378, %cst_143 {dimension_numbers = #tpu.dot_dimension_numbers<[1], [0], [0], [1], [0, 0, 1, 1], [], []>} : vector<8x64xbf16>, vector<64x256xbf16>, vector<8x256xf32> -> vector<8x256xf32>
    %380 = arith.addf %376, %379 : vector<8x256xf32>
    %381 = arith.negf %380 : vector<8x256xf32>
    %382 = math.exp %381 : vector<8x256xf32>
    %cst_144 = arith.constant 1.000000e+00 : f32
    %383 = vector.broadcast %cst_144 : f32 to vector<8x256xf32>
    %384 = arith.addf %383, %382 : vector<8x256xf32>
    %385 = arith.divf %383, %384 : vector<8x256xf32>
    %386 = vector.extract_strided_slice %385 {offsets = [0, 0], sizes = [8, 64], strides = [1, 1]} : vector<8x256xf32> to vector<8x64xf32>
    %387 = vector.extract_strided_slice %385 {offsets = [0, 64], sizes = [8, 64], strides = [1, 1]} : vector<8x256xf32> to vector<8x64xf32>
    %388 = vector.extract_strided_slice %385 {offsets = [0, 128], sizes = [8, 64], strides = [1, 1]} : vector<8x256xf32> to vector<8x64xf32>
    %cst_145 = arith.constant 2.000000e+00 : f32
    %389 = vector.broadcast %cst_145 : f32 to vector<8x64xf32>
    %390 = arith.mulf %389, %388 : vector<8x64xf32>
    %cst_146 = arith.constant 1.000000e+00 : f32
    %391 = vector.broadcast %cst_146 : f32 to vector<8x64xf32>
    %392 = arith.subf %390, %391 : vector<8x64xf32>
    %393 = vector.extract_strided_slice %385 {offsets = [0, 192], sizes = [8, 64], strides = [1, 1]} : vector<8x256xf32> to vector<8x64xf32>
    %394 = arith.mulf %387, %317 : vector<8x64xf32>
    %395 = arith.mulf %386, %392 : vector<8x64xf32>
    %396 = arith.addf %394, %395 : vector<8x64xf32>
    %397 = math.tanh %396 : vector<8x64xf32>
    %398 = arith.mulf %393, %397 : vector<8x64xf32>
    %399 = arith.truncf %319 : vector<8x64xf32> to vector<8x64xbf16>
    %c0_147 = arith.constant 0 : index
    %c0_148 = arith.constant 0 : index
    %400 = vector.load %arg4[%c0_147, %c0_148] : memref<64x256xbf16, #tpu.memory_space<vmem>>, vector<64x256xbf16>
    %cst_149 = arith.constant dense<0.000000e+00> : vector<8x256xf32>
    %401 = tpu.matmul %399, %400, %cst_149 {dimension_numbers = #tpu.dot_dimension_numbers<[1], [0], [0], [1], [0, 0, 1, 1], [], []>} : vector<8x64xbf16>, vector<64x256xbf16>, vector<8x256xf32> -> vector<8x256xf32>
    %c0_150 = arith.constant 0 : index
    %c0_151 = arith.constant 0 : index
    %402 = vector.load %arg6[%c0_150, %c0_151] : memref<1x256xf32, #tpu.memory_space<vmem>>, vector<1x256xf32>
    %403 = vector.broadcast %402 : vector<1x256xf32> to vector<8x256xf32>
    %404 = arith.addf %401, %403 : vector<8x256xf32>
    %405 = arith.truncf %347 : vector<8x64xf32> to vector<8x64xbf16>
    %c0_152 = arith.constant 0 : index
    %c0_153 = arith.constant 0 : index
    %406 = vector.load %arg5[%c0_152, %c0_153] : memref<64x256xbf16, #tpu.memory_space<vmem>>, vector<64x256xbf16>
    %cst_154 = arith.constant dense<0.000000e+00> : vector<8x256xf32>
    %407 = tpu.matmul %405, %406, %cst_154 {dimension_numbers = #tpu.dot_dimension_numbers<[1], [0], [0], [1], [0, 0, 1, 1], [], []>} : vector<8x64xbf16>, vector<64x256xbf16>, vector<8x256xf32> -> vector<8x256xf32>
    %408 = arith.addf %404, %407 : vector<8x256xf32>
    %409 = arith.negf %408 : vector<8x256xf32>
    %410 = math.exp %409 : vector<8x256xf32>
    %cst_155 = arith.constant 1.000000e+00 : f32
    %411 = vector.broadcast %cst_155 : f32 to vector<8x256xf32>
    %412 = arith.addf %411, %410 : vector<8x256xf32>
    %413 = arith.divf %411, %412 : vector<8x256xf32>
    %414 = vector.extract_strided_slice %413 {offsets = [0, 0], sizes = [8, 64], strides = [1, 1]} : vector<8x256xf32> to vector<8x64xf32>
    %415 = vector.extract_strided_slice %413 {offsets = [0, 64], sizes = [8, 64], strides = [1, 1]} : vector<8x256xf32> to vector<8x64xf32>
    %416 = vector.extract_strided_slice %413 {offsets = [0, 128], sizes = [8, 64], strides = [1, 1]} : vector<8x256xf32> to vector<8x64xf32>
    %cst_156 = arith.constant 2.000000e+00 : f32
    %417 = vector.broadcast %cst_156 : f32 to vector<8x64xf32>
    %418 = arith.mulf %417, %416 : vector<8x64xf32>
    %cst_157 = arith.constant 1.000000e+00 : f32
    %419 = vector.broadcast %cst_157 : f32 to vector<8x64xf32>
    %420 = arith.subf %418, %419 : vector<8x64xf32>
    %421 = vector.extract_strided_slice %413 {offsets = [0, 192], sizes = [8, 64], strides = [1, 1]} : vector<8x256xf32> to vector<8x64xf32>
    %422 = arith.mulf %415, %345 : vector<8x64xf32>
    %423 = arith.mulf %414, %420 : vector<8x64xf32>
    %424 = arith.addf %422, %423 : vector<8x64xf32>
    %425 = math.tanh %424 : vector<8x64xf32>
    %426 = arith.mulf %421, %425 : vector<8x64xf32>
    %427 = arith.truncf %347 : vector<8x64xf32> to vector<8x64xbf16>
    %c0_158 = arith.constant 0 : index
    %c0_159 = arith.constant 0 : index
    %428 = vector.load %arg7[%c0_158, %c0_159] : memref<64x256xbf16, #tpu.memory_space<vmem>>, vector<64x256xbf16>
    %cst_160 = arith.constant dense<0.000000e+00> : vector<8x256xf32>
    %429 = tpu.matmul %427, %428, %cst_160 {dimension_numbers = #tpu.dot_dimension_numbers<[1], [0], [0], [1], [0, 0, 1, 1], [], []>} : vector<8x64xbf16>, vector<64x256xbf16>, vector<8x256xf32> -> vector<8x256xf32>
    %c0_161 = arith.constant 0 : index
    %c0_162 = arith.constant 0 : index
    %430 = vector.load %arg9[%c0_161, %c0_162] : memref<1x256xf32, #tpu.memory_space<vmem>>, vector<1x256xf32>
    %431 = vector.broadcast %430 : vector<1x256xf32> to vector<8x256xf32>
    %432 = arith.addf %429, %431 : vector<8x256xf32>
    %433 = arith.truncf %375 : vector<8x64xf32> to vector<8x64xbf16>
    %c0_163 = arith.constant 0 : index
    %c0_164 = arith.constant 0 : index
    %434 = vector.load %arg8[%c0_163, %c0_164] : memref<64x256xbf16, #tpu.memory_space<vmem>>, vector<64x256xbf16>
    %cst_165 = arith.constant dense<0.000000e+00> : vector<8x256xf32>
    %435 = tpu.matmul %433, %434, %cst_165 {dimension_numbers = #tpu.dot_dimension_numbers<[1], [0], [0], [1], [0, 0, 1, 1], [], []>} : vector<8x64xbf16>, vector<64x256xbf16>, vector<8x256xf32> -> vector<8x256xf32>
    %436 = arith.addf %432, %435 : vector<8x256xf32>
    %437 = arith.negf %436 : vector<8x256xf32>
    %438 = math.exp %437 : vector<8x256xf32>
    %cst_166 = arith.constant 1.000000e+00 : f32
    %439 = vector.broadcast %cst_166 : f32 to vector<8x256xf32>
    %440 = arith.addf %439, %438 : vector<8x256xf32>
    %441 = arith.divf %439, %440 : vector<8x256xf32>
    %442 = vector.extract_strided_slice %441 {offsets = [0, 0], sizes = [8, 64], strides = [1, 1]} : vector<8x256xf32> to vector<8x64xf32>
    %443 = vector.extract_strided_slice %441 {offsets = [0, 64], sizes = [8, 64], strides = [1, 1]} : vector<8x256xf32> to vector<8x64xf32>
    %444 = vector.extract_strided_slice %441 {offsets = [0, 128], sizes = [8, 64], strides = [1, 1]} : vector<8x256xf32> to vector<8x64xf32>
    %cst_167 = arith.constant 2.000000e+00 : f32
    %445 = vector.broadcast %cst_167 : f32 to vector<8x64xf32>
    %446 = arith.mulf %445, %444 : vector<8x64xf32>
    %cst_168 = arith.constant 1.000000e+00 : f32
    %447 = vector.broadcast %cst_168 : f32 to vector<8x64xf32>
    %448 = arith.subf %446, %447 : vector<8x64xf32>
    %449 = vector.extract_strided_slice %441 {offsets = [0, 192], sizes = [8, 64], strides = [1, 1]} : vector<8x256xf32> to vector<8x64xf32>
    %450 = arith.mulf %443, %373 : vector<8x64xf32>
    %451 = arith.mulf %442, %448 : vector<8x64xf32>
    %452 = arith.addf %450, %451 : vector<8x64xf32>
    %453 = math.tanh %452 : vector<8x64xf32>
    %454 = arith.mulf %449, %453 : vector<8x64xf32>
    %c56 = arith.constant 56 : index
    %c0_169 = arith.constant 0 : index
    %455 = vector.load %arg13[%c56, %c0_169] : memref<64x256xf32, #tpu.memory_space<vmem>>, vector<8x256xf32>
    %456 = arith.truncf %398 : vector<8x64xf32> to vector<8x64xbf16>
    %c0_170 = arith.constant 0 : index
    %c0_171 = arith.constant 0 : index
    %457 = vector.load %arg2[%c0_170, %c0_171] : memref<64x256xbf16, #tpu.memory_space<vmem>>, vector<64x256xbf16>
    %cst_172 = arith.constant dense<0.000000e+00> : vector<8x256xf32>
    %458 = tpu.matmul %456, %457, %cst_172 {dimension_numbers = #tpu.dot_dimension_numbers<[1], [0], [0], [1], [0, 0, 1, 1], [], []>} : vector<8x64xbf16>, vector<64x256xbf16>, vector<8x256xf32> -> vector<8x256xf32>
    %459 = arith.addf %455, %458 : vector<8x256xf32>
    %460 = arith.negf %459 : vector<8x256xf32>
    %461 = math.exp %460 : vector<8x256xf32>
    %cst_173 = arith.constant 1.000000e+00 : f32
    %462 = vector.broadcast %cst_173 : f32 to vector<8x256xf32>
    %463 = arith.addf %462, %461 : vector<8x256xf32>
    %464 = arith.divf %462, %463 : vector<8x256xf32>
    %465 = vector.extract_strided_slice %464 {offsets = [0, 0], sizes = [8, 64], strides = [1, 1]} : vector<8x256xf32> to vector<8x64xf32>
    %466 = vector.extract_strided_slice %464 {offsets = [0, 64], sizes = [8, 64], strides = [1, 1]} : vector<8x256xf32> to vector<8x64xf32>
    %467 = vector.extract_strided_slice %464 {offsets = [0, 128], sizes = [8, 64], strides = [1, 1]} : vector<8x256xf32> to vector<8x64xf32>
    %cst_174 = arith.constant 2.000000e+00 : f32
    %468 = vector.broadcast %cst_174 : f32 to vector<8x64xf32>
    %469 = arith.mulf %468, %467 : vector<8x64xf32>
    %cst_175 = arith.constant 1.000000e+00 : f32
    %470 = vector.broadcast %cst_175 : f32 to vector<8x64xf32>
    %471 = arith.subf %469, %470 : vector<8x64xf32>
    %472 = vector.extract_strided_slice %464 {offsets = [0, 192], sizes = [8, 64], strides = [1, 1]} : vector<8x256xf32> to vector<8x64xf32>
    %473 = arith.mulf %466, %396 : vector<8x64xf32>
    %474 = arith.mulf %465, %471 : vector<8x64xf32>
    %475 = arith.addf %473, %474 : vector<8x64xf32>
    %476 = math.tanh %475 : vector<8x64xf32>
    %477 = arith.mulf %472, %476 : vector<8x64xf32>
    %478 = arith.truncf %398 : vector<8x64xf32> to vector<8x64xbf16>
    %c0_176 = arith.constant 0 : index
    %c0_177 = arith.constant 0 : index
    %479 = vector.load %arg4[%c0_176, %c0_177] : memref<64x256xbf16, #tpu.memory_space<vmem>>, vector<64x256xbf16>
    %cst_178 = arith.constant dense<0.000000e+00> : vector<8x256xf32>
    %480 = tpu.matmul %478, %479, %cst_178 {dimension_numbers = #tpu.dot_dimension_numbers<[1], [0], [0], [1], [0, 0, 1, 1], [], []>} : vector<8x64xbf16>, vector<64x256xbf16>, vector<8x256xf32> -> vector<8x256xf32>
    %c0_179 = arith.constant 0 : index
    %c0_180 = arith.constant 0 : index
    %481 = vector.load %arg6[%c0_179, %c0_180] : memref<1x256xf32, #tpu.memory_space<vmem>>, vector<1x256xf32>
    %482 = vector.broadcast %481 : vector<1x256xf32> to vector<8x256xf32>
    %483 = arith.addf %480, %482 : vector<8x256xf32>
    %484 = arith.truncf %426 : vector<8x64xf32> to vector<8x64xbf16>
    %c0_181 = arith.constant 0 : index
    %c0_182 = arith.constant 0 : index
    %485 = vector.load %arg5[%c0_181, %c0_182] : memref<64x256xbf16, #tpu.memory_space<vmem>>, vector<64x256xbf16>
    %cst_183 = arith.constant dense<0.000000e+00> : vector<8x256xf32>
    %486 = tpu.matmul %484, %485, %cst_183 {dimension_numbers = #tpu.dot_dimension_numbers<[1], [0], [0], [1], [0, 0, 1, 1], [], []>} : vector<8x64xbf16>, vector<64x256xbf16>, vector<8x256xf32> -> vector<8x256xf32>
    %487 = arith.addf %483, %486 : vector<8x256xf32>
    %488 = arith.negf %487 : vector<8x256xf32>
    %489 = math.exp %488 : vector<8x256xf32>
    %cst_184 = arith.constant 1.000000e+00 : f32
    %490 = vector.broadcast %cst_184 : f32 to vector<8x256xf32>
    %491 = arith.addf %490, %489 : vector<8x256xf32>
    %492 = arith.divf %490, %491 : vector<8x256xf32>
    %493 = vector.extract_strided_slice %492 {offsets = [0, 0], sizes = [8, 64], strides = [1, 1]} : vector<8x256xf32> to vector<8x64xf32>
    %494 = vector.extract_strided_slice %492 {offsets = [0, 64], sizes = [8, 64], strides = [1, 1]} : vector<8x256xf32> to vector<8x64xf32>
    %495 = vector.extract_strided_slice %492 {offsets = [0, 128], sizes = [8, 64], strides = [1, 1]} : vector<8x256xf32> to vector<8x64xf32>
    %cst_185 = arith.constant 2.000000e+00 : f32
    %496 = vector.broadcast %cst_185 : f32 to vector<8x64xf32>
    %497 = arith.mulf %496, %495 : vector<8x64xf32>
    %cst_186 = arith.constant 1.000000e+00 : f32
    %498 = vector.broadcast %cst_186 : f32 to vector<8x64xf32>
    %499 = arith.subf %497, %498 : vector<8x64xf32>
    %500 = vector.extract_strided_slice %492 {offsets = [0, 192], sizes = [8, 64], strides = [1, 1]} : vector<8x256xf32> to vector<8x64xf32>
    %501 = arith.mulf %494, %424 : vector<8x64xf32>
    %502 = arith.mulf %493, %499 : vector<8x64xf32>
    %503 = arith.addf %501, %502 : vector<8x64xf32>
    %504 = math.tanh %503 : vector<8x64xf32>
    %505 = arith.mulf %500, %504 : vector<8x64xf32>
    %506 = arith.truncf %426 : vector<8x64xf32> to vector<8x64xbf16>
    %c0_187 = arith.constant 0 : index
    %c0_188 = arith.constant 0 : index
    %507 = vector.load %arg7[%c0_187, %c0_188] : memref<64x256xbf16, #tpu.memory_space<vmem>>, vector<64x256xbf16>
    %cst_189 = arith.constant dense<0.000000e+00> : vector<8x256xf32>
    %508 = tpu.matmul %506, %507, %cst_189 {dimension_numbers = #tpu.dot_dimension_numbers<[1], [0], [0], [1], [0, 0, 1, 1], [], []>} : vector<8x64xbf16>, vector<64x256xbf16>, vector<8x256xf32> -> vector<8x256xf32>
    %c0_190 = arith.constant 0 : index
    %c0_191 = arith.constant 0 : index
    %509 = vector.load %arg9[%c0_190, %c0_191] : memref<1x256xf32, #tpu.memory_space<vmem>>, vector<1x256xf32>
    %510 = vector.broadcast %509 : vector<1x256xf32> to vector<8x256xf32>
    %511 = arith.addf %508, %510 : vector<8x256xf32>
    %512 = arith.truncf %454 : vector<8x64xf32> to vector<8x64xbf16>
    %c0_192 = arith.constant 0 : index
    %c0_193 = arith.constant 0 : index
    %513 = vector.load %arg8[%c0_192, %c0_193] : memref<64x256xbf16, #tpu.memory_space<vmem>>, vector<64x256xbf16>
    %cst_194 = arith.constant dense<0.000000e+00> : vector<8x256xf32>
    %514 = tpu.matmul %512, %513, %cst_194 {dimension_numbers = #tpu.dot_dimension_numbers<[1], [0], [0], [1], [0, 0, 1, 1], [], []>} : vector<8x64xbf16>, vector<64x256xbf16>, vector<8x256xf32> -> vector<8x256xf32>
    %515 = arith.addf %511, %514 : vector<8x256xf32>
    %516 = arith.negf %515 : vector<8x256xf32>
    %517 = math.exp %516 : vector<8x256xf32>
    %cst_195 = arith.constant 1.000000e+00 : f32
    %518 = vector.broadcast %cst_195 : f32 to vector<8x256xf32>
    %519 = arith.addf %518, %517 : vector<8x256xf32>
    %520 = arith.divf %518, %519 : vector<8x256xf32>
    %521 = vector.extract_strided_slice %520 {offsets = [0, 0], sizes = [8, 64], strides = [1, 1]} : vector<8x256xf32> to vector<8x64xf32>
    %522 = vector.extract_strided_slice %520 {offsets = [0, 64], sizes = [8, 64], strides = [1, 1]} : vector<8x256xf32> to vector<8x64xf32>
    %523 = vector.extract_strided_slice %520 {offsets = [0, 128], sizes = [8, 64], strides = [1, 1]} : vector<8x256xf32> to vector<8x64xf32>
    %cst_196 = arith.constant 2.000000e+00 : f32
    %524 = vector.broadcast %cst_196 : f32 to vector<8x64xf32>
    %525 = arith.mulf %524, %523 : vector<8x64xf32>
    %cst_197 = arith.constant 1.000000e+00 : f32
    %526 = vector.broadcast %cst_197 : f32 to vector<8x64xf32>
    %527 = arith.subf %525, %526 : vector<8x64xf32>
    %528 = vector.extract_strided_slice %520 {offsets = [0, 192], sizes = [8, 64], strides = [1, 1]} : vector<8x256xf32> to vector<8x64xf32>
    %529 = arith.mulf %522, %452 : vector<8x64xf32>
    %530 = arith.mulf %521, %527 : vector<8x64xf32>
    %531 = arith.addf %529, %530 : vector<8x64xf32>
    %532 = math.tanh %531 : vector<8x64xf32>
    %533 = arith.mulf %528, %532 : vector<8x64xf32>
    %534 = arith.truncf %477 : vector<8x64xf32> to vector<8x64xbf16>
    %c0_198 = arith.constant 0 : index
    %c0_199 = arith.constant 0 : index
    %535 = vector.load %arg4[%c0_198, %c0_199] : memref<64x256xbf16, #tpu.memory_space<vmem>>, vector<64x256xbf16>
    %cst_200 = arith.constant dense<0.000000e+00> : vector<8x256xf32>
    %536 = tpu.matmul %534, %535, %cst_200 {dimension_numbers = #tpu.dot_dimension_numbers<[1], [0], [0], [1], [0, 0, 1, 1], [], []>} : vector<8x64xbf16>, vector<64x256xbf16>, vector<8x256xf32> -> vector<8x256xf32>
    %c0_201 = arith.constant 0 : index
    %c0_202 = arith.constant 0 : index
    %537 = vector.load %arg6[%c0_201, %c0_202] : memref<1x256xf32, #tpu.memory_space<vmem>>, vector<1x256xf32>
    %538 = vector.broadcast %537 : vector<1x256xf32> to vector<8x256xf32>
    %539 = arith.addf %536, %538 : vector<8x256xf32>
    %540 = arith.truncf %505 : vector<8x64xf32> to vector<8x64xbf16>
    %c0_203 = arith.constant 0 : index
    %c0_204 = arith.constant 0 : index
    %541 = vector.load %arg5[%c0_203, %c0_204] : memref<64x256xbf16, #tpu.memory_space<vmem>>, vector<64x256xbf16>
    %cst_205 = arith.constant dense<0.000000e+00> : vector<8x256xf32>
    %542 = tpu.matmul %540, %541, %cst_205 {dimension_numbers = #tpu.dot_dimension_numbers<[1], [0], [0], [1], [0, 0, 1, 1], [], []>} : vector<8x64xbf16>, vector<64x256xbf16>, vector<8x256xf32> -> vector<8x256xf32>
    %543 = arith.addf %539, %542 : vector<8x256xf32>
    %544 = arith.negf %543 : vector<8x256xf32>
    %545 = math.exp %544 : vector<8x256xf32>
    %cst_206 = arith.constant 1.000000e+00 : f32
    %546 = vector.broadcast %cst_206 : f32 to vector<8x256xf32>
    %547 = arith.addf %546, %545 : vector<8x256xf32>
    %548 = arith.divf %546, %547 : vector<8x256xf32>
    %549 = vector.extract_strided_slice %548 {offsets = [0, 0], sizes = [8, 64], strides = [1, 1]} : vector<8x256xf32> to vector<8x64xf32>
    %550 = vector.extract_strided_slice %548 {offsets = [0, 64], sizes = [8, 64], strides = [1, 1]} : vector<8x256xf32> to vector<8x64xf32>
    %551 = vector.extract_strided_slice %548 {offsets = [0, 128], sizes = [8, 64], strides = [1, 1]} : vector<8x256xf32> to vector<8x64xf32>
    %cst_207 = arith.constant 2.000000e+00 : f32
    %552 = vector.broadcast %cst_207 : f32 to vector<8x64xf32>
    %553 = arith.mulf %552, %551 : vector<8x64xf32>
    %cst_208 = arith.constant 1.000000e+00 : f32
    %554 = vector.broadcast %cst_208 : f32 to vector<8x64xf32>
    %555 = arith.subf %553, %554 : vector<8x64xf32>
    %556 = vector.extract_strided_slice %548 {offsets = [0, 192], sizes = [8, 64], strides = [1, 1]} : vector<8x256xf32> to vector<8x64xf32>
    %557 = arith.mulf %550, %503 : vector<8x64xf32>
    %558 = arith.mulf %549, %555 : vector<8x64xf32>
    %559 = arith.addf %557, %558 : vector<8x64xf32>
    %560 = math.tanh %559 : vector<8x64xf32>
    %561 = arith.mulf %556, %560 : vector<8x64xf32>
    %562 = arith.truncf %505 : vector<8x64xf32> to vector<8x64xbf16>
    %c0_209 = arith.constant 0 : index
    %c0_210 = arith.constant 0 : index
    %563 = vector.load %arg7[%c0_209, %c0_210] : memref<64x256xbf16, #tpu.memory_space<vmem>>, vector<64x256xbf16>
    %cst_211 = arith.constant dense<0.000000e+00> : vector<8x256xf32>
    %564 = tpu.matmul %562, %563, %cst_211 {dimension_numbers = #tpu.dot_dimension_numbers<[1], [0], [0], [1], [0, 0, 1, 1], [], []>} : vector<8x64xbf16>, vector<64x256xbf16>, vector<8x256xf32> -> vector<8x256xf32>
    %c0_212 = arith.constant 0 : index
    %c0_213 = arith.constant 0 : index
    %565 = vector.load %arg9[%c0_212, %c0_213] : memref<1x256xf32, #tpu.memory_space<vmem>>, vector<1x256xf32>
    %566 = vector.broadcast %565 : vector<1x256xf32> to vector<8x256xf32>
    %567 = arith.addf %564, %566 : vector<8x256xf32>
    %568 = arith.truncf %533 : vector<8x64xf32> to vector<8x64xbf16>
    %c0_214 = arith.constant 0 : index
    %c0_215 = arith.constant 0 : index
    %569 = vector.load %arg8[%c0_214, %c0_215] : memref<64x256xbf16, #tpu.memory_space<vmem>>, vector<64x256xbf16>
    %cst_216 = arith.constant dense<0.000000e+00> : vector<8x256xf32>
    %570 = tpu.matmul %568, %569, %cst_216 {dimension_numbers = #tpu.dot_dimension_numbers<[1], [0], [0], [1], [0, 0, 1, 1], [], []>} : vector<8x64xbf16>, vector<64x256xbf16>, vector<8x256xf32> -> vector<8x256xf32>
    %571 = arith.addf %567, %570 : vector<8x256xf32>
    %572 = arith.negf %571 : vector<8x256xf32>
    %573 = math.exp %572 : vector<8x256xf32>
    %cst_217 = arith.constant 1.000000e+00 : f32
    %574 = vector.broadcast %cst_217 : f32 to vector<8x256xf32>
    %575 = arith.addf %574, %573 : vector<8x256xf32>
    %576 = arith.divf %574, %575 : vector<8x256xf32>
    %577 = vector.extract_strided_slice %576 {offsets = [0, 0], sizes = [8, 64], strides = [1, 1]} : vector<8x256xf32> to vector<8x64xf32>
    %578 = vector.extract_strided_slice %576 {offsets = [0, 64], sizes = [8, 64], strides = [1, 1]} : vector<8x256xf32> to vector<8x64xf32>
    %579 = vector.extract_strided_slice %576 {offsets = [0, 128], sizes = [8, 64], strides = [1, 1]} : vector<8x256xf32> to vector<8x64xf32>
    %cst_218 = arith.constant 2.000000e+00 : f32
    %580 = vector.broadcast %cst_218 : f32 to vector<8x64xf32>
    %581 = arith.mulf %580, %579 : vector<8x64xf32>
    %cst_219 = arith.constant 1.000000e+00 : f32
    %582 = vector.broadcast %cst_219 : f32 to vector<8x64xf32>
    %583 = arith.subf %581, %582 : vector<8x64xf32>
    %584 = vector.extract_strided_slice %576 {offsets = [0, 192], sizes = [8, 64], strides = [1, 1]} : vector<8x256xf32> to vector<8x64xf32>
    %585 = arith.mulf %578, %531 : vector<8x64xf32>
    %586 = arith.mulf %577, %583 : vector<8x64xf32>
    %587 = arith.addf %585, %586 : vector<8x64xf32>
    %588 = math.tanh %587 : vector<8x64xf32>
    %589 = arith.mulf %584, %588 : vector<8x64xf32>
    %590 = arith.truncf %561 : vector<8x64xf32> to vector<8x64xbf16>
    %c0_220 = arith.constant 0 : index
    %c0_221 = arith.constant 0 : index
    %591 = vector.load %arg7[%c0_220, %c0_221] : memref<64x256xbf16, #tpu.memory_space<vmem>>, vector<64x256xbf16>
    %cst_222 = arith.constant dense<0.000000e+00> : vector<8x256xf32>
    %592 = tpu.matmul %590, %591, %cst_222 {dimension_numbers = #tpu.dot_dimension_numbers<[1], [0], [0], [1], [0, 0, 1, 1], [], []>} : vector<8x64xbf16>, vector<64x256xbf16>, vector<8x256xf32> -> vector<8x256xf32>
    %c0_223 = arith.constant 0 : index
    %c0_224 = arith.constant 0 : index
    %593 = vector.load %arg9[%c0_223, %c0_224] : memref<1x256xf32, #tpu.memory_space<vmem>>, vector<1x256xf32>
    %594 = vector.broadcast %593 : vector<1x256xf32> to vector<8x256xf32>
    %595 = arith.addf %592, %594 : vector<8x256xf32>
    %596 = arith.truncf %589 : vector<8x64xf32> to vector<8x64xbf16>
    %c0_225 = arith.constant 0 : index
    %c0_226 = arith.constant 0 : index
    %597 = vector.load %arg8[%c0_225, %c0_226] : memref<64x256xbf16, #tpu.memory_space<vmem>>, vector<64x256xbf16>
    %cst_227 = arith.constant dense<0.000000e+00> : vector<8x256xf32>
    %598 = tpu.matmul %596, %597, %cst_227 {dimension_numbers = #tpu.dot_dimension_numbers<[1], [0], [0], [1], [0, 0, 1, 1], [], []>} : vector<8x64xbf16>, vector<64x256xbf16>, vector<8x256xf32> -> vector<8x256xf32>
    %599 = arith.addf %595, %598 : vector<8x256xf32>
    %600 = arith.negf %599 : vector<8x256xf32>
    %601 = math.exp %600 : vector<8x256xf32>
    %cst_228 = arith.constant 1.000000e+00 : f32
    %602 = vector.broadcast %cst_228 : f32 to vector<8x256xf32>
    %603 = arith.addf %602, %601 : vector<8x256xf32>
    %604 = arith.divf %602, %603 : vector<8x256xf32>
    %605 = vector.extract_strided_slice %604 {offsets = [0, 0], sizes = [8, 64], strides = [1, 1]} : vector<8x256xf32> to vector<8x64xf32>
    %606 = vector.extract_strided_slice %604 {offsets = [0, 64], sizes = [8, 64], strides = [1, 1]} : vector<8x256xf32> to vector<8x64xf32>
    %607 = vector.extract_strided_slice %604 {offsets = [0, 128], sizes = [8, 64], strides = [1, 1]} : vector<8x256xf32> to vector<8x64xf32>
    %cst_229 = arith.constant 2.000000e+00 : f32
    %608 = vector.broadcast %cst_229 : f32 to vector<8x64xf32>
    %609 = arith.mulf %608, %607 : vector<8x64xf32>
    %cst_230 = arith.constant 1.000000e+00 : f32
    %610 = vector.broadcast %cst_230 : f32 to vector<8x64xf32>
    %611 = arith.subf %609, %610 : vector<8x64xf32>
    %612 = vector.extract_strided_slice %604 {offsets = [0, 192], sizes = [8, 64], strides = [1, 1]} : vector<8x256xf32> to vector<8x64xf32>
    %613 = arith.mulf %606, %587 : vector<8x64xf32>
    %614 = arith.mulf %605, %611 : vector<8x64xf32>
    %615 = arith.addf %613, %614 : vector<8x64xf32>
    %616 = math.tanh %615 : vector<8x64xf32>
    %617 = arith.mulf %612, %616 : vector<8x64xf32>
    %c0_231 = arith.constant 0 : index
    %c0_232 = arith.constant 0 : index
    %618 = vector.load %arg10[%c0_231, %c0_232] : memref<1x64xf32, #tpu.memory_space<vmem>>, vector<1x64xf32>
    %619 = vector.broadcast %618 : vector<1x64xf32> to vector<8x64xf32>
    %620 = arith.mulf %617, %619 : vector<8x64xf32>
    %cst_233 = arith.constant dense<0.000000e+00> : vector<8xf32>
    %621 = vector.multi_reduction <add>, %620, %cst_233 [1] : vector<8x64xf32> to vector<8xf32>
    %622 = vector.shape_cast %621 : vector<8xf32> to vector<8x1xf32>
    %c0_234 = arith.constant 0 : index
    %c0_235 = arith.constant 0 : index
    %623 = vector.load %arg11[%c0_234, %c0_235] : memref<1x1xf32, #tpu.memory_space<vmem>>, vector<1x1xf32>
    %624 = vector.broadcast %623 : vector<1x1xf32> to vector<8x1xf32>
    %625 = arith.addf %622, %624 : vector<8x1xf32>
    %626 = arith.negf %625 : vector<8x1xf32>
    %627 = math.exp %626 : vector<8x1xf32>
    %cst_236 = arith.constant 1.000000e+00 : f32
    %628 = vector.broadcast %cst_236 : f32 to vector<8x1xf32>
    %629 = arith.addf %628, %627 : vector<8x1xf32>
    %630 = arith.divf %628, %629 : vector<8x1xf32>
    %c0_237 = arith.constant 0 : index
    %c0_238 = arith.constant 0 : index
    %631 = vector.load %arg12[%c0_237, %c0_238] : memref<8x1xf32, #tpu.memory_space<vmem>>, vector<8x1xf32>
    tpu.vector_store %arg12[%c0_237, %c0_238], %630 {strides = array<i32>} : memref<8x1xf32, #tpu.memory_space<vmem>>, vector<8x1xf32>,
    return
  }
}

</mosaic_0001>

<llo_original>
// kernel: baseline_lstm_forward.1
$region0: #{baseline_lstm_forward.1}
  #allocation0 [shape = 'u32[]', space=smem, size = 0x4, offset = 0x4, fixed_abs, tag = 'smem constant byte address 0x4 - core index']
  #allocation1 [shape = 'u32[144,128]{1,0:T(1,128)}', space=vmem, size = 0x12000, scoped, tag = 'internal scratch']
  #allocation2 [shape = 'f32[64,256]{1,0:T(8,128)}', space=vmem, size = 0x10000, scoped, tag = 'scratch operand']
  #allocation3 [shape = 'f32[1,1]{1,0:T(1,128)S(1)}', space=vmem, size = 0x200, scoped, tag = 'scoped memory for baseline_lstm_forward.1']
  %s0 = inlined_call_operand.vmem [shape: bf16[64,64], index: 0, kind: input, shape index: {}]
  %s1 = inlined_call_operand.vmem [shape: bf16[64,256], index: 1, kind: input, shape index: {}]
  %s2 = inlined_call_operand.vmem [shape: bf16[64,256], index: 2, kind: input, shape index: {}]
  %s3 = inlined_call_operand.vmem [shape: f32[1,256], index: 3, kind: input, shape index: {}]
  %s4 = inlined_call_operand.vmem [shape: bf16[64,256], index: 4, kind: input, shape index: {}]
  %s5 = inlined_call_operand.vmem [shape: bf16[64,256], index: 5, kind: input, shape index: {}]
  %s6 = inlined_call_operand.vmem [shape: f32[1,256], index: 6, kind: input, shape index: {}]
  %s7 = inlined_call_operand.vmem [shape: bf16[64,256], index: 7, kind: input, shape index: {}]
  %s8 = inlined_call_operand.vmem [shape: bf16[64,256], index: 8, kind: input, shape index: {}]
  %s9 = inlined_call_operand.vmem [shape: f32[1,256], index: 9, kind: input, shape index: {}]
  %s10 = inlined_call_operand.vmem [shape: f32[1,64], index: 10, kind: input, shape index: {}]
  %s11 = inlined_call_operand.<no memory space> [shape: f32[1,1], index: 11, kind: input, shape index: {}]
  %s12 = inlined_call_operand.vmem [shape: f32[8,1], index: 12, kind: output, shape index: {}]
  %s13 = sld [smem:[#allocation0]]
  $region58: #{baseline_lstm_forward.1} parent=0
    _
  %s15 = ssub.s32 1, %s13
  %s16 = scalar_select 0, %s15, %s13
  %v17 = vstv %s11
  %18 = vst [vmem:[#allocation3] sm:$0x1] %v17
  // Predicated region
  $region2: #{baseline_lstm_forward.1} parent=0 // pred_check
    _
  $region3: #{baseline_lstm_forward.1} parent=0 // pred_check_branch
    %20 = sbr.rel (0) target = $region5
  $region4: #{baseline_lstm_forward.1} parent=0 // pred_region
    _
  $region5: #{baseline_lstm_forward.1} parent=0 // pred_fallthru
    _
  // Predicated region
  $region6: #{baseline_lstm_forward.1} parent=0 // pred_check
    _
  $region7: #{baseline_lstm_forward.1} parent=0 // pred_check_branch
    %22 = sbr.rel (0) target = $region9
  $region8: #{baseline_lstm_forward.1} parent=0 // pred_region
    _
  $region9: #{baseline_lstm_forward.1} parent=0 // pred_fallthru
    _
  // Predicated region
  $region10: #{baseline_lstm_forward.1} parent=0 // pred_check
    _
  $region11: #{baseline_lstm_forward.1} parent=0 // pred_check_branch
    %24 = sbr.rel (0) target = $region13
  $region12: #{baseline_lstm_forward.1} parent=0 // pred_region
    _
  $region13: #{baseline_lstm_forward.1} parent=0 // pred_fallthru
    _
  // Predicated region
  $region14: #{baseline_lstm_forward.1} parent=0 // pred_check
    _
  $region15: #{baseline_lstm_forward.1} parent=0 // pred_check_branch
    %26 = sbr.rel (0) target = $region17
  $region16: #{baseline_lstm_forward.1} parent=0 // pred_region
    _
  $region17: #{baseline_lstm_forward.1} parent=0 // pred_fallthru
    _
  // Predicated region
  $region18: #{baseline_lstm_forward.1} parent=0 // pred_check
    _
  $region19: #{baseline_lstm_forward.1} parent=0 // pred_check_branch
    %28 = sbr.rel (0) target = $region21
  $region20: #{baseline_lstm_forward.1} parent=0 // pred_region
    _
  $region21: #{baseline_lstm_forward.1} parent=0 // pred_fallthru
    _
  // Predicated region
  $region22: #{baseline_lstm_forward.1} parent=0 // pred_check
    _
  $region23: #{baseline_lstm_forward.1} parent=0 // pred_check_branch
    %30 = sbr.rel (0) target = $region25
  $region24: #{baseline_lstm_forward.1} parent=0 // pred_region
    _
  $region25: #{baseline_lstm_forward.1} parent=0 // pred_fallthru
    _
  // Predicated region
  $region26: #{baseline_lstm_forward.1} parent=0 // pred_check
    _
  $region27: #{baseline_lstm_forward.1} parent=0 // pred_check_branch
    %32 = sbr.rel (0) target = $region29
  $region28: #{baseline_lstm_forward.1} parent=0 // pred_region
    _
  $region29: #{baseline_lstm_forward.1} parent=0 // pred_fallthru
    _
  // Predicated region
  $region30: #{baseline_lstm_forward.1} parent=0 // pred_check
    _
  $region31: #{baseline_lstm_forward.1} parent=0 // pred_check_branch
    %34 = sbr.rel (0) target = $region33
  $region32: #{baseline_lstm_forward.1} parent=0 // pred_region
    _
  $region33: #{baseline_lstm_forward.1} parent=0 // pred_fallthru
    _
  // Predicated region
  $region34: #{baseline_lstm_forward.1} parent=0 // pred_check
    _
  $region35: #{baseline_lstm_forward.1} parent=0 // pred_check_branch
    %36 = sbr.rel (0) target = $region37
  $region36: #{baseline_lstm_forward.1} parent=0 // pred_region
    _
  $region37: #{baseline_lstm_forward.1} parent=0 // pred_fallthru
    _
  // Predicated region
  $region38: #{baseline_lstm_forward.1} parent=0 // pred_check
    _
  $region39: #{baseline_lstm_forward.1} parent=0 // pred_check_branch
    %38 = sbr.rel (0) target = $region41
  $region40: #{baseline_lstm_forward.1} parent=0 // pred_region
    _
  $region41: #{baseline_lstm_forward.1} parent=0 // pred_fallthru
    _
  // Predicated region
  $region42: #{baseline_lstm_forward.1} parent=0 // pred_check
    _
  $region43: #{baseline_lstm_forward.1} parent=0 // pred_check_branch
    %40 = sbr.rel (0) target = $region45
  $region44: #{baseline_lstm_forward.1} parent=0 // pred_region
    _
  $region45: #{baseline_lstm_forward.1} parent=0 // pred_fallthru
    _
  // Predicated region
  $region46: #{baseline_lstm_forward.1} parent=0 // pred_check
    _
  $region47: #{baseline_lstm_forward.1} parent=0 // pred_check_branch
    %42 = sbr.rel (0) target = $region49
  $region48: #{baseline_lstm_forward.1} parent=0 // pred_region
    _
  $region49: #{baseline_lstm_forward.1} parent=0 // pred_fallthru
    _
  %v44 = vld [vmem:[%s0] sm:$0xf]
  %v45 = vld [vmem:[%s0 + $0x4] sm:$0xf]
  %v46 = vld [vmem:[%s0 + $0x8] sm:$0xf]
  %v47 = vld [vmem:[%s0 + $0xc] sm:$0xf]
  %v48 = vld [vmem:[%s0 + $0x10] sm:$0xf]
  %v49 = vld [vmem:[%s0 + $0x14] sm:$0xf]
  %v50 = vld [vmem:[%s0 + $0x18] sm:$0xf]
  %v51 = vld [vmem:[%s0 + $0x1c] sm:$0xf]
  %v52 = vld [vmem:[%s1] sm:$0xff]
  %v53 = vld [vmem:[%s1 + $0x8] sm:$0xff]
  %v54 = vld [vmem:[%s1 + $0x10] sm:$0xff]
  %v55 = vld [vmem:[%s1 + $0x18] sm:$0xff]
  %v56 = vld [vmem:[%s1 + $0x20] sm:$0xff]
  %v57 = vld [vmem:[%s1 + $0x28] sm:$0xff]
  %v58 = vld [vmem:[%s1 + $0x30] sm:$0xff]
  %v59 = vld [vmem:[%s1 + $0x38] sm:$0xff]
  %v60 = vld [vmem:[%s3] sm:$0x3]
  %v62 = vlaneseq
  %v63 = vshrl.u32 %v62, 7
  %v64 = vsub.s32 0, %v63
  %v65 = vrot.slane %v60, %v64
  %v66 = vlaneseq
  %v67 = vshrl.u32 %v66, 7
  %v68 = vsub.s32 1, %v67
  %v69 = vrot.slane %v60, %v68
  %v80 = vunpack.c.l.b16 %v44
  %v81 = vunpack.c.l.b16 %v45
  %v82 = vunpack.c.l.b16 %v46
  %v83 = vunpack.c.l.b16 %v47
  %v84 = vunpack.c.l.b16 %v48
  %v85 = vunpack.c.l.b16 %v49
  %v86 = vunpack.c.l.b16 %v50
  %v87 = vunpack.c.l.b16 %v51
  %v88 = vpack.c.b16 %v81, %v80
  %v89 = vpack.c.b16 %v83, %v82
  %v90 = vpack.c.b16 %v85, %v84
  %v91 = vpack.c.b16 %v87, %v86
  %v100 = vunpack.c.l.b16 %v52
  %v101 = vunpack.c.h.b16 %v52
  %v102 = vunpack.c.l.b16 %v53
  %v103 = vunpack.c.h.b16 %v53
  %v104 = vunpack.c.l.b16 %v54
  %v105 = vunpack.c.h.b16 %v54
  %v106 = vunpack.c.l.b16 %v55
  %v107 = vunpack.c.h.b16 %v55
  %v108 = vunpack.c.l.b16 %v56
  %v109 = vunpack.c.h.b16 %v56
  %v110 = vunpack.c.l.b16 %v57
  %v111 = vunpack.c.h.b16 %v57
  %v112 = vunpack.c.l.b16 %v58
  %v113 = vunpack.c.h.b16 %v58
  %v114 = vunpack.c.l.b16 %v59
  %v115 = vunpack.c.h.b16 %v59
  %v116 = vpack.c.b16 %v102, %v100
  %v117 = vpack.c.b16 %v103, %v101
  %v118 = vpack.c.b16 %v106, %v104
  %v119 = vpack.c.b16 %v107, %v105
  %v120 = vpack.c.b16 %v110, %v108
  %v121 = vpack.c.b16 %v111, %v109
  %v122 = vpack.c.b16 %v114, %v112
  %v123 = vpack.c.b16 %v115, %v113
  %vm132 = vcmask 523264
  %v134 = vsel %vm132, %v88, 0
  %v137 = vsel %vm132, %v89, 0
  %v140 = vsel %vm132, %v90, 0
  %v143 = vsel %vm132, %v91, 0
  %145 = vmatprep.subr.bf16.mxu0 %v117
  %146 = vmatpush1.bf16.msra.mxu0 %v116
  %147 = vmatprep.subr.bf16.mxu0 %v119
  %148 = vmatpush1.bf16.msra.mxu0 %v118
  %149 = vmatprep.subr.bf16.mxu0 %v121
  %150 = vmatpush1.bf16.msra.mxu0 %v120
  %151 = vmatprep.subr.bf16.mxu0 %v123
  %152 = vmatpush1.bf16.msra.mxu0 %v122
  %153 = vmatprep.subr.bf16.mxu0 0
  %154 = vmatpush1.bf16.msra.mxu0 0
  %155 = vmatprep.subr.bf16.mxu0 0
  %156 = vmatpush1.bf16.msra.mxu0 0
  %157 = vmatprep.subr.bf16.mxu0 0
  %158 = vmatpush1.bf16.msra.mxu0 0
  %159 = vmatprep.subr.bf16.mxu0 0
  %160 = vmatpush1.bf16.msra.mxu0 0
  %161 = vmatprep.subr.bf16.mxu0 0
  %162 = vmatpush1.bf16.msra.mxu0 0
  %163 = vmatprep.subr.bf16.mxu0 0
  %164 = vmatpush1.bf16.msra.mxu0 0
  %165 = vmatprep.subr.bf16.mxu0 0
  %166 = vmatpush1.bf16.msra.mxu0 0
  %167 = vmatprep.subr.bf16.mxu0 0
  %168 = vmatpush1.bf16.msra.mxu0 0
  %169 = vmatprep.subr.bf16.mxu0 0
  %170 = vmatpush1.bf16.msra.mxu0 0
  %171 = vmatprep.subr.bf16.mxu0 0
  %172 = vmatpush1.bf16.msra.mxu0 0
  %173 = vmatprep.subr.bf16.mxu0 0
  %174 = vmatpush1.bf16.msra.mxu0 0
  %175 = vmatprep.subr.bf16.mxu0 0
  %176 = vmatpush1.bf16.msra.mxu0 0
  %177 = vmatprep.mubr.bf16.mxu0 0
  %178 = vmatmul.mubr.bf16.gmra.mrb[0].mxu0 %v134
  %v179 = vpop.f32.mrb[0].mxu0
  %v180 = vadd.f32 %v65, %v179
  %v181 = vpop.f32.mrb[0].mxu0
  %v182 = vadd.f32 %v69, %v181
  %v183 = vpop.f32.mrb[0].mxu0
  %v184 = vadd.f32 %v65, %v183
  %v185 = vpop.f32.mrb[0].mxu0
  %v186 = vadd.f32 %v69, %v185
  %187 = vmatprep.mubr.bf16.mxu0 0
  %188 = vmatmul.mubr.bf16.gmra.mrb[0].mxu0 %v137
  %v189 = vpop.f32.mrb[0].mxu0
  %v190 = vadd.f32 %v65, %v189
  %v191 = vpop.f32.mrb[0].mxu0
  %v192 = vadd.f32 %v69, %v191
  %v193 = vpop.f32.mrb[0].mxu0
  %v194 = vadd.f32 %v65, %v193
  %v195 = vpop.f32.mrb[0].mxu0
  %v196 = vadd.f32 %v69, %v195
  %197 = vmatprep.mubr.bf16.mxu0 0
  %198 = vmatmul.mubr.bf16.gmra.mrb[0].mxu0 %v140
  %v199 = vpop.f32.mrb[0].mxu0
  %v200 = vadd.f32 %v65, %v199
  %v201 = vpop.f32.mrb[0].mxu0
  %v202 = vadd.f32 %v69, %v201
  %v203 = vpop.f32.mrb[0].mxu0
  %v204 = vadd.f32 %v65, %v203
  %v205 = vpop.f32.mrb[0].mxu0
  %v206 = vadd.f32 %v69, %v205
  %207 = vmatprep.mubr.bf16.mxu0 0
  %208 = vmatmul.mubr.bf16.gmra.mrb[0].mxu0 %v143
  %v209 = vpop.f32.mrb[0].mxu0
  %v210 = vadd.f32 %v65, %v209
  %v211 = vpop.f32.mrb[0].mxu0
  %v212 = vadd.f32 %v69, %v211
  %v213 = vpop.f32.mrb[0].mxu0
  %v214 = vadd.f32 %v65, %v213
  %v215 = vpop.f32.mrb[0].mxu0
  %v216 = vadd.f32 %v69, %v215
  %217 = vdwg.mxu0
  %218 = vst [vmem:[#allocation2] sm:$0xff] %v180
  %219 = vst [vmem:[#allocation2 + $0x8] sm:$0xff] %v182
  %220 = vst [vmem:[#allocation2 + $0x10] sm:$0xff] %v184
  %221 = vst [vmem:[#allocation2 + $0x18] sm:$0xff] %v186
  %222 = vst [vmem:[#allocation2 + $0x20] sm:$0xff] %v190
  %223 = vst [vmem:[#allocation2 + $0x28] sm:$0xff] %v192
  %224 = vst [vmem:[#allocation2 + $0x30] sm:$0xff] %v194
  %225 = vst [vmem:[#allocation2 + $0x38] sm:$0xff] %v196
  %226 = vst [vmem:[#allocation2 + $0x40] sm:$0xff] %v200
  %227 = vst [vmem:[#allocation2 + $0x48] sm:$0xff] %v202
  %228 = vst [vmem:[#allocation2 + $0x50] sm:$0xff] %v204
  %229 = vst [vmem:[#allocation2 + $0x58] sm:$0xff] %v206
  %230 = vst [vmem:[#allocation2 + $0x60] sm:$0xff] %v210
  %231 = vst [vmem:[#allocation2 + $0x68] sm:$0xff] %v212
  %232 = vst [vmem:[#allocation2 + $0x70] sm:$0xff] %v214
  %233 = vst [vmem:[#allocation2 + $0x78] sm:$0xff] %v216
  %v234 = vld [vmem:[#allocation2] sm:$0xff]
  %v235 = vld [vmem:[#allocation2 + $0x8] sm:$0xff]
  %v236 = vxor.u32 %v234, 2147483648
  %v237 = vxor.u32 %v235, 2147483648
  %v238 = vmul.f32 %v236, 1.442695
  %v239 = vpow.pop %v238
  %v240 = vmul.f32 %v237, 1.442695
  %v241 = vpow.pop %v240
  %v242 = vadd.f32 %v239, 1.0
  %v243 = vadd.f32 %v241, 1.0
  %v244 = vrcp.pop %v242
  %v245 = vmul.f32 1.0, %v244
  %v246 = vrcp.pop %v243
  %v247 = vmul.f32 1.0, %v246
  %v248 = vmul.f32 %v247, 2.0
  %v249 = vsub.f32 %v248, 1.0
  %v250 = vmul.f32 %v245, %v249
  %v251 = vtanh.pop %v250
  %253 = vrot.lane.b32.xlu0 %v251, 64
  %v254 = vpop.permute.xlu0 %253
  %v256 = vmul.f32 %v247, %v254
  %v257 = vld [vmem:[#allocation2 + $0x10] sm:$0xff]
  %v258 = vld [vmem:[#allocation2 + $0x18] sm:$0xff]
  %v259 = vpack.c.bf16 %v256, %v256
  %v260 = vld [vmem:[%s2] sm:$0xff]
  %v261 = vld [vmem:[%s2 + $0x8] sm:$0xff]
  %v262 = vld [vmem:[%s2 + $0x10] sm:$0xff]
  %v263 = vld [vmem:[%s2 + $0x18] sm:$0xff]
  %v264 = vld [vmem:[%s2 + $0x20] sm:$0xff]
  %v265 = vld [vmem:[%s2 + $0x28] sm:$0xff]
  %v266 = vld [vmem:[%s2 + $0x30] sm:$0xff]
  %v267 = vld [vmem:[%s2 + $0x38] sm:$0xff]
  %269 = vrot.lane.b32.xlu0 %v259, 64
  %v270 = vpop.permute.xlu0 %269
  %v279 = vunpack.c.l.b16 %v260
  %v280 = vunpack.c.h.b16 %v260
  %v281 = vunpack.c.l.b16 %v261
  %v282 = vunpack.c.h.b16 %v261
  %v283 = vunpack.c.l.b16 %v262
  %v284 = vunpack.c.h.b16 %v262
  %v285 = vunpack.c.l.b16 %v263
  %v286 = vunpack.c.h.b16 %v263
  %v287 = vunpack.c.l.b16 %v264
  %v288 = vunpack.c.h.b16 %v264
  %v289 = vunpack.c.l.b16 %v265
  %v290 = vunpack.c.h.b16 %v265
  %v291 = vunpack.c.l.b16 %v266
  %v292 = vunpack.c.h.b16 %v266
  %v293 = vunpack.c.l.b16 %v267
  %v294 = vunpack.c.h.b16 %v267
  %v295 = vpack.c.b16 %v281, %v279
  %v296 = vpack.c.b16 %v282, %v280
  %v297 = vpack.c.b16 %v285, %v283
  %v298 = vpack.c.b16 %v286, %v284
  %v299 = vpack.c.b16 %v289, %v287
  %v300 = vpack.c.b16 %v290, %v288
  %v301 = vpack.c.b16 %v293, %v291
  %v302 = vpack.c.b16 %v294, %v292
  %v312 = vsel %vm132, %v270, 0
  %314 = vmatprep.subr.bf16.mxu0 %v296
  %315 = vmatpush1.bf16.msra.mxu0 %v295
  %316 = vmatprep.subr.bf16.mxu0 %v298
  %317 = vmatpush1.bf16.msra.mxu0 %v297
  %318 = vmatprep.subr.bf16.mxu0 %v300
  %319 = vmatpush1.bf16.msra.mxu0 %v299
  %320 = vmatprep.subr.bf16.mxu0 %v302
  %321 = vmatpush1.bf16.msra.mxu0 %v301
  %322 = vmatprep.subr.bf16.mxu0 0
  %323 = vmatpush1.bf16.msra.mxu0 0
  %324 = vmatprep.subr.bf16.mxu0 0
  %325 = vmatpush1.bf16.msra.mxu0 0
  %326 = vmatprep.subr.bf16.mxu0 0
  %327 = vmatpush1.bf16.msra.mxu0 0
  %328 = vmatprep.subr.bf16.mxu0 0
  %329 = vmatpush1.bf16.msra.mxu0 0
  %330 = vmatprep.subr.bf16.mxu0 0
  %331 = vmatpush1.bf16.msra.mxu0 0
  %332 = vmatprep.subr.bf16.mxu0 0
  %333 = vmatpush1.bf16.msra.mxu0 0
  %334 = vmatprep.subr.bf16.mxu0 0
  %335 = vmatpush1.bf16.msra.mxu0 0
  %336 = vmatprep.subr.bf16.mxu0 0
  %337 = vmatpush1.bf16.msra.mxu0 0
  %338 = vmatprep.subr.bf16.mxu0 0
  %339 = vmatpush1.bf16.msra.mxu0 0
  %340 = vmatprep.subr.bf16.mxu0 0
  %341 = vmatpush1.bf16.msra.mxu0 0
  %342 = vmatprep.subr.bf16.mxu0 0
  %343 = vmatpush1.bf16.msra.mxu0 0
  %344 = vmatprep.subr.bf16.mxu0 0
  %345 = vmatpush1.bf16.msra.mxu0 0
  %346 = vmatprep.mubr.bf16.mxu0 0
  %347 = vmatmul.mubr.bf16.gmra.mrb[0].mxu0 %v312
  %v348 = vpop.f32.mrb[0].mxu0
  %v349 = vadd.f32 0.0, %v348
  %v350 = vpop.f32.mrb[0].mxu0
  %v351 = vadd.f32 0.0, %v350
  %v352 = vpop.f32.mrb[0].mxu0
  %v353 = vpop.f32.mrb[0].mxu0
  %354 = vdwg.mxu0
  %v355 = vadd.f32 %v257, %v349
  %v356 = vadd.f32 %v258, %v351
  %v357 = vxor.u32 %v355, 2147483648
  %v358 = vxor.u32 %v356, 2147483648
  %v359 = vmul.f32 %v357, 1.442695
  %v360 = vpow.pop %v359
  %v361 = vmul.f32 %v358, 1.442695
  %v362 = vpow.pop %v361
  %v363 = vadd.f32 %v360, 1.0
  %v364 = vadd.f32 %v362, 1.0
  %v365 = vrcp.pop %v363
  %v366 = vmul.f32 1.0, %v365
  %v367 = vrcp.pop %v364
  %v368 = vmul.f32 1.0, %v367
  %v369 = vmul.f32 %v368, 2.0
  %v370 = vsub.f32 %v369, 1.0
  %372 = vrot.lane.b32.xlu0 %v250, 64
  %v373 = vpop.permute.xlu0 %372
  %v375 = vmul.f32 %v366, %v373
  %v376 = vmul.f32 %v366, %v370
  %378 = vrot.lane.b32.xlu0 %v376, 64
  %v379 = vpop.permute.xlu0 %378
  %v381 = vadd.f32 %v375, %v379
  %v382 = vtanh.pop %v381
  %v383 = vmul.f32 %v368, %v382
  %v384 = vld [vmem:[%s4] sm:$0xff]
  %v385 = vld [vmem:[%s4 + $0x8] sm:$0xff]
  %v386 = vld [vmem:[%s4 + $0x10] sm:$0xff]
  %v387 = vld [vmem:[%s4 + $0x18] sm:$0xff]
  %v388 = vld [vmem:[%s4 + $0x20] sm:$0xff]
  %v389 = vld [vmem:[%s4 + $0x28] sm:$0xff]
  %v390 = vld [vmem:[%s4 + $0x30] sm:$0xff]
  %v391 = vld [vmem:[%s4 + $0x38] sm:$0xff]
  %v392 = vld [vmem:[%s6] sm:$0x3]
  %v394 = vlaneseq
  %v395 = vshrl.u32 %v394, 7
  %v396 = vsub.s32 0, %v395
  %v397 = vrot.slane %v392, %v396
  %v398 = vlaneseq
  %v399 = vshrl.u32 %v398, 7
  %v400 = vsub.s32 1, %v399
  %v401 = vrot.slane %v392, %v400
  %v412 = vunpack.c.l.b16 %v384
  %v413 = vunpack.c.h.b16 %v384
  %v414 = vunpack.c.l.b16 %v385
  %v415 = vunpack.c.h.b16 %v385
  %v416 = vunpack.c.l.b16 %v386
  %v417 = vunpack.c.h.b16 %v386
  %v418 = vunpack.c.l.b16 %v387
  %v419 = vunpack.c.h.b16 %v387
  %v420 = vunpack.c.l.b16 %v388
  %v421 = vunpack.c.h.b16 %v388
  %v422 = vunpack.c.l.b16 %v389
  %v423 = vunpack.c.h.b16 %v389
  %v424 = vunpack.c.l.b16 %v390
  %v425 = vunpack.c.h.b16 %v390
  %v426 = vunpack.c.l.b16 %v391
  %v427 = vunpack.c.h.b16 %v391
  %v428 = vpack.c.b16 %v414, %v412
  %v429 = vpack.c.b16 %v415, %v413
  %v430 = vpack.c.b16 %v418, %v416
  %v431 = vpack.c.b16 %v419, %v417
  %v432 = vpack.c.b16 %v422, %v420
  %v433 = vpack.c.b16 %v423, %v421
  %v434 = vpack.c.b16 %v426, %v424
  %v435 = vpack.c.b16 %v427, %v425
  %444 = vmatprep.subr.bf16.mxu0 %v429
  %445 = vmatpush1.bf16.msra.mxu0 %v428
  %446 = vmatprep.subr.bf16.mxu0 %v431
  %447 = vmatpush1.bf16.msra.mxu0 %v430
  %448 = vmatprep.subr.bf16.mxu0 %v433
  %449 = vmatpush1.bf16.msra.mxu0 %v432
  %450 = vmatprep.subr.bf16.mxu0 %v435
  %451 = vmatpush1.bf16.msra.mxu0 %v434
  %452 = vmatprep.subr.bf16.mxu0 0
  %453 = vmatpush1.bf16.msra.mxu0 0
  %454 = vmatprep.subr.bf16.mxu0 0
  %455 = vmatpush1.bf16.msra.mxu0 0
  %456 = vmatprep.subr.bf16.mxu0 0
  %457 = vmatpush1.bf16.msra.mxu0 0
  %458 = vmatprep.subr.bf16.mxu0 0
  %459 = vmatpush1.bf16.msra.mxu0 0
  %460 = vmatprep.subr.bf16.mxu0 0
  %461 = vmatpush1.bf16.msra.mxu0 0
  %462 = vmatprep.subr.bf16.mxu0 0
  %463 = vmatpush1.bf16.msra.mxu0 0
  %464 = vmatprep.subr.bf16.mxu0 0
  %465 = vmatpush1.bf16.msra.mxu0 0
  %466 = vmatprep.subr.bf16.mxu0 0
  %467 = vmatpush1.bf16.msra.mxu0 0
  %468 = vmatprep.subr.bf16.mxu0 0
  %469 = vmatpush1.bf16.msra.mxu0 0
  %470 = vmatprep.subr.bf16.mxu0 0
  %471 = vmatpush1.bf16.msra.mxu0 0
  %472 = vmatprep.subr.bf16.mxu0 0
  %473 = vmatpush1.bf16.msra.mxu0 0
  %474 = vmatprep.subr.bf16.mxu0 0
  %475 = vmatpush1.bf16.msra.mxu0 0
  %476 = vmatprep.mubr.bf16.mxu0 0
  %477 = vmatmul.mubr.bf16.gmra.mrb[0].mxu0 %v312
  %v478 = vpop.f32.mrb[0].mxu0
  %v479 = vadd.f32 %v397, %v478
  %v480 = vpop.f32.mrb[0].mxu0
  %v481 = vadd.f32 %v401, %v480
  %v482 = vpop.f32.mrb[0].mxu0
  %v483 = vpop.f32.mrb[0].mxu0
  %484 = vdwg.mxu0
  %v485 = vxor.u32 %v479, 2147483648
  %v486 = vxor.u32 %v481, 2147483648
  %v487 = vmul.f32 %v485, 1.442695
  %v488 = vpow.pop %v487
  %v489 = vmul.f32 %v486, 1.442695
  %v490 = vpow.pop %v489
  %v491 = vadd.f32 %v488, 1.0
  %v492 = vadd.f32 %v490, 1.0
  %v493 = vrcp.pop %v491
  %v494 = vmul.f32 1.0, %v493
  %v495 = vrcp.pop %v492
  %v496 = vmul.f32 1.0, %v495
  %v497 = vmul.f32 %v496, 2.0
  %v498 = vsub.f32 %v497, 1.0
  %v499 = vmul.f32 %v494, %v498
  %v500 = vtanh.pop %v499
  %502 = vrot.lane.b32.xlu0 %v500, 64
  %v503 = vpop.permute.xlu0 %502
  %v505 = vmul.f32 %v496, %v503
  %v506 = vld [vmem:[#allocation2 + $0x20] sm:$0xff]
  %v507 = vld [vmem:[#allocation2 + $0x28] sm:$0xff]
  %v508 = vpack.c.bf16 %v383, %v383
  %510 = vrot.lane.b32.xlu0 %v508, 64
  %v511 = vpop.permute.xlu0 %510
  %v513 = vsel %vm132, %v511, 0
  %515 = vmatprep.subr.bf16.mxu0 %v296
  %516 = vmatpush1.bf16.msra.mxu0 %v295
  %517 = vmatprep.subr.bf16.mxu0 %v298
  %518 = vmatpush1.bf16.msra.mxu0 %v297
  %519 = vmatprep.subr.bf16.mxu0 %v300
  %520 = vmatpush1.bf16.msra.mxu0 %v299
  %521 = vmatprep.subr.bf16.mxu0 %v302
  %522 = vmatpush1.bf16.msra.mxu0 %v301
  %523 = vmatprep.subr.bf16.mxu0 0
  %524 = vmatpush1.bf16.msra.mxu0 0
  %525 = vmatprep.subr.bf16.mxu0 0
  %526 = vmatpush1.bf16.msra.mxu0 0
  %527 = vmatprep.subr.bf16.mxu0 0
  %528 = vmatpush1.bf16.msra.mxu0 0
  %529 = vmatprep.subr.bf16.mxu0 0
  %530 = vmatpush1.bf16.msra.mxu0 0
  %531 = vmatprep.subr.bf16.mxu0 0
  %532 = vmatpush1.bf16.msra.mxu0 0
  %533 = vmatprep.subr.bf16.mxu0 0
  %534 = vmatpush1.bf16.msra.mxu0 0
  %535 = vmatprep.subr.bf16.mxu0 0
  %536 = vmatpush1.bf16.msra.mxu0 0
  %537 = vmatprep.subr.bf16.mxu0 0
  %538 = vmatpush1.bf16.msra.mxu0 0
  %539 = vmatprep.subr.bf16.mxu0 0
  %540 = vmatpush1.bf16.msra.mxu0 0
  %541 = vmatprep.subr.bf16.mxu0 0
  %542 = vmatpush1.bf16.msra.mxu0 0
  %543 = vmatprep.subr.bf16.mxu0 0
  %544 = vmatpush1.bf16.msra.mxu0 0
  %545 = vmatprep.subr.bf16.mxu0 0
  %546 = vmatpush1.bf16.msra.mxu0 0
  %547 = vmatprep.mubr.bf16.mxu0 0
  %548 = vmatmul.mubr.bf16.gmra.mrb[0].mxu0 %v513
  %v549 = vpop.f32.mrb[0].mxu0
  %v550 = vadd.f32 0.0, %v549
  %v551 = vpop.f32.mrb[0].mxu0
  %v552 = vadd.f32 0.0, %v551
  %v553 = vpop.f32.mrb[0].mxu0
  %v554 = vpop.f32.mrb[0].mxu0
  %555 = vdwg.mxu0
  %v556 = vadd.f32 %v506, %v550
  %v557 = vadd.f32 %v507, %v552
  %v558 = vxor.u32 %v556, 2147483648
  %v559 = vxor.u32 %v557, 2147483648
  %v560 = vmul.f32 %v558, 1.442695
  %v561 = vpow.pop %v560
  %v562 = vmul.f32 %v559, 1.442695
  %v563 = vpow.pop %v562
  %v564 = vadd.f32 %v561, 1.0
  %v565 = vadd.f32 %v563, 1.0
  %v566 = vrcp.pop %v564
  %v567 = vmul.f32 1.0, %v566
  %v568 = vrcp.pop %v565
  %v569 = vmul.f32 1.0, %v568
  %v570 = vmul.f32 %v569, 2.0
  %v571 = vsub.f32 %v570, 1.0
  %v572 = vmul.f32 %v567, %v381
  %v573 = vmul.f32 %v567, %v571
  %575 = vrot.lane.b32.xlu0 %v573, 64
  %v576 = vpop.permute.xlu0 %575
  %v578 = vadd.f32 %v572, %v576
  %v579 = vtanh.pop %v578
  %v580 = vmul.f32 %v569, %v579
  %581 = vmatprep.subr.bf16.mxu0 %v429
  %582 = vmatpush1.bf16.msra.mxu0 %v428
  %583 = vmatprep.subr.bf16.mxu0 %v431
  %584 = vmatpush1.bf16.msra.mxu0 %v430
  %585 = vmatprep.subr.bf16.mxu0 %v433
  %586 = vmatpush1.bf16.msra.mxu0 %v432
  %587 = vmatprep.subr.bf16.mxu0 %v435
  %588 = vmatpush1.bf16.msra.mxu0 %v434
  %589 = vmatprep.subr.bf16.mxu0 0
  %590 = vmatpush1.bf16.msra.mxu0 0
  %591 = vmatprep.subr.bf16.mxu0 0
  %592 = vmatpush1.bf16.msra.mxu0 0
  %593 = vmatprep.subr.bf16.mxu0 0
  %594 = vmatpush1.bf16.msra.mxu0 0
  %595 = vmatprep.subr.bf16.mxu0 0
  %596 = vmatpush1.bf16.msra.mxu0 0
  %597 = vmatprep.subr.bf16.mxu0 0
  %598 = vmatpush1.bf16.msra.mxu0 0
  %599 = vmatprep.subr.bf16.mxu0 0
  %600 = vmatpush1.bf16.msra.mxu0 0
  %601 = vmatprep.subr.bf16.mxu0 0
  %602 = vmatpush1.bf16.msra.mxu0 0
  %603 = vmatprep.subr.bf16.mxu0 0
  %604 = vmatpush1.bf16.msra.mxu0 0
  %605 = vmatprep.subr.bf16.mxu0 0
  %606 = vmatpush1.bf16.msra.mxu0 0
  %607 = vmatprep.subr.bf16.mxu0 0
  %608 = vmatpush1.bf16.msra.mxu0 0
  %609 = vmatprep.subr.bf16.mxu0 0
  %610 = vmatpush1.bf16.msra.mxu0 0
  %611 = vmatprep.subr.bf16.mxu0 0
  %612 = vmatpush1.bf16.msra.mxu0 0
  %613 = vmatprep.mubr.bf16.mxu0 0
  %614 = vmatmul.mubr.bf16.gmra.mrb[0].mxu0 %v513
  %v615 = vpop.f32.mrb[0].mxu0
  %v616 = vadd.f32 %v397, %v615
  %v617 = vpop.f32.mrb[0].mxu0
  %v618 = vadd.f32 %v401, %v617
  %v619 = vpop.f32.mrb[0].mxu0
  %v620 = vpop.f32.mrb[0].mxu0
  %621 = vdwg.mxu0
  %v622 = vpack.c.bf16 %v505, %v505
  %v623 = vld [vmem:[%s5] sm:$0xff]
  %v624 = vld [vmem:[%s5 + $0x8] sm:$0xff]
  %v625 = vld [vmem:[%s5 + $0x10] sm:$0xff]
  %v626 = vld [vmem:[%s5 + $0x18] sm:$0xff]
  %v627 = vld [vmem:[%s5 + $0x20] sm:$0xff]
  %v628 = vld [vmem:[%s5 + $0x28] sm:$0xff]
  %v629 = vld [vmem:[%s5 + $0x30] sm:$0xff]
  %v630 = vld [vmem:[%s5 + $0x38] sm:$0xff]
  %632 = vrot.lane.b32.xlu0 %v622, 64
  %v633 = vpop.permute.xlu0 %632
  %v642 = vunpack.c.l.b16 %v623
  %v643 = vunpack.c.h.b16 %v623
  %v644 = vunpack.c.l.b16 %v624
  %v645 = vunpack.c.h.b16 %v624
  %v646 = vunpack.c.l.b16 %v625
  %v647 = vunpack.c.h.b16 %v625
  %v648 = vunpack.c.l.b16 %v626
  %v649 = vunpack.c.h.b16 %v626
  %v650 = vunpack.c.l.b16 %v627
  %v651 = vunpack.c.h.b16 %v627
  %v652 = vunpack.c.l.b16 %v628
  %v653 = vunpack.c.h.b16 %v628
  %v654 = vunpack.c.l.b16 %v629
  %v655 = vunpack.c.h.b16 %v629
  %v656 = vunpack.c.l.b16 %v630
  %v657 = vunpack.c.h.b16 %v630
  %v658 = vpack.c.b16 %v644, %v642
  %v659 = vpack.c.b16 %v645, %v643
  %v660 = vpack.c.b16 %v648, %v646
  %v661 = vpack.c.b16 %v649, %v647
  %v662 = vpack.c.b16 %v652, %v650
  %v663 = vpack.c.b16 %v653, %v651
  %v664 = vpack.c.b16 %v656, %v654
  %v665 = vpack.c.b16 %v657, %v655
  %v675 = vsel %vm132, %v633, 0
  %677 = vmatprep.subr.bf16.mxu0 %v659
  %678 = vmatpush1.bf16.msra.mxu0 %v658
  %679 = vmatprep.subr.bf16.mxu0 %v661
  %680 = vmatpush1.bf16.msra.mxu0 %v660
  %681 = vmatprep.subr.bf16.mxu0 %v663
  %682 = vmatpush1.bf16.msra.mxu0 %v662
  %683 = vmatprep.subr.bf16.mxu0 %v665
  %684 = vmatpush1.bf16.msra.mxu0 %v664
  %685 = vmatprep.subr.bf16.mxu0 0
  %686 = vmatpush1.bf16.msra.mxu0 0
  %687 = vmatprep.subr.bf16.mxu0 0
  %688 = vmatpush1.bf16.msra.mxu0 0
  %689 = vmatprep.subr.bf16.mxu0 0
  %690 = vmatpush1.bf16.msra.mxu0 0
  %691 = vmatprep.subr.bf16.mxu0 0
  %692 = vmatpush1.bf16.msra.mxu0 0
  %693 = vmatprep.subr.bf16.mxu0 0
  %694 = vmatpush1.bf16.msra.mxu0 0
  %695 = vmatprep.subr.bf16.mxu0 0
  %696 = vmatpush1.bf16.msra.mxu0 0
  %697 = vmatprep.subr.bf16.mxu0 0
  %698 = vmatpush1.bf16.msra.mxu0 0
  %699 = vmatprep.subr.bf16.mxu0 0
  %700 = vmatpush1.bf16.msra.mxu0 0
  %701 = vmatprep.subr.bf16.mxu0 0
  %702 = vmatpush1.bf16.msra.mxu0 0
  %703 = vmatprep.subr.bf16.mxu0 0
  %704 = vmatpush1.bf16.msra.mxu0 0
  %705 = vmatprep.subr.bf16.mxu0 0
  %706 = vmatpush1.bf16.msra.mxu0 0
  %707 = vmatprep.subr.bf16.mxu0 0
  %708 = vmatpush1.bf16.msra.mxu0 0
  %709 = vmatprep.mubr.bf16.mxu0 0
  %710 = vmatmul.mubr.bf16.gmra.mrb[0].mxu0 %v675
  %v711 = vpop.f32.mrb[0].mxu0
  %v712 = vadd.f32 0.0, %v711
  %v713 = vpop.f32.mrb[0].mxu0
  %v714 = vadd.f32 0.0, %v713
  %v715 = vpop.f32.mrb[0].mxu0
  %v716 = vpop.f32.mrb[0].mxu0
  %717 = vdwg.mxu0
  %v718 = vadd.f32 %v616, %v712
  %v719 = vadd.f32 %v618, %v714
  %v720 = vxor.u32 %v718, 2147483648
  %v721 = vxor.u32 %v719, 2147483648
  %v722 = vmul.f32 %v720, 1.442695
  %v723 = vpow.pop %v722
  %v724 = vmul.f32 %v721, 1.442695
  %v725 = vpow.pop %v724
  %v726 = vadd.f32 %v723, 1.0
  %v727 = vadd.f32 %v725, 1.0
  %v728 = vrcp.pop %v726
  %v729 = vmul.f32 1.0, %v728
  %v730 = vrcp.pop %v727
  %v731 = vmul.f32 1.0, %v730
  %v732 = vmul.f32 %v731, 2.0
  %v733 = vsub.f32 %v732, 1.0
  %735 = vrot.lane.b32.xlu0 %v499, 64
  %v736 = vpop.permute.xlu0 %735
  %v738 = vmul.f32 %v729, %v736
  %v739 = vmul.f32 %v729, %v733
  %741 = vrot.lane.b32.xlu0 %v739, 64
  %v742 = vpop.permute.xlu0 %741
  %v744 = vadd.f32 %v738, %v742
  %v745 = vtanh.pop %v744
  %v746 = vmul.f32 %v731, %v745
  %v747 = vld [vmem:[%s7] sm:$0xff]
  %v748 = vld [vmem:[%s7 + $0x8] sm:$0xff]
  %v749 = vld [vmem:[%s7 + $0x10] sm:$0xff]
  %v750 = vld [vmem:[%s7 + $0x18] sm:$0xff]
  %v751 = vld [vmem:[%s7 + $0x20] sm:$0xff]
  %v752 = vld [vmem:[%s7 + $0x28] sm:$0xff]
  %v753 = vld [vmem:[%s7 + $0x30] sm:$0xff]
  %v754 = vld [vmem:[%s7 + $0x38] sm:$0xff]
  %v755 = vld [vmem:[%s9] sm:$0x3]
  %v757 = vlaneseq
  %v758 = vshrl.u32 %v757, 7
  %v759 = vsub.s32 0, %v758
  %v760 = vrot.slane %v755, %v759
  %v761 = vlaneseq
  %v762 = vshrl.u32 %v761, 7
  %v763 = vsub.s32 1, %v762
  %v764 = vrot.slane %v755, %v763
  %v775 = vunpack.c.l.b16 %v747
  %v776 = vunpack.c.h.b16 %v747
  %v777 = vunpack.c.l.b16 %v748
  %v778 = vunpack.c.h.b16 %v748
  %v779 = vunpack.c.l.b16 %v749
  %v780 = vunpack.c.h.b16 %v749
  %v781 = vunpack.c.l.b16 %v750
  %v782 = vunpack.c.h.b16 %v750
  %v783 = vunpack.c.l.b16 %v751
  %v784 = vunpack.c.h.b16 %v751
  %v785 = vunpack.c.l.b16 %v752
  %v786 = vunpack.c.h.b16 %v752
  %v787 = vunpack.c.l.b16 %v753
  %v788 = vunpack.c.h.b16 %v753
  %v789 = vunpack.c.l.b16 %v754
  %v790 = vunpack.c.h.b16 %v754
  %v791 = vpack.c.b16 %v777, %v775
  %v792 = vpack.c.b16 %v778, %v776
  %v793 = vpack.c.b16 %v781, %v779
  %v794 = vpack.c.b16 %v782, %v780
  %v795 = vpack.c.b16 %v785, %v783
  %v796 = vpack.c.b16 %v786, %v784
  %v797 = vpack.c.b16 %v789, %v787
  %v798 = vpack.c.b16 %v790, %v788
  %807 = vmatprep.subr.bf16.mxu0 %v792
  %808 = vmatpush1.bf16.msra.mxu0 %v791
  %809 = vmatprep.subr.bf16.mxu0 %v794
  %810 = vmatpush1.bf16.msra.mxu0 %v793
  %811 = vmatprep.subr.bf16.mxu0 %v796
  %812 = vmatpush1.bf16.msra.mxu0 %v795
  %813 = vmatprep.subr.bf16.mxu0 %v798
  %814 = vmatpush1.bf16.msra.mxu0 %v797
  %815 = vmatprep.subr.bf16.mxu0 0
  %816 = vmatpush1.bf16.msra.mxu0 0
  %817 = vmatprep.subr.bf16.mxu0 0
  %818 = vmatpush1.bf16.msra.mxu0 0
  %819 = vmatprep.subr.bf16.mxu0 0
  %820 = vmatpush1.bf16.msra.mxu0 0
  %821 = vmatprep.subr.bf16.mxu0 0
  %822 = vmatpush1.bf16.msra.mxu0 0
  %823 = vmatprep.subr.bf16.mxu0 0
  %824 = vmatpush1.bf16.msra.mxu0 0
  %825 = vmatprep.subr.bf16.mxu0 0
  %826 = vmatpush1.bf16.msra.mxu0 0
  %827 = vmatprep.subr.bf16.mxu0 0
  %828 = vmatpush1.bf16.msra.mxu0 0
  %829 = vmatprep.subr.bf16.mxu0 0
  %830 = vmatpush1.bf16.msra.mxu0 0
  %831 = vmatprep.subr.bf16.mxu0 0
  %832 = vmatpush1.bf16.msra.mxu0 0
  %833 = vmatprep.subr.bf16.mxu0 0
  %834 = vmatpush1.bf16.msra.mxu0 0
  %835 = vmatprep.subr.bf16.mxu0 0
  %836 = vmatpush1.bf16.msra.mxu0 0
  %837 = vmatprep.subr.bf16.mxu0 0
  %838 = vmatpush1.bf16.msra.mxu0 0
  %839 = vmatprep.mubr.bf16.mxu0 0
  %840 = vmatmul.mubr.bf16.gmra.mrb[0].mxu0 %v675
  %v841 = vpop.f32.mrb[0].mxu0
  %v842 = vadd.f32 %v760, %v841
  %v843 = vpop.f32.mrb[0].mxu0
  %v844 = vadd.f32 %v764, %v843
  %v845 = vpop.f32.mrb[0].mxu0
  %v846 = vpop.f32.mrb[0].mxu0
  %847 = vdwg.mxu0
  %v848 = vxor.u32 %v842, 2147483648
  %v849 = vxor.u32 %v844, 2147483648
  %v850 = vmul.f32 %v848, 1.442695
  %v851 = vpow.pop %v850
  %v852 = vmul.f32 %v849, 1.442695
  %v853 = vpow.pop %v852
  %v854 = vadd.f32 %v851, 1.0
  %v855 = vadd.f32 %v853, 1.0
  %v856 = vrcp.pop %v854
  %v857 = vmul.f32 1.0, %v856
  %v858 = vrcp.pop %v855
  %v859 = vmul.f32 1.0, %v858
  %v860 = vmul.f32 %v859, 2.0
  %v861 = vsub.f32 %v860, 1.0
  %v862 = vmul.f32 %v857, %v861
  %v863 = vtanh.pop %v862
  %865 = vrot.lane.b32.xlu0 %v863, 64
  %v866 = vpop.permute.xlu0 %865
  %v868 = vmul.f32 %v859, %v866
  %v869 = vld [vmem:[#allocation2 + $0x30] sm:$0xff]
  %v870 = vld [vmem:[#allocation2 + $0x38] sm:$0xff]
  %v871 = vpack.c.bf16 %v580, %v580
  %873 = vrot.lane.b32.xlu0 %v871, 64
  %v874 = vpop.permute.xlu0 %873
  %v876 = vsel %vm132, %v874, 0
  %878 = vmatprep.subr.bf16.mxu0 %v296
  %879 = vmatpush1.bf16.msra.mxu0 %v295
  %880 = vmatprep.subr.bf16.mxu0 %v298
  %881 = vmatpush1.bf16.msra.mxu0 %v297
  %882 = vmatprep.subr.bf16.mxu0 %v300
  %883 = vmatpush1.bf16.msra.mxu0 %v299
  %884 = vmatprep.subr.bf16.mxu0 %v302
  %885 = vmatpush1.bf16.msra.mxu0 %v301
  %886 = vmatprep.subr.bf16.mxu0 0
  %887 = vmatpush1.bf16.msra.mxu0 0
  %888 = vmatprep.subr.bf16.mxu0 0
  %889 = vmatpush1.bf16.msra.mxu0 0
  %890 = vmatprep.subr.bf16.mxu0 0
  %891 = vmatpush1.bf16.msra.mxu0 0
  %892 = vmatprep.subr.bf16.mxu0 0
  %893 = vmatpush1.bf16.msra.mxu0 0
  %894 = vmatprep.subr.bf16.mxu0 0
  %895 = vmatpush1.bf16.msra.mxu0 0
  %896 = vmatprep.subr.bf16.mxu0 0
  %897 = vmatpush1.bf16.msra.mxu0 0
  %898 = vmatprep.subr.bf16.mxu0 0
  %899 = vmatpush1.bf16.msra.mxu0 0
  %900 = vmatprep.subr.bf16.mxu0 0
  %901 = vmatpush1.bf16.msra.mxu0 0
  %902 = vmatprep.subr.bf16.mxu0 0
  %903 = vmatpush1.bf16.msra.mxu0 0
  %904 = vmatprep.subr.bf16.mxu0 0
  %905 = vmatpush1.bf16.msra.mxu0 0
  %906 = vmatprep.subr.bf16.mxu0 0
  %907 = vmatpush1.bf16.msra.mxu0 0
  %908 = vmatprep.subr.bf16.mxu0 0
  %909 = vmatpush1.bf16.msra.mxu0 0
  %910 = vmatprep.mubr.bf16.mxu0 0
  %911 = vmatmul.mubr.bf16.gmra.mrb[0].mxu0 %v876
  %v912 = vpop.f32.mrb[0].mxu0
  %v913 = vadd.f32 0.0, %v912
  %v914 = vpop.f32.mrb[0].mxu0
  %v915 = vadd.f32 0.0, %v914
  %v916 = vpop.f32.mrb[0].mxu0
  %v917 = vpop.f32.mrb[0].mxu0
  %918 = vdwg.mxu0
  %v919 = vadd.f32 %v869, %v913
  %v920 = vadd.f32 %v870, %v915
  %v921 = vxor.u32 %v919, 2147483648
  %v922 = vxor.u32 %v920, 2147483648
  %v923 = vmul.f32 %v921, 1.442695
  %v924 = vpow.pop %v923
  %v925 = vmul.f32 %v922, 1.442695
  %v926 = vpow.pop %v925
  %v927 = vadd.f32 %v924, 1.0
  %v928 = vadd.f32 %v926, 1.0
  %v929 = vrcp.pop %v927
  %v930 = vmul.f32 1.0, %v929
  %v931 = vrcp.pop %v928
  %v932 = vmul.f32 1.0, %v931
  %v933 = vmul.f32 %v932, 2.0
  %v934 = vsub.f32 %v933, 1.0
  %v935 = vmul.f32 %v930, %v578
  %v936 = vmul.f32 %v930, %v934
  %938 = vrot.lane.b32.xlu0 %v936, 64
  %v939 = vpop.permute.xlu0 %938
  %v941 = vadd.f32 %v935, %v939
  %v942 = vtanh.pop %v941
  %v943 = vmul.f32 %v932, %v942
  %944 = vmatprep.subr.bf16.mxu0 %v429
  %945 = vmatpush1.bf16.msra.mxu0 %v428
  %946 = vmatprep.subr.bf16.mxu0 %v431
  %947 = vmatpush1.bf16.msra.mxu0 %v430
  %948 = vmatprep.subr.bf16.mxu0 %v433
  %949 = vmatpush1.bf16.msra.mxu0 %v432
  %950 = vmatprep.subr.bf16.mxu0 %v435
  %951 = vmatpush1.bf16.msra.mxu0 %v434
  %952 = vmatprep.subr.bf16.mxu0 0
  %953 = vmatpush1.bf16.msra.mxu0 0
  %954 = vmatprep.subr.bf16.mxu0 0
  %955 = vmatpush1.bf16.msra.mxu0 0
  %956 = vmatprep.subr.bf16.mxu0 0
  %957 = vmatpush1.bf16.msra.mxu0 0
  %958 = vmatprep.subr.bf16.mxu0 0
  %959 = vmatpush1.bf16.msra.mxu0 0
  %960 = vmatprep.subr.bf16.mxu0 0
  %961 = vmatpush1.bf16.msra.mxu0 0
  %962 = vmatprep.subr.bf16.mxu0 0
  %963 = vmatpush1.bf16.msra.mxu0 0
  %964 = vmatprep.subr.bf16.mxu0 0
  %965 = vmatpush1.bf16.msra.mxu0 0
  %966 = vmatprep.subr.bf16.mxu0 0
  %967 = vmatpush1.bf16.msra.mxu0 0
  %968 = vmatprep.subr.bf16.mxu0 0
  %969 = vmatpush1.bf16.msra.mxu0 0
  %970 = vmatprep.subr.bf16.mxu0 0
  %971 = vmatpush1.bf16.msra.mxu0 0
  %972 = vmatprep.subr.bf16.mxu0 0
  %973 = vmatpush1.bf16.msra.mxu0 0
  %974 = vmatprep.subr.bf16.mxu0 0
  %975 = vmatpush1.bf16.msra.mxu0 0
  %976 = vmatprep.mubr.bf16.mxu0 0
  %977 = vmatmul.mubr.bf16.gmra.mrb[0].mxu0 %v876
  %v978 = vpop.f32.mrb[0].mxu0
  %v979 = vadd.f32 %v397, %v978
  %v980 = vpop.f32.mrb[0].mxu0
  %v981 = vadd.f32 %v401, %v980
  %v982 = vpop.f32.mrb[0].mxu0
  %v983 = vpop.f32.mrb[0].mxu0
  %984 = vdwg.mxu0
  %v985 = vpack.c.bf16 %v746, %v746
  %987 = vrot.lane.b32.xlu0 %v985, 64
  %v988 = vpop.permute.xlu0 %987
  %v990 = vsel %vm132, %v988, 0
  %992 = vmatprep.subr.bf16.mxu0 %v659
  %993 = vmatpush1.bf16.msra.mxu0 %v658
  %994 = vmatprep.subr.bf16.mxu0 %v661
  %995 = vmatpush1.bf16.msra.mxu0 %v660
  %996 = vmatprep.subr.bf16.mxu0 %v663
  %997 = vmatpush1.bf16.msra.mxu0 %v662
  %998 = vmatprep.subr.bf16.mxu0 %v665
  %999 = vmatpush1.bf16.msra.mxu0 %v664
  %1000 = vmatprep.subr.bf16.mxu0 0
  %1001 = vmatpush1.bf16.msra.mxu0 0
  %1002 = vmatprep.subr.bf16.mxu0 0
  %1003 = vmatpush1.bf16.msra.mxu0 0
  %1004 = vmatprep.subr.bf16.mxu0 0
  %1005 = vmatpush1.bf16.msra.mxu0 0
  %1006 = vmatprep.subr.bf16.mxu0 0
  %1007 = vmatpush1.bf16.msra.mxu0 0
  %1008 = vmatprep.subr.bf16.mxu0 0
  %1009 = vmatpush1.bf16.msra.mxu0 0
  %1010 = vmatprep.subr.bf16.mxu0 0
  %1011 = vmatpush1.bf16.msra.mxu0 0
  %1012 = vmatprep.subr.bf16.mxu0 0
  %1013 = vmatpush1.bf16.msra.mxu0 0
  %1014 = vmatprep.subr.bf16.mxu0 0
  %1015 = vmatpush1.bf16.msra.mxu0 0
  %1016 = vmatprep.subr.bf16.mxu0 0
  %1017 = vmatpush1.bf16.msra.mxu0 0
  %1018 = vmatprep.subr.bf16.mxu0 0
  %1019 = vmatpush1.bf16.msra.mxu0 0
  %1020 = vmatprep.subr.bf16.mxu0 0
  %1021 = vmatpush1.bf16.msra.mxu0 0
  %1022 = vmatprep.subr.bf16.mxu0 0
  %1023 = vmatpush1.bf16.msra.mxu0 0
  %1024 = vmatprep.mubr.bf16.mxu0 0
  %1025 = vmatmul.mubr.bf16.gmra.mrb[0].mxu0 %v990
  %v1026 = vpop.f32.mrb[0].mxu0
  %v1027 = vadd.f32 0.0, %v1026
  %v1028 = vpop.f32.mrb[0].mxu0
  %v1029 = vadd.f32 0.0, %v1028
  %v1030 = vpop.f32.mrb[0].mxu0
  %v1031 = vpop.f32.mrb[0].mxu0
  %1032 = vdwg.mxu0
  %v1033 = vadd.f32 %v979, %v1027
  %v1034 = vadd.f32 %v981, %v1029
  %v1035 = vxor.u32 %v1033, 2147483648
  %v1036 = vxor.u32 %v1034, 2147483648
  %v1037 = vmul.f32 %v1035, 1.442695
  %v1038 = vpow.pop %v1037
  %v1039 = vmul.f32 %v1036, 1.442695
  %v1040 = vpow.pop %v1039
  %v1041 = vadd.f32 %v1038, 1.0
  %v1042 = vadd.f32 %v1040, 1.0
  %v1043 = vrcp.pop %v1041
  %v1044 = vmul.f32 1.0, %v1043
  %v1045 = vrcp.pop %v1042
  %v1046 = vmul.f32 1.0, %v1045
  %v1047 = vmul.f32 %v1046, 2.0
  %v1048 = vsub.f32 %v1047, 1.0
  %v1049 = vmul.f32 %v1044, %v744
  %v1050 = vmul.f32 %v1044, %v1048
  %1052 = vrot.lane.b32.xlu0 %v1050, 64
  %v1053 = vpop.permute.xlu0 %1052
  %v1055 = vadd.f32 %v1049, %v1053
  %v1056 = vtanh.pop %v1055
  %v1057 = vmul.f32 %v1046, %v1056
  %1058 = vmatprep.subr.bf16.mxu0 %v792
  %1059 = vmatpush1.bf16.msra.mxu0 %v791
  %1060 = vmatprep.subr.bf16.mxu0 %v794
  %1061 = vmatpush1.bf16.msra.mxu0 %v793
  %1062 = vmatprep.subr.bf16.mxu0 %v796
  %1063 = vmatpush1.bf16.msra.mxu0 %v795
  %1064 = vmatprep.subr.bf16.mxu0 %v798
  %1065 = vmatpush1.bf16.msra.mxu0 %v797
  %1066 = vmatprep.subr.bf16.mxu0 0
  %1067 = vmatpush1.bf16.msra.mxu0 0
  %1068 = vmatprep.subr.bf16.mxu0 0
  %1069 = vmatpush1.bf16.msra.mxu0 0
  %1070 = vmatprep.subr.bf16.mxu0 0
  %1071 = vmatpush1.bf16.msra.mxu0 0
  %1072 = vmatprep.subr.bf16.mxu0 0
  %1073 = vmatpush1.bf16.msra.mxu0 0
  %1074 = vmatprep.subr.bf16.mxu0 0
  %1075 = vmatpush1.bf16.msra.mxu0 0
  %1076 = vmatprep.subr.bf16.mxu0 0
  %1077 = vmatpush1.bf16.msra.mxu0 0
  %1078 = vmatprep.subr.bf16.mxu0 0
  %1079 = vmatpush1.bf16.msra.mxu0 0
  %1080 = vmatprep.subr.bf16.mxu0 0
  %1081 = vmatpush1.bf16.msra.mxu0 0
  %1082 = vmatprep.subr.bf16.mxu0 0
  %1083 = vmatpush1.bf16.msra.mxu0 0
  %1084 = vmatprep.subr.bf16.mxu0 0
  %1085 = vmatpush1.bf16.msra.mxu0 0
  %1086 = vmatprep.subr.bf16.mxu0 0
  %1087 = vmatpush1.bf16.msra.mxu0 0
  %1088 = vmatprep.subr.bf16.mxu0 0
  %1089 = vmatpush1.bf16.msra.mxu0 0
  %1090 = vmatprep.mubr.bf16.mxu0 0
  %1091 = vmatmul.mubr.bf16.gmra.mrb[0].mxu0 %v990
  %v1092 = vpop.f32.mrb[0].mxu0
  %v1093 = vadd.f32 %v760, %v1092
  %v1094 = vpop.f32.mrb[0].mxu0
  %v1095 = vadd.f32 %v764, %v1094
  %v1096 = vpop.f32.mrb[0].mxu0
  %v1097 = vpop.f32.mrb[0].mxu0
  %1098 = vdwg.mxu0
  %v1099 = vpack.c.bf16 %v868, %v868
  %v1100 = vld [vmem:[%s8] sm:$0xff]
  %v1101 = vld [vmem:[%s8 + $0x8] sm:$0xff]
  %v1102 = vld [vmem:[%s8 + $0x10] sm:$0xff]
  %v1103 = vld [vmem:[%s8 + $0x18] sm:$0xff]
  %v1104 = vld [vmem:[%s8 + $0x20] sm:$0xff]
  %v1105 = vld [vmem:[%s8 + $0x28] sm:$0xff]
  %v1106 = vld [vmem:[%s8 + $0x30] sm:$0xff]
  %v1107 = vld [vmem:[%s8 + $0x38] sm:$0xff]
  %1109 = vrot.lane.b32.xlu0 %v1099, 64
  %v1110 = vpop.permute.xlu0 %1109
  %v1119 = vunpack.c.l.b16 %v1100
  %v1120 = vunpack.c.h.b16 %v1100
  %v1121 = vunpack.c.l.b16 %v1101
  %v1122 = vunpack.c.h.b16 %v1101
  %v1123 = vunpack.c.l.b16 %v1102
  %v1124 = vunpack.c.h.b16 %v1102
  %v1125 = vunpack.c.l.b16 %v1103
  %v1126 = vunpack.c.h.b16 %v1103
  %v1127 = vunpack.c.l.b16 %v1104
  %v1128 = vunpack.c.h.b16 %v1104
  %v1129 = vunpack.c.l.b16 %v1105
  %v1130 = vunpack.c.h.b16 %v1105
  %v1131 = vunpack.c.l.b16 %v1106
  %v1132 = vunpack.c.h.b16 %v1106
  %v1133 = vunpack.c.l.b16 %v1107
  %v1134 = vunpack.c.h.b16 %v1107
  %v1135 = vpack.c.b16 %v1121, %v1119
  %v1136 = vpack.c.b16 %v1122, %v1120
  %v1137 = vpack.c.b16 %v1125, %v1123
  %v1138 = vpack.c.b16 %v1126, %v1124
  %v1139 = vpack.c.b16 %v1129, %v1127
  %v1140 = vpack.c.b16 %v1130, %v1128
  %v1141 = vpack.c.b16 %v1133, %v1131
  %v1142 = vpack.c.b16 %v1134, %v1132
  %v1152 = vsel %vm132, %v1110, 0
  %1154 = vmatprep.subr.bf16.mxu0 %v1136
  %1155 = vmatpush1.bf16.msra.mxu0 %v1135
  %1156 = vmatprep.subr.bf16.mxu0 %v1138
  %1157 = vmatpush1.bf16.msra.mxu0 %v1137
  %1158 = vmatprep.subr.bf16.mxu0 %v1140
  %1159 = vmatpush1.bf16.msra.mxu0 %v1139
  %1160 = vmatprep.subr.bf16.mxu0 %v1142
  %1161 = vmatpush1.bf16.msra.mxu0 %v1141
  %1162 = vmatprep.subr.bf16.mxu0 0
  %1163 = vmatpush1.bf16.msra.mxu0 0
  %1164 = vmatprep.subr.bf16.mxu0 0
  %1165 = vmatpush1.bf16.msra.mxu0 0
  %1166 = vmatprep.subr.bf16.mxu0 0
  %1167 = vmatpush1.bf16.msra.mxu0 0
  %1168 = vmatprep.subr.bf16.mxu0 0
  %1169 = vmatpush1.bf16.msra.mxu0 0
  %1170 = vmatprep.subr.bf16.mxu0 0
  %1171 = vmatpush1.bf16.msra.mxu0 0
  %1172 = vmatprep.subr.bf16.mxu0 0
  %1173 = vmatpush1.bf16.msra.mxu0 0
  %1174 = vmatprep.subr.bf16.mxu0 0
  %1175 = vmatpush1.bf16.msra.mxu0 0
  %1176 = vmatprep.subr.bf16.mxu0 0
  %1177 = vmatpush1.bf16.msra.mxu0 0
  %1178 = vmatprep.subr.bf16.mxu0 0
  %1179 = vmatpush1.bf16.msra.mxu0 0
  %1180 = vmatprep.subr.bf16.mxu0 0
  %1181 = vmatpush1.bf16.msra.mxu0 0
  %1182 = vmatprep.subr.bf16.mxu0 0
  %1183 = vmatpush1.bf16.msra.mxu0 0
  %1184 = vmatprep.subr.bf16.mxu0 0
  %1185 = vmatpush1.bf16.msra.mxu0 0
  %1186 = vmatprep.mubr.bf16.mxu0 0
  %1187 = vmatmul.mubr.bf16.gmra.mrb[0].mxu0 %v1152
  %v1188 = vpop.f32.mrb[0].mxu0
  %v1189 = vadd.f32 0.0, %v1188
  %v1190 = vpop.f32.mrb[0].mxu0
  %v1191 = vadd.f32 0.0, %v1190
  %v1192 = vpop.f32.mrb[0].mxu0
  %v1193 = vpop.f32.mrb[0].mxu0
  %1194 = vdwg.mxu0
  %v1195 = vadd.f32 %v1093, %v1189
  %v1196 = vadd.f32 %v1095, %v1191
  %v1197 = vxor.u32 %v1195, 2147483648
  %v1198 = vxor.u32 %v1196, 2147483648
  %v1199 = vmul.f32 %v1197, 1.442695
  %v1200 = vpow.pop %v1199
  %v1201 = vmul.f32 %v1198, 1.442695
  %v1202 = vpow.pop %v1201
  %v1203 = vadd.f32 %v1200, 1.0
  %v1204 = vadd.f32 %v1202, 1.0
  %v1205 = vrcp.pop %v1203
  %v1206 = vmul.f32 1.0, %v1205
  %v1207 = vrcp.pop %v1204
  %v1208 = vmul.f32 1.0, %v1207
  %v1209 = vmul.f32 %v1208, 2.0
  %v1210 = vsub.f32 %v1209, 1.0
  %1212 = vrot.lane.b32.xlu0 %v862, 64
  %v1213 = vpop.permute.xlu0 %1212
  %v1215 = vmul.f32 %v1206, %v1213
  %v1216 = vmul.f32 %v1206, %v1210
  %1218 = vrot.lane.b32.xlu0 %v1216, 64
  %v1219 = vpop.permute.xlu0 %1218
  %v1221 = vadd.f32 %v1215, %v1219
  %v1222 = vtanh.pop %v1221
  %v1223 = vmul.f32 %v1208, %v1222
  %v1224 = vld [vmem:[#allocation2 + $0x40] sm:$0xff]
  %v1225 = vld [vmem:[#allocation2 + $0x48] sm:$0xff]
  %v1226 = vpack.c.bf16 %v943, %v943
  %1228 = vrot.lane.b32.xlu0 %v1226, 64
  %v1229 = vpop.permute.xlu0 %1228
  %v1231 = vsel %vm132, %v1229, 0
  %1233 = vmatprep.subr.bf16.mxu0 %v296
  %1234 = vmatpush1.bf16.msra.mxu0 %v295
  %1235 = vmatprep.subr.bf16.mxu0 %v298
  %1236 = vmatpush1.bf16.msra.mxu0 %v297
  %1237 = vmatprep.subr.bf16.mxu0 %v300
  %1238 = vmatpush1.bf16.msra.mxu0 %v299
  %1239 = vmatprep.subr.bf16.mxu0 %v302
  %1240 = vmatpush1.bf16.msra.mxu0 %v301
  %1241 = vmatprep.subr.bf16.mxu0 0
  %1242 = vmatpush1.bf16.msra.mxu0 0
  %1243 = vmatprep.subr.bf16.mxu0 0
  %1244 = vmatpush1.bf16.msra.mxu0 0
  %1245 = vmatprep.subr.bf16.mxu0 0
  %1246 = vmatpush1.bf16.msra.mxu0 0
  %1247 = vmatprep.subr.bf16.mxu0 0
  %1248 = vmatpush1.bf16.msra.mxu0 0
  %1249 = vmatprep.subr.bf16.mxu0 0
  %1250 = vmatpush1.bf16.msra.mxu0 0
  %1251 = vmatprep.subr.bf16.mxu0 0
  %1252 = vmatpush1.bf16.msra.mxu0 0
  %1253 = vmatprep.subr.bf16.mxu0 0
  %1254 = vmatpush1.bf16.msra.mxu0 0
  %1255 = vmatprep.subr.bf16.mxu0 0
  %1256 = vmatpush1.bf16.msra.mxu0 0
  %1257 = vmatprep.subr.bf16.mxu0 0
  %1258 = vmatpush1.bf16.msra.mxu0 0
  %1259 = vmatprep.subr.bf16.mxu0 0
  %1260 = vmatpush1.bf16.msra.mxu0 0
  %1261 = vmatprep.subr.bf16.mxu0 0
  %1262 = vmatpush1.bf16.msra.mxu0 0
  %1263 = vmatprep.subr.bf16.mxu0 0
  %1264 = vmatpush1.bf16.msra.mxu0 0
  %1265 = vmatprep.mubr.bf16.mxu0 0
  %1266 = vmatmul.mubr.bf16.gmra.mrb[0].mxu0 %v1231
  %v1267 = vpop.f32.mrb[0].mxu0
  %v1268 = vadd.f32 0.0, %v1267
  %v1269 = vpop.f32.mrb[0].mxu0
  %v1270 = vadd.f32 0.0, %v1269
  %v1271 = vpop.f32.mrb[0].mxu0
  %v1272 = vpop.f32.mrb[0].mxu0
  %1273 = vdwg.mxu0
  %v1274 = vadd.f32 %v1224, %v1268
  %v1275 = vadd.f32 %v1225, %v1270
  %v1276 = vxor.u32 %v1274, 2147483648
  %v1277 = vxor.u32 %v1275, 2147483648
  %v1278 = vmul.f32 %v1276, 1.442695
  %v1279 = vpow.pop %v1278
  %v1280 = vmul.f32 %v1277, 1.442695
  %v1281 = vpow.pop %v1280
  %v1282 = vadd.f32 %v1279, 1.0
  %v1283 = vadd.f32 %v1281, 1.0
  %v1284 = vrcp.pop %v1282
  %v1285 = vmul.f32 1.0, %v1284
  %v1286 = vrcp.pop %v1283
  %v1287 = vmul.f32 1.0, %v1286
  %v1288 = vmul.f32 %v1287, 2.0
  %v1289 = vsub.f32 %v1288, 1.0
  %v1290 = vmul.f32 %v1285, %v941
  %v1291 = vmul.f32 %v1285, %v1289
  %1293 = vrot.lane.b32.xlu0 %v1291, 64
  %v1294 = vpop.permute.xlu0 %1293
  %v1296 = vadd.f32 %v1290, %v1294
  %v1297 = vtanh.pop %v1296
  %v1298 = vmul.f32 %v1287, %v1297
  %1299 = vmatprep.subr.bf16.mxu0 %v429
  %1300 = vmatpush1.bf16.msra.mxu0 %v428
  %1301 = vmatprep.subr.bf16.mxu0 %v431
  %1302 = vmatpush1.bf16.msra.mxu0 %v430
  %1303 = vmatprep.subr.bf16.mxu0 %v433
  %1304 = vmatpush1.bf16.msra.mxu0 %v432
  %1305 = vmatprep.subr.bf16.mxu0 %v435
  %1306 = vmatpush1.bf16.msra.mxu0 %v434
  %1307 = vmatprep.subr.bf16.mxu0 0
  %1308 = vmatpush1.bf16.msra.mxu0 0
  %1309 = vmatprep.subr.bf16.mxu0 0
  %1310 = vmatpush1.bf16.msra.mxu0 0
  %1311 = vmatprep.subr.bf16.mxu0 0
  %1312 = vmatpush1.bf16.msra.mxu0 0
  %1313 = vmatprep.subr.bf16.mxu0 0
  %1314 = vmatpush1.bf16.msra.mxu0 0
  %1315 = vmatprep.subr.bf16.mxu0 0
  %1316 = vmatpush1.bf16.msra.mxu0 0
  %1317 = vmatprep.subr.bf16.mxu0 0
  %1318 = vmatpush1.bf16.msra.mxu0 0
  %1319 = vmatprep.subr.bf16.mxu0 0
  %1320 = vmatpush1.bf16.msra.mxu0 0
  %1321 = vmatprep.subr.bf16.mxu0 0
  %1322 = vmatpush1.bf16.msra.mxu0 0
  %1323 = vmatprep.subr.bf16.mxu0 0
  %1324 = vmatpush1.bf16.msra.mxu0 0
  %1325 = vmatprep.subr.bf16.mxu0 0
  %1326 = vmatpush1.bf16.msra.mxu0 0
  %1327 = vmatprep.subr.bf16.mxu0 0
  %1328 = vmatpush1.bf16.msra.mxu0 0
  %1329 = vmatprep.subr.bf16.mxu0 0
  %1330 = vmatpush1.bf16.msra.mxu0 0
  %1331 = vmatprep.mubr.bf16.mxu0 0
  %1332 = vmatmul.mubr.bf16.gmra.mrb[0].mxu0 %v1231
  %v1333 = vpop.f32.mrb[0].mxu0
  %v1334 = vadd.f32 %v397, %v1333
  %v1335 = vpop.f32.mrb[0].mxu0
  %v1336 = vadd.f32 %v401, %v1335
  %v1337 = vpop.f32.mrb[0].mxu0
  %v1338 = vpop.f32.mrb[0].mxu0
  %1339 = vdwg.mxu0
  %v1340 = vpack.c.bf16 %v1057, %v1057
  %1342 = vrot.lane.b32.xlu0 %v1340, 64
  %v1343 = vpop.permute.xlu0 %1342
  %v1345 = vsel %vm132, %v1343, 0
  %1347 = vmatprep.subr.bf16.mxu0 %v659
  %1348 = vmatpush1.bf16.msra.mxu0 %v658
  %1349 = vmatprep.subr.bf16.mxu0 %v661
  %1350 = vmatpush1.bf16.msra.mxu0 %v660
  %1351 = vmatprep.subr.bf16.mxu0 %v663
  %1352 = vmatpush1.bf16.msra.mxu0 %v662
  %1353 = vmatprep.subr.bf16.mxu0 %v665
  %1354 = vmatpush1.bf16.msra.mxu0 %v664
  %1355 = vmatprep.subr.bf16.mxu0 0
  %1356 = vmatpush1.bf16.msra.mxu0 0
  %1357 = vmatprep.subr.bf16.mxu0 0
  %1358 = vmatpush1.bf16.msra.mxu0 0
  %1359 = vmatprep.subr.bf16.mxu0 0
  %1360 = vmatpush1.bf16.msra.mxu0 0
  %1361 = vmatprep.subr.bf16.mxu0 0
  %1362 = vmatpush1.bf16.msra.mxu0 0
  %1363 = vmatprep.subr.bf16.mxu0 0
  %1364 = vmatpush1.bf16.msra.mxu0 0
  %1365 = vmatprep.subr.bf16.mxu0 0
  %1366 = vmatpush1.bf16.msra.mxu0 0
  %1367 = vmatprep.subr.bf16.mxu0 0
  %1368 = vmatpush1.bf16.msra.mxu0 0
  %1369 = vmatprep.subr.bf16.mxu0 0
  %1370 = vmatpush1.bf16.msra.mxu0 0
  %1371 = vmatprep.subr.bf16.mxu0 0
  %1372 = vmatpush1.bf16.msra.mxu0 0
  %1373 = vmatprep.subr.bf16.mxu0 0
  %1374 = vmatpush1.bf16.msra.mxu0 0
  %1375 = vmatprep.subr.bf16.mxu0 0
  %1376 = vmatpush1.bf16.msra.mxu0 0
  %1377 = vmatprep.subr.bf16.mxu0 0
  %1378 = vmatpush1.bf16.msra.mxu0 0
  %1379 = vmatprep.mubr.bf16.mxu0 0
  %1380 = vmatmul.mubr.bf16.gmra.mrb[0].mxu0 %v1345
  %v1381 = vpop.f32.mrb[0].mxu0
  %v1382 = vadd.f32 0.0, %v1381
  %v1383 = vpop.f32.mrb[0].mxu0
  %v1384 = vadd.f32 0.0, %v1383
  %v1385 = vpop.f32.mrb[0].mxu0
  %v1386 = vpop.f32.mrb[0].mxu0
  %1387 = vdwg.mxu0
  %v1388 = vadd.f32 %v1334, %v1382
  %v1389 = vadd.f32 %v1336, %v1384
  %v1390 = vxor.u32 %v1388, 2147483648
  %v1391 = vxor.u32 %v1389, 2147483648
  %v1392 = vmul.f32 %v1390, 1.442695
  %v1393 = vpow.pop %v1392
  %v1394 = vmul.f32 %v1391, 1.442695
  %v1395 = vpow.pop %v1394
  %v1396 = vadd.f32 %v1393, 1.0
  %v1397 = vadd.f32 %v1395, 1.0
  %v1398 = vrcp.pop %v1396
  %v1399 = vmul.f32 1.0, %v1398
  %v1400 = vrcp.pop %v1397
  %v1401 = vmul.f32 1.0, %v1400
  %v1402 = vmul.f32 %v1401, 2.0
  %v1403 = vsub.f32 %v1402, 1.0
  %v1404 = vmul.f32 %v1399, %v1055
  %v1405 = vmul.f32 %v1399, %v1403
  %1407 = vrot.lane.b32.xlu0 %v1405, 64
  %v1408 = vpop.permute.xlu0 %1407
  %v1410 = vadd.f32 %v1404, %v1408
  %v1411 = vtanh.pop %v1410
  %v1412 = vmul.f32 %v1401, %v1411
  %1413 = vmatprep.subr.bf16.mxu0 %v792
  %1414 = vmatpush1.bf16.msra.mxu0 %v791
  %1415 = vmatprep.subr.bf16.mxu0 %v794
  %1416 = vmatpush1.bf16.msra.mxu0 %v793
  %1417 = vmatprep.subr.bf16.mxu0 %v796
  %1418 = vmatpush1.bf16.msra.mxu0 %v795
  %1419 = vmatprep.subr.bf16.mxu0 %v798
  %1420 = vmatpush1.bf16.msra.mxu0 %v797
  %1421 = vmatprep.subr.bf16.mxu0 0
  %1422 = vmatpush1.bf16.msra.mxu0 0
  %1423 = vmatprep.subr.bf16.mxu0 0
  %1424 = vmatpush1.bf16.msra.mxu0 0
  %1425 = vmatprep.subr.bf16.mxu0 0
  %1426 = vmatpush1.bf16.msra.mxu0 0
  %1427 = vmatprep.subr.bf16.mxu0 0
  %1428 = vmatpush1.bf16.msra.mxu0 0
  %1429 = vmatprep.subr.bf16.mxu0 0
  %1430 = vmatpush1.bf16.msra.mxu0 0
  %1431 = vmatprep.subr.bf16.mxu0 0
  %1432 = vmatpush1.bf16.msra.mxu0 0
  %1433 = vmatprep.subr.bf16.mxu0 0
  %1434 = vmatpush1.bf16.msra.mxu0 0
  %1435 = vmatprep.subr.bf16.mxu0 0
  %1436 = vmatpush1.bf16.msra.mxu0 0
  %1437 = vmatprep.subr.bf16.mxu0 0
  %1438 = vmatpush1.bf16.msra.mxu0 0
  %1439 = vmatprep.subr.bf16.mxu0 0
  %1440 = vmatpush1.bf16.msra.mxu0 0
  %1441 = vmatprep.subr.bf16.mxu0 0
  %1442 = vmatpush1.bf16.msra.mxu0 0
  %1443 = vmatprep.subr.bf16.mxu0 0
  %1444 = vmatpush1.bf16.msra.mxu0 0
  %1445 = vmatprep.mubr.bf16.mxu0 0
  %1446 = vmatmul.mubr.bf16.gmra.mrb[0].mxu0 %v1345
  %v1447 = vpop.f32.mrb[0].mxu0
  %v1448 = vadd.f32 %v760, %v1447
  %v1449 = vpop.f32.mrb[0].mxu0
  %v1450 = vadd.f32 %v764, %v1449
  %v1451 = vpop.f32.mrb[0].mxu0
  %v1452 = vpop.f32.mrb[0].mxu0
  %1453 = vdwg.mxu0
  %v1454 = vpack.c.bf16 %v1223, %v1223
  %1456 = vrot.lane.b32.xlu0 %v1454, 64
  %v1457 = vpop.permute.xlu0 %1456
  %v1459 = vsel %vm132, %v1457, 0
  %1461 = vmatprep.subr.bf16.mxu0 %v1136
  %1462 = vmatpush1.bf16.msra.mxu0 %v1135
  %1463 = vmatprep.subr.bf16.mxu0 %v1138
  %1464 = vmatpush1.bf16.msra.mxu0 %v1137
  %1465 = vmatprep.subr.bf16.mxu0 %v1140
  %1466 = vmatpush1.bf16.msra.mxu0 %v1139
  %1467 = vmatprep.subr.bf16.mxu0 %v1142
  %1468 = vmatpush1.bf16.msra.mxu0 %v1141
  %1469 = vmatprep.subr.bf16.mxu0 0
  %1470 = vmatpush1.bf16.msra.mxu0 0
  %1471 = vmatprep.subr.bf16.mxu0 0
  %1472 = vmatpush1.bf16.msra.mxu0 0
  %1473 = vmatprep.subr.bf16.mxu0 0
  %1474 = vmatpush1.bf16.msra.mxu0 0
  %1475 = vmatprep.subr.bf16.mxu0 0
  %1476 = vmatpush1.bf16.msra.mxu0 0
  %1477 = vmatprep.subr.bf16.mxu0 0
  %1478 = vmatpush1.bf16.msra.mxu0 0
  %1479 = vmatprep.subr.bf16.mxu0 0
  %1480 = vmatpush1.bf16.msra.mxu0 0
  %1481 = vmatprep.subr.bf16.mxu0 0
  %1482 = vmatpush1.bf16.msra.mxu0 0
  %1483 = vmatprep.subr.bf16.mxu0 0
  %1484 = vmatpush1.bf16.msra.mxu0 0
  %1485 = vmatprep.subr.bf16.mxu0 0
  %1486 = vmatpush1.bf16.msra.mxu0 0
  %1487 = vmatprep.subr.bf16.mxu0 0
  %1488 = vmatpush1.bf16.msra.mxu0 0
  %1489 = vmatprep.subr.bf16.mxu0 0
  %1490 = vmatpush1.bf16.msra.mxu0 0
  %1491 = vmatprep.subr.bf16.mxu0 0
  %1492 = vmatpush1.bf16.msra.mxu0 0
  %1493 = vmatprep.mubr.bf16.mxu0 0
  %1494 = vmatmul.mubr.bf16.gmra.mrb[0].mxu0 %v1459
  %v1495 = vpop.f32.mrb[0].mxu0
  %v1496 = vadd.f32 0.0, %v1495
  %v1497 = vpop.f32.mrb[0].mxu0
  %v1498 = vadd.f32 0.0, %v1497
  %v1499 = vpop.f32.mrb[0].mxu0
  %v1500 = vpop.f32.mrb[0].mxu0
  %1501 = vdwg.mxu0
  %v1502 = vadd.f32 %v1448, %v1496
  %v1503 = vadd.f32 %v1450, %v1498
  %v1504 = vxor.u32 %v1502, 2147483648
  %v1505 = vxor.u32 %v1503, 2147483648
  %v1506 = vmul.f32 %v1504, 1.442695
  %v1507 = vpow.pop %v1506
  %v1508 = vmul.f32 %v1505, 1.442695
  %v1509 = vpow.pop %v1508
  %v1510 = vadd.f32 %v1507, 1.0
  %v1511 = vadd.f32 %v1509, 1.0
  %v1512 = vrcp.pop %v1510
  %v1513 = vmul.f32 1.0, %v1512
  %v1514 = vrcp.pop %v1511
  %v1515 = vmul.f32 1.0, %v1514
  %v1516 = vmul.f32 %v1515, 2.0
  %v1517 = vsub.f32 %v1516, 1.0
  %v1518 = vmul.f32 %v1513, %v1221
  %v1519 = vmul.f32 %v1513, %v1517
  %1521 = vrot.lane.b32.xlu0 %v1519, 64
  %v1522 = vpop.permute.xlu0 %1521
  %v1524 = vadd.f32 %v1518, %v1522
  %v1525 = vtanh.pop %v1524
  %v1526 = vmul.f32 %v1515, %v1525
  %v1527 = vld [vmem:[#allocation2 + $0x50] sm:$0xff]
  %v1528 = vld [vmem:[#allocation2 + $0x58] sm:$0xff]
  %v1529 = vpack.c.bf16 %v1298, %v1298
  %1531 = vrot.lane.b32.xlu0 %v1529, 64
  %v1532 = vpop.permute.xlu0 %1531
  %v1534 = vsel %vm132, %v1532, 0
  %1536 = vmatprep.subr.bf16.mxu0 %v296
  %1537 = vmatpush1.bf16.msra.mxu0 %v295
  %1538 = vmatprep.subr.bf16.mxu0 %v298
  %1539 = vmatpush1.bf16.msra.mxu0 %v297
  %1540 = vmatprep.subr.bf16.mxu0 %v300
  %1541 = vmatpush1.bf16.msra.mxu0 %v299
  %1542 = vmatprep.subr.bf16.mxu0 %v302
  %1543 = vmatpush1.bf16.msra.mxu0 %v301
  %1544 = vmatprep.subr.bf16.mxu0 0
  %1545 = vmatpush1.bf16.msra.mxu0 0
  %1546 = vmatprep.subr.bf16.mxu0 0
  %1547 = vmatpush1.bf16.msra.mxu0 0
  %1548 = vmatprep.subr.bf16.mxu0 0
  %1549 = vmatpush1.bf16.msra.mxu0 0
  %1550 = vmatprep.subr.bf16.mxu0 0
  %1551 = vmatpush1.bf16.msra.mxu0 0
  %1552 = vmatprep.subr.bf16.mxu0 0
  %1553 = vmatpush1.bf16.msra.mxu0 0
  %1554 = vmatprep.subr.bf16.mxu0 0
  %1555 = vmatpush1.bf16.msra.mxu0 0
  %1556 = vmatprep.subr.bf16.mxu0 0
  %1557 = vmatpush1.bf16.msra.mxu0 0
  %1558 = vmatprep.subr.bf16.mxu0 0
  %1559 = vmatpush1.bf16.msra.mxu0 0
  %1560 = vmatprep.subr.bf16.mxu0 0
  %1561 = vmatpush1.bf16.msra.mxu0 0
  %1562 = vmatprep.subr.bf16.mxu0 0
  %1563 = vmatpush1.bf16.msra.mxu0 0
  %1564 = vmatprep.subr.bf16.mxu0 0
  %1565 = vmatpush1.bf16.msra.mxu0 0
  %1566 = vmatprep.subr.bf16.mxu0 0
  %1567 = vmatpush1.bf16.msra.mxu0 0
  %1568 = vmatprep.mubr.bf16.mxu0 0
  %1569 = vmatmul.mubr.bf16.gmra.mrb[0].mxu0 %v1534
  %v1570 = vpop.f32.mrb[0].mxu0
  %v1571 = vadd.f32 0.0, %v1570
  %v1572 = vpop.f32.mrb[0].mxu0
  %v1573 = vadd.f32 0.0, %v1572
  %v1574 = vpop.f32.mrb[0].mxu0
  %v1575 = vpop.f32.mrb[0].mxu0
  %1576 = vdwg.mxu0
  %v1577 = vadd.f32 %v1527, %v1571
  %v1578 = vadd.f32 %v1528, %v1573
  %v1579 = vxor.u32 %v1577, 2147483648
  %v1580 = vxor.u32 %v1578, 2147483648
  %v1581 = vmul.f32 %v1579, 1.442695
  %v1582 = vpow.pop %v1581
  %v1583 = vmul.f32 %v1580, 1.442695
  %v1584 = vpow.pop %v1583
  %v1585 = vadd.f32 %v1582, 1.0
  %v1586 = vadd.f32 %v1584, 1.0
  %v1587 = vrcp.pop %v1585
  %v1588 = vmul.f32 1.0, %v1587
  %v1589 = vrcp.pop %v1586
  %v1590 = vmul.f32 1.0, %v1589
  %v1591 = vmul.f32 %v1590, 2.0
  %v1592 = vsub.f32 %v1591, 1.0
  %v1593 = vmul.f32 %v1588, %v1296
  %v1594 = vmul.f32 %v1588, %v1592
  %1596 = vrot.lane.b32.xlu0 %v1594, 64
  %v1597 = vpop.permute.xlu0 %1596
  %v1599 = vadd.f32 %v1593, %v1597
  %v1600 = vtanh.pop %v1599
  %v1601 = vmul.f32 %v1590, %v1600
  %1602 = vmatprep.subr.bf16.mxu0 %v429
  %1603 = vmatpush1.bf16.msra.mxu0 %v428
  %1604 = vmatprep.subr.bf16.mxu0 %v431
  %1605 = vmatpush1.bf16.msra.mxu0 %v430
  %1606 = vmatprep.subr.bf16.mxu0 %v433
  %1607 = vmatpush1.bf16.msra.mxu0 %v432
  %1608 = vmatprep.subr.bf16.mxu0 %v435
  %1609 = vmatpush1.bf16.msra.mxu0 %v434
  %1610 = vmatprep.subr.bf16.mxu0 0
  %1611 = vmatpush1.bf16.msra.mxu0 0
  %1612 = vmatprep.subr.bf16.mxu0 0
  %1613 = vmatpush1.bf16.msra.mxu0 0
  %1614 = vmatprep.subr.bf16.mxu0 0
  %1615 = vmatpush1.bf16.msra.mxu0 0
  %1616 = vmatprep.subr.bf16.mxu0 0
  %1617 = vmatpush1.bf16.msra.mxu0 0
  %1618 = vmatprep.subr.bf16.mxu0 0
  %1619 = vmatpush1.bf16.msra.mxu0 0
  %1620 = vmatprep.subr.bf16.mxu0 0
  %1621 = vmatpush1.bf16.msra.mxu0 0
  %1622 = vmatprep.subr.bf16.mxu0 0
  %1623 = vmatpush1.bf16.msra.mxu0 0
  %1624 = vmatprep.subr.bf16.mxu0 0
  %1625 = vmatpush1.bf16.msra.mxu0 0
  %1626 = vmatprep.subr.bf16.mxu0 0
  %1627 = vmatpush1.bf16.msra.mxu0 0
  %1628 = vmatprep.subr.bf16.mxu0 0
  %1629 = vmatpush1.bf16.msra.mxu0 0
  %1630 = vmatprep.subr.bf16.mxu0 0
  %1631 = vmatpush1.bf16.msra.mxu0 0
  %1632 = vmatprep.subr.bf16.mxu0 0
  %1633 = vmatpush1.bf16.msra.mxu0 0
  %1634 = vmatprep.mubr.bf16.mxu0 0
  %1635 = vmatmul.mubr.bf16.gmra.mrb[0].mxu0 %v1534
  %v1636 = vpop.f32.mrb[0].mxu0
  %v1637 = vadd.f32 %v397, %v1636
  %v1638 = vpop.f32.mrb[0].mxu0
  %v1639 = vadd.f32 %v401, %v1638
  %v1640 = vpop.f32.mrb[0].mxu0
  %v1641 = vpop.f32.mrb[0].mxu0
  %1642 = vdwg.mxu0
  %v1643 = vpack.c.bf16 %v1412, %v1412
  %1645 = vrot.lane.b32.xlu0 %v1643, 64
  %v1646 = vpop.permute.xlu0 %1645
  %v1648 = vsel %vm132, %v1646, 0
  %1650 = vmatprep.subr.bf16.mxu0 %v659
  %1651 = vmatpush1.bf16.msra.mxu0 %v658
  %1652 = vmatprep.subr.bf16.mxu0 %v661
  %1653 = vmatpush1.bf16.msra.mxu0 %v660
  %1654 = vmatprep.subr.bf16.mxu0 %v663
  %1655 = vmatpush1.bf16.msra.mxu0 %v662
  %1656 = vmatprep.subr.bf16.mxu0 %v665
  %1657 = vmatpush1.bf16.msra.mxu0 %v664
  %1658 = vmatprep.subr.bf16.mxu0 0
  %1659 = vmatpush1.bf16.msra.mxu0 0
  %1660 = vmatprep.subr.bf16.mxu0 0
  %1661 = vmatpush1.bf16.msra.mxu0 0
  %1662 = vmatprep.subr.bf16.mxu0 0
  %1663 = vmatpush1.bf16.msra.mxu0 0
  %1664 = vmatprep.subr.bf16.mxu0 0
  %1665 = vmatpush1.bf16.msra.mxu0 0
  %1666 = vmatprep.subr.bf16.mxu0 0
  %1667 = vmatpush1.bf16.msra.mxu0 0
  %1668 = vmatprep.subr.bf16.mxu0 0
  %1669 = vmatpush1.bf16.msra.mxu0 0
  %1670 = vmatprep.subr.bf16.mxu0 0
  %1671 = vmatpush1.bf16.msra.mxu0 0
  %1672 = vmatprep.subr.bf16.mxu0 0
  %1673 = vmatpush1.bf16.msra.mxu0 0
  %1674 = vmatprep.subr.bf16.mxu0 0
  %1675 = vmatpush1.bf16.msra.mxu0 0
  %1676 = vmatprep.subr.bf16.mxu0 0
  %1677 = vmatpush1.bf16.msra.mxu0 0
  %1678 = vmatprep.subr.bf16.mxu0 0
  %1679 = vmatpush1.bf16.msra.mxu0 0
  %1680 = vmatprep.subr.bf16.mxu0 0
  %1681 = vmatpush1.bf16.msra.mxu0 0
  %1682 = vmatprep.mubr.bf16.mxu0 0
  %1683 = vmatmul.mubr.bf16.gmra.mrb[0].mxu0 %v1648
  %v1684 = vpop.f32.mrb[0].mxu0
  %v1685 = vadd.f32 0.0, %v1684
  %v1686 = vpop.f32.mrb[0].mxu0
  %v1687 = vadd.f32 0.0, %v1686
  %v1688 = vpop.f32.mrb[0].mxu0
  %v1689 = vpop.f32.mrb[0].mxu0
  %1690 = vdwg.mxu0
  %v1691 = vadd.f32 %v1637, %v1685
  %v1692 = vadd.f32 %v1639, %v1687
  %v1693 = vxor.u32 %v1691, 2147483648
  %v1694 = vxor.u32 %v1692, 2147483648
  %v1695 = vmul.f32 %v1693, 1.442695
  %v1696 = vpow.pop %v1695
  %v1697 = vmul.f32 %v1694, 1.442695
  %v1698 = vpow.pop %v1697
  %v1699 = vadd.f32 %v1696, 1.0
  %v1700 = vadd.f32 %v1698, 1.0
  %v1701 = vrcp.pop %v1699
  %v1702 = vmul.f32 1.0, %v1701
  %v1703 = vrcp.pop %v1700
  %v1704 = vmul.f32 1.0, %v1703
  %v1705 = vmul.f32 %v1704, 2.0
  %v1706 = vsub.f32 %v1705, 1.0
  %v1707 = vmul.f32 %v1702, %v1410
  %v1708 = vmul.f32 %v1702, %v1706
  %1710 = vrot.lane.b32.xlu0 %v1708, 64
  %v1711 = vpop.permute.xlu0 %1710
  %v1713 = vadd.f32 %v1707, %v1711
  %v1714 = vtanh.pop %v1713
  %v1715 = vmul.f32 %v1704, %v1714
  %1716 = vmatprep.subr.bf16.mxu0 %v792
  %1717 = vmatpush1.bf16.msra.mxu0 %v791
  %1718 = vmatprep.subr.bf16.mxu0 %v794
  %1719 = vmatpush1.bf16.msra.mxu0 %v793
  %1720 = vmatprep.subr.bf16.mxu0 %v796
  %1721 = vmatpush1.bf16.msra.mxu0 %v795
  %1722 = vmatprep.subr.bf16.mxu0 %v798
  %1723 = vmatpush1.bf16.msra.mxu0 %v797
  %1724 = vmatprep.subr.bf16.mxu0 0
  %1725 = vmatpush1.bf16.msra.mxu0 0
  %1726 = vmatprep.subr.bf16.mxu0 0
  %1727 = vmatpush1.bf16.msra.mxu0 0
  %1728 = vmatprep.subr.bf16.mxu0 0
  %1729 = vmatpush1.bf16.msra.mxu0 0
  %1730 = vmatprep.subr.bf16.mxu0 0
  %1731 = vmatpush1.bf16.msra.mxu0 0
  %1732 = vmatprep.subr.bf16.mxu0 0
  %1733 = vmatpush1.bf16.msra.mxu0 0
  %1734 = vmatprep.subr.bf16.mxu0 0
  %1735 = vmatpush1.bf16.msra.mxu0 0
  %1736 = vmatprep.subr.bf16.mxu0 0
  %1737 = vmatpush1.bf16.msra.mxu0 0
  %1738 = vmatprep.subr.bf16.mxu0 0
  %1739 = vmatpush1.bf16.msra.mxu0 0
  %1740 = vmatprep.subr.bf16.mxu0 0
  %1741 = vmatpush1.bf16.msra.mxu0 0
  %1742 = vmatprep.subr.bf16.mxu0 0
  %1743 = vmatpush1.bf16.msra.mxu0 0
  %1744 = vmatprep.subr.bf16.mxu0 0
  %1745 = vmatpush1.bf16.msra.mxu0 0
  %1746 = vmatprep.subr.bf16.mxu0 0
  %1747 = vmatpush1.bf16.msra.mxu0 0
  %1748 = vmatprep.mubr.bf16.mxu0 0
  %1749 = vmatmul.mubr.bf16.gmra.mrb[0].mxu0 %v1648
  %v1750 = vpop.f32.mrb[0].mxu0
  %v1751 = vadd.f32 %v760, %v1750
  %v1752 = vpop.f32.mrb[0].mxu0
  %v1753 = vadd.f32 %v764, %v1752
  %v1754 = vpop.f32.mrb[0].mxu0
  %v1755 = vpop.f32.mrb[0].mxu0
  %1756 = vdwg.mxu0
  %v1757 = vpack.c.bf16 %v1526, %v1526
  %1759 = vrot.lane.b32.xlu0 %v1757, 64
  %v1760 = vpop.permute.xlu0 %1759
  %v1762 = vsel %vm132, %v1760, 0
  %1764 = vmatprep.subr.bf16.mxu0 %v1136
  %1765 = vmatpush1.bf16.msra.mxu0 %v1135
  %1766 = vmatprep.subr.bf16.mxu0 %v1138
  %1767 = vmatpush1.bf16.msra.mxu0 %v1137
  %1768 = vmatprep.subr.bf16.mxu0 %v1140
  %1769 = vmatpush1.bf16.msra.mxu0 %v1139
  %1770 = vmatprep.subr.bf16.mxu0 %v1142
  %1771 = vmatpush1.bf16.msra.mxu0 %v1141
  %1772 = vmatprep.subr.bf16.mxu0 0
  %1773 = vmatpush1.bf16.msra.mxu0 0
  %1774 = vmatprep.subr.bf16.mxu0 0
  %1775 = vmatpush1.bf16.msra.mxu0 0
  %1776 = vmatprep.subr.bf16.mxu0 0
  %1777 = vmatpush1.bf16.msra.mxu0 0
  %1778 = vmatprep.subr.bf16.mxu0 0
  %1779 = vmatpush1.bf16.msra.mxu0 0
  %1780 = vmatprep.subr.bf16.mxu0 0
  %1781 = vmatpush1.bf16.msra.mxu0 0
  %1782 = vmatprep.subr.bf16.mxu0 0
  %1783 = vmatpush1.bf16.msra.mxu0 0
  %1784 = vmatprep.subr.bf16.mxu0 0
  %1785 = vmatpush1.bf16.msra.mxu0 0
  %1786 = vmatprep.subr.bf16.mxu0 0
  %1787 = vmatpush1.bf16.msra.mxu0 0
  %1788 = vmatprep.subr.bf16.mxu0 0
  %1789 = vmatpush1.bf16.msra.mxu0 0
  %1790 = vmatprep.subr.bf16.mxu0 0
  %1791 = vmatpush1.bf16.msra.mxu0 0
  %1792 = vmatprep.subr.bf16.mxu0 0
  %1793 = vmatpush1.bf16.msra.mxu0 0
  %1794 = vmatprep.subr.bf16.mxu0 0
  %1795 = vmatpush1.bf16.msra.mxu0 0
  %1796 = vmatprep.mubr.bf16.mxu0 0
  %1797 = vmatmul.mubr.bf16.gmra.mrb[0].mxu0 %v1762
  %v1798 = vpop.f32.mrb[0].mxu0
  %v1799 = vadd.f32 0.0, %v1798
  %v1800 = vpop.f32.mrb[0].mxu0
  %v1801 = vadd.f32 0.0, %v1800
  %v1802 = vpop.f32.mrb[0].mxu0
  %v1803 = vpop.f32.mrb[0].mxu0
  %1804 = vdwg.mxu0
  %v1805 = vadd.f32 %v1751, %v1799
  %v1806 = vadd.f32 %v1753, %v1801
  %v1807 = vxor.u32 %v1805, 2147483648
  %v1808 = vxor.u32 %v1806, 2147483648
  %v1809 = vmul.f32 %v1807, 1.442695
  %v1810 = vpow.pop %v1809
  %v1811 = vmul.f32 %v1808, 1.442695
  %v1812 = vpow.pop %v1811
  %v1813 = vadd.f32 %v1810, 1.0
  %v1814 = vadd.f32 %v1812, 1.0
  %v1815 = vrcp.pop %v1813
  %v1816 = vmul.f32 1.0, %v1815
  %v1817 = vrcp.pop %v1814
  %v1818 = vmul.f32 1.0, %v1817
  %v1819 = vmul.f32 %v1818, 2.0
  %v1820 = vsub.f32 %v1819, 1.0
  %v1821 = vmul.f32 %v1816, %v1524
  %v1822 = vmul.f32 %v1816, %v1820
  %1824 = vrot.lane.b32.xlu0 %v1822, 64
  %v1825 = vpop.permute.xlu0 %1824
  %v1827 = vadd.f32 %v1821, %v1825
  %v1828 = vtanh.pop %v1827
  %v1829 = vmul.f32 %v1818, %v1828
  %v1830 = vld [vmem:[#allocation2 + $0x60] sm:$0xff]
  %v1831 = vld [vmem:[#allocation2 + $0x68] sm:$0xff]
  %v1832 = vpack.c.bf16 %v1601, %v1601
  %1834 = vrot.lane.b32.xlu0 %v1832, 64
  %v1835 = vpop.permute.xlu0 %1834
  %v1837 = vsel %vm132, %v1835, 0
  %1839 = vmatprep.subr.bf16.mxu0 %v296
  %1840 = vmatpush1.bf16.msra.mxu0 %v295
  %1841 = vmatprep.subr.bf16.mxu0 %v298
  %1842 = vmatpush1.bf16.msra.mxu0 %v297
  %1843 = vmatprep.subr.bf16.mxu0 %v300
  %1844 = vmatpush1.bf16.msra.mxu0 %v299
  %1845 = vmatprep.subr.bf16.mxu0 %v302
  %1846 = vmatpush1.bf16.msra.mxu0 %v301
  %1847 = vmatprep.subr.bf16.mxu0 0
  %1848 = vmatpush1.bf16.msra.mxu0 0
  %1849 = vmatprep.subr.bf16.mxu0 0
  %1850 = vmatpush1.bf16.msra.mxu0 0
  %1851 = vmatprep.subr.bf16.mxu0 0
  %1852 = vmatpush1.bf16.msra.mxu0 0
  %1853 = vmatprep.subr.bf16.mxu0 0
  %1854 = vmatpush1.bf16.msra.mxu0 0
  %1855 = vmatprep.subr.bf16.mxu0 0
  %1856 = vmatpush1.bf16.msra.mxu0 0
  %1857 = vmatprep.subr.bf16.mxu0 0
  %1858 = vmatpush1.bf16.msra.mxu0 0
  %1859 = vmatprep.subr.bf16.mxu0 0
  %1860 = vmatpush1.bf16.msra.mxu0 0
  %1861 = vmatprep.subr.bf16.mxu0 0
  %1862 = vmatpush1.bf16.msra.mxu0 0
  %1863 = vmatprep.subr.bf16.mxu0 0
  %1864 = vmatpush1.bf16.msra.mxu0 0
  %1865 = vmatprep.subr.bf16.mxu0 0
  %1866 = vmatpush1.bf16.msra.mxu0 0
  %1867 = vmatprep.subr.bf16.mxu0 0
  %1868 = vmatpush1.bf16.msra.mxu0 0
  %1869 = vmatprep.subr.bf16.mxu0 0
  %1870 = vmatpush1.bf16.msra.mxu0 0
  %1871 = vmatprep.mubr.bf16.mxu0 0
  %1872 = vmatmul.mubr.bf16.gmra.mrb[0].mxu0 %v1837
  %v1873 = vpop.f32.mrb[0].mxu0
  %v1874 = vadd.f32 0.0, %v1873
  %v1875 = vpop.f32.mrb[0].mxu0
  %v1876 = vadd.f32 0.0, %v1875
  %v1877 = vpop.f32.mrb[0].mxu0
  %v1878 = vpop.f32.mrb[0].mxu0
  %1879 = vdwg.mxu0
  %v1880 = vadd.f32 %v1830, %v1874
  %v1881 = vadd.f32 %v1831, %v1876
  %v1882 = vxor.u32 %v1880, 2147483648
  %v1883 = vxor.u32 %v1881, 2147483648
  %v1884 = vmul.f32 %v1882, 1.442695
  %v1885 = vpow.pop %v1884
  %v1886 = vmul.f32 %v1883, 1.442695
  %v1887 = vpow.pop %v1886
  %v1888 = vadd.f32 %v1885, 1.0
  %v1889 = vadd.f32 %v1887, 1.0
  %v1890 = vrcp.pop %v1888
  %v1891 = vmul.f32 1.0, %v1890
  %v1892 = vrcp.pop %v1889
  %v1893 = vmul.f32 1.0, %v1892
  %v1894 = vmul.f32 %v1893, 2.0
  %v1895 = vsub.f32 %v1894, 1.0
  %v1896 = vmul.f32 %v1891, %v1599
  %v1897 = vmul.f32 %v1891, %v1895
  %1899 = vrot.lane.b32.xlu0 %v1897, 64
  %v1900 = vpop.permute.xlu0 %1899
  %v1902 = vadd.f32 %v1896, %v1900
  %v1903 = vtanh.pop %v1902
  %v1904 = vmul.f32 %v1893, %v1903
  %1905 = vmatprep.subr.bf16.mxu0 %v429
  %1906 = vmatpush1.bf16.msra.mxu0 %v428
  %1907 = vmatprep.subr.bf16.mxu0 %v431
  %1908 = vmatpush1.bf16.msra.mxu0 %v430
  %1909 = vmatprep.subr.bf16.mxu0 %v433
  %1910 = vmatpush1.bf16.msra.mxu0 %v432
  %1911 = vmatprep.subr.bf16.mxu0 %v435
  %1912 = vmatpush1.bf16.msra.mxu0 %v434
  %1913 = vmatprep.subr.bf16.mxu0 0
  %1914 = vmatpush1.bf16.msra.mxu0 0
  %1915 = vmatprep.subr.bf16.mxu0 0
  %1916 = vmatpush1.bf16.msra.mxu0 0
  %1917 = vmatprep.subr.bf16.mxu0 0
  %1918 = vmatpush1.bf16.msra.mxu0 0
  %1919 = vmatprep.subr.bf16.mxu0 0
  %1920 = vmatpush1.bf16.msra.mxu0 0
  %1921 = vmatprep.subr.bf16.mxu0 0
  %1922 = vmatpush1.bf16.msra.mxu0 0
  %1923 = vmatprep.subr.bf16.mxu0 0
  %1924 = vmatpush1.bf16.msra.mxu0 0
  %1925 = vmatprep.subr.bf16.mxu0 0
  %1926 = vmatpush1.bf16.msra.mxu0 0
  %1927 = vmatprep.subr.bf16.mxu0 0
  %1928 = vmatpush1.bf16.msra.mxu0 0
  %1929 = vmatprep.subr.bf16.mxu0 0
  %1930 = vmatpush1.bf16.msra.mxu0 0
  %1931 = vmatprep.subr.bf16.mxu0 0
  %1932 = vmatpush1.bf16.msra.mxu0 0
  %1933 = vmatprep.subr.bf16.mxu0 0
  %1934 = vmatpush1.bf16.msra.mxu0 0
  %1935 = vmatprep.subr.bf16.mxu0 0
  %1936 = vmatpush1.bf16.msra.mxu0 0
  %1937 = vmatprep.mubr.bf16.mxu0 0
  %1938 = vmatmul.mubr.bf16.gmra.mrb[0].mxu0 %v1837
  %v1939 = vpop.f32.mrb[0].mxu0
  %v1940 = vadd.f32 %v397, %v1939
  %v1941 = vpop.f32.mrb[0].mxu0
  %v1942 = vadd.f32 %v401, %v1941
  %v1943 = vpop.f32.mrb[0].mxu0
  %v1944 = vpop.f32.mrb[0].mxu0
  %1945 = vdwg.mxu0
  %v1946 = vpack.c.bf16 %v1715, %v1715
  %1948 = vrot.lane.b32.xlu0 %v1946, 64
  %v1949 = vpop.permute.xlu0 %1948
  %v1951 = vsel %vm132, %v1949, 0
  %1953 = vmatprep.subr.bf16.mxu0 %v659
  %1954 = vmatpush1.bf16.msra.mxu0 %v658
  %1955 = vmatprep.subr.bf16.mxu0 %v661
  %1956 = vmatpush1.bf16.msra.mxu0 %v660
  %1957 = vmatprep.subr.bf16.mxu0 %v663
  %1958 = vmatpush1.bf16.msra.mxu0 %v662
  %1959 = vmatprep.subr.bf16.mxu0 %v665
  %1960 = vmatpush1.bf16.msra.mxu0 %v664
  %1961 = vmatprep.subr.bf16.mxu0 0
  %1962 = vmatpush1.bf16.msra.mxu0 0
  %1963 = vmatprep.subr.bf16.mxu0 0
  %1964 = vmatpush1.bf16.msra.mxu0 0
  %1965 = vmatprep.subr.bf16.mxu0 0
  %1966 = vmatpush1.bf16.msra.mxu0 0
  %1967 = vmatprep.subr.bf16.mxu0 0
  %1968 = vmatpush1.bf16.msra.mxu0 0
  %1969 = vmatprep.subr.bf16.mxu0 0
  %1970 = vmatpush1.bf16.msra.mxu0 0
  %1971 = vmatprep.subr.bf16.mxu0 0
  %1972 = vmatpush1.bf16.msra.mxu0 0
  %1973 = vmatprep.subr.bf16.mxu0 0
  %1974 = vmatpush1.bf16.msra.mxu0 0
  %1975 = vmatprep.subr.bf16.mxu0 0
  %1976 = vmatpush1.bf16.msra.mxu0 0
  %1977 = vmatprep.subr.bf16.mxu0 0
  %1978 = vmatpush1.bf16.msra.mxu0 0
  %1979 = vmatprep.subr.bf16.mxu0 0
  %1980 = vmatpush1.bf16.msra.mxu0 0
  %1981 = vmatprep.subr.bf16.mxu0 0
  %1982 = vmatpush1.bf16.msra.mxu0 0
  %1983 = vmatprep.subr.bf16.mxu0 0
  %1984 = vmatpush1.bf16.msra.mxu0 0
  %1985 = vmatprep.mubr.bf16.mxu0 0
  %1986 = vmatmul.mubr.bf16.gmra.mrb[0].mxu0 %v1951
  %v1987 = vpop.f32.mrb[0].mxu0
  %v1988 = vadd.f32 0.0, %v1987
  %v1989 = vpop.f32.mrb[0].mxu0
  %v1990 = vadd.f32 0.0, %v1989
  %v1991 = vpop.f32.mrb[0].mxu0
  %v1992 = vpop.f32.mrb[0].mxu0
  %1993 = vdwg.mxu0
  %v1994 = vadd.f32 %v1940, %v1988
  %v1995 = vadd.f32 %v1942, %v1990
  %v1996 = vxor.u32 %v1994, 2147483648
  %v1997 = vxor.u32 %v1995, 2147483648
  %v1998 = vmul.f32 %v1996, 1.442695
  %v1999 = vpow.pop %v1998
  %v2000 = vmul.f32 %v1997, 1.442695
  %v2001 = vpow.pop %v2000
  %v2002 = vadd.f32 %v1999, 1.0
  %v2003 = vadd.f32 %v2001, 1.0
  %v2004 = vrcp.pop %v2002
  %v2005 = vmul.f32 1.0, %v2004
  %v2006 = vrcp.pop %v2003
  %v2007 = vmul.f32 1.0, %v2006
  %v2008 = vmul.f32 %v2007, 2.0
  %v2009 = vsub.f32 %v2008, 1.0
  %v2010 = vmul.f32 %v2005, %v1713
  %v2011 = vmul.f32 %v2005, %v2009
  %2013 = vrot.lane.b32.xlu0 %v2011, 64
  %v2014 = vpop.permute.xlu0 %2013
  %v2016 = vadd.f32 %v2010, %v2014
  %v2017 = vtanh.pop %v2016
  %v2018 = vmul.f32 %v2007, %v2017
  %2019 = vmatprep.subr.bf16.mxu0 %v792
  %2020 = vmatpush1.bf16.msra.mxu0 %v791
  %2021 = vmatprep.subr.bf16.mxu0 %v794
  %2022 = vmatpush1.bf16.msra.mxu0 %v793
  %2023 = vmatprep.subr.bf16.mxu0 %v796
  %2024 = vmatpush1.bf16.msra.mxu0 %v795
  %2025 = vmatprep.subr.bf16.mxu0 %v798
  %2026 = vmatpush1.bf16.msra.mxu0 %v797
  %2027 = vmatprep.subr.bf16.mxu0 0
  %2028 = vmatpush1.bf16.msra.mxu0 0
  %2029 = vmatprep.subr.bf16.mxu0 0
  %2030 = vmatpush1.bf16.msra.mxu0 0
  %2031 = vmatprep.subr.bf16.mxu0 0
  %2032 = vmatpush1.bf16.msra.mxu0 0
  %2033 = vmatprep.subr.bf16.mxu0 0
  %2034 = vmatpush1.bf16.msra.mxu0 0
  %2035 = vmatprep.subr.bf16.mxu0 0
  %2036 = vmatpush1.bf16.msra.mxu0 0
  %2037 = vmatprep.subr.bf16.mxu0 0
  %2038 = vmatpush1.bf16.msra.mxu0 0
  %2039 = vmatprep.subr.bf16.mxu0 0
  %2040 = vmatpush1.bf16.msra.mxu0 0
  %2041 = vmatprep.subr.bf16.mxu0 0
  %2042 = vmatpush1.bf16.msra.mxu0 0
  %2043 = vmatprep.subr.bf16.mxu0 0
  %2044 = vmatpush1.bf16.msra.mxu0 0
  %2045 = vmatprep.subr.bf16.mxu0 0
  %2046 = vmatpush1.bf16.msra.mxu0 0
  %2047 = vmatprep.subr.bf16.mxu0 0
  %2048 = vmatpush1.bf16.msra.mxu0 0
  %2049 = vmatprep.subr.bf16.mxu0 0
  %2050 = vmatpush1.bf16.msra.mxu0 0
  %2051 = vmatprep.mubr.bf16.mxu0 0
  %2052 = vmatmul.mubr.bf16.gmra.mrb[0].mxu0 %v1951
  %v2053 = vpop.f32.mrb[0].mxu0
  %v2054 = vadd.f32 %v760, %v2053
  %v2055 = vpop.f32.mrb[0].mxu0
  %v2056 = vadd.f32 %v764, %v2055
  %v2057 = vpop.f32.mrb[0].mxu0
  %v2058 = vpop.f32.mrb[0].mxu0
  %2059 = vdwg.mxu0
  %v2060 = vpack.c.bf16 %v1829, %v1829
  %2062 = vrot.lane.b32.xlu0 %v2060, 64
  %v2063 = vpop.permute.xlu0 %2062
  %v2065 = vsel %vm132, %v2063, 0
  %2067 = vmatprep.subr.bf16.mxu0 %v1136
  %2068 = vmatpush1.bf16.msra.mxu0 %v1135
  %2069 = vmatprep.subr.bf16.mxu0 %v1138
  %2070 = vmatpush1.bf16.msra.mxu0 %v1137
  %2071 = vmatprep.subr.bf16.mxu0 %v1140
  %2072 = vmatpush1.bf16.msra.mxu0 %v1139
  %2073 = vmatprep.subr.bf16.mxu0 %v1142
  %2074 = vmatpush1.bf16.msra.mxu0 %v1141
  %2075 = vmatprep.subr.bf16.mxu0 0
  %2076 = vmatpush1.bf16.msra.mxu0 0
  %2077 = vmatprep.subr.bf16.mxu0 0
  %2078 = vmatpush1.bf16.msra.mxu0 0
  %2079 = vmatprep.subr.bf16.mxu0 0
  %2080 = vmatpush1.bf16.msra.mxu0 0
  %2081 = vmatprep.subr.bf16.mxu0 0
  %2082 = vmatpush1.bf16.msra.mxu0 0
  %2083 = vmatprep.subr.bf16.mxu0 0
  %2084 = vmatpush1.bf16.msra.mxu0 0
  %2085 = vmatprep.subr.bf16.mxu0 0
  %2086 = vmatpush1.bf16.msra.mxu0 0
  %2087 = vmatprep.subr.bf16.mxu0 0
  %2088 = vmatpush1.bf16.msra.mxu0 0
  %2089 = vmatprep.subr.bf16.mxu0 0
  %2090 = vmatpush1.bf16.msra.mxu0 0
  %2091 = vmatprep.subr.bf16.mxu0 0
  %2092 = vmatpush1.bf16.msra.mxu0 0
  %2093 = vmatprep.subr.bf16.mxu0 0
  %2094 = vmatpush1.bf16.msra.mxu0 0
  %2095 = vmatprep.subr.bf16.mxu0 0
  %2096 = vmatpush1.bf16.msra.mxu0 0
  %2097 = vmatprep.subr.bf16.mxu0 0
  %2098 = vmatpush1.bf16.msra.mxu0 0
  %2099 = vmatprep.mubr.bf16.mxu0 0
  %2100 = vmatmul.mubr.bf16.gmra.mrb[0].mxu0 %v2065
  %v2101 = vpop.f32.mrb[0].mxu0
  %v2102 = vadd.f32 0.0, %v2101
  %v2103 = vpop.f32.mrb[0].mxu0
  %v2104 = vadd.f32 0.0, %v2103
  %v2105 = vpop.f32.mrb[0].mxu0
  %v2106 = vpop.f32.mrb[0].mxu0
  %2107 = vdwg.mxu0
  %v2108 = vadd.f32 %v2054, %v2102
  %v2109 = vadd.f32 %v2056, %v2104
  %v2110 = vxor.u32 %v2108, 2147483648
  %v2111 = vxor.u32 %v2109, 2147483648
  %v2112 = vmul.f32 %v2110, 1.442695
  %v2113 = vpow.pop %v2112
  %v2114 = vmul.f32 %v2111, 1.442695
  %v2115 = vpow.pop %v2114
  %v2116 = vadd.f32 %v2113, 1.0
  %v2117 = vadd.f32 %v2115, 1.0
  %v2118 = vrcp.pop %v2116
  %v2119 = vmul.f32 1.0, %v2118
  %v2120 = vrcp.pop %v2117
  %v2121 = vmul.f32 1.0, %v2120
  %v2122 = vmul.f32 %v2121, 2.0
  %v2123 = vsub.f32 %v2122, 1.0
  %v2124 = vmul.f32 %v2119, %v1827
  %v2125 = vmul.f32 %v2119, %v2123
  %2127 = vrot.lane.b32.xlu0 %v2125, 64
  %v2128 = vpop.permute.xlu0 %2127
  %v2130 = vadd.f32 %v2124, %v2128
  %v2131 = vtanh.pop %v2130
  %v2132 = vmul.f32 %v2121, %v2131
  %v2133 = vld [vmem:[#allocation2 + $0x70] sm:$0xff]
  %v2134 = vld [vmem:[#allocation2 + $0x78] sm:$0xff]
  %v2135 = vpack.c.bf16 %v1904, %v1904
  %2137 = vrot.lane.b32.xlu0 %v2135, 64
  %v2138 = vpop.permute.xlu0 %2137
  %v2140 = vsel %vm132, %v2138, 0
  %2142 = vmatprep.subr.bf16.mxu0 %v296
  %2143 = vmatpush1.bf16.msra.mxu0 %v295
  %2144 = vmatprep.subr.bf16.mxu0 %v298
  %2145 = vmatpush1.bf16.msra.mxu0 %v297
  %2146 = vmatprep.subr.bf16.mxu0 %v300
  %2147 = vmatpush1.bf16.msra.mxu0 %v299
  %2148 = vmatprep.subr.bf16.mxu0 %v302
  %2149 = vmatpush1.bf16.msra.mxu0 %v301
  %2150 = vmatprep.subr.bf16.mxu0 0
  %2151 = vmatpush1.bf16.msra.mxu0 0
  %2152 = vmatprep.subr.bf16.mxu0 0
  %2153 = vmatpush1.bf16.msra.mxu0 0
  %2154 = vmatprep.subr.bf16.mxu0 0
  %2155 = vmatpush1.bf16.msra.mxu0 0
  %2156 = vmatprep.subr.bf16.mxu0 0
  %2157 = vmatpush1.bf16.msra.mxu0 0
  %2158 = vmatprep.subr.bf16.mxu0 0
  %2159 = vmatpush1.bf16.msra.mxu0 0
  %2160 = vmatprep.subr.bf16.mxu0 0
  %2161 = vmatpush1.bf16.msra.mxu0 0
  %2162 = vmatprep.subr.bf16.mxu0 0
  %2163 = vmatpush1.bf16.msra.mxu0 0
  %2164 = vmatprep.subr.bf16.mxu0 0
  %2165 = vmatpush1.bf16.msra.mxu0 0
  %2166 = vmatprep.subr.bf16.mxu0 0
  %2167 = vmatpush1.bf16.msra.mxu0 0
  %2168 = vmatprep.subr.bf16.mxu0 0
  %2169 = vmatpush1.bf16.msra.mxu0 0
  %2170 = vmatprep.subr.bf16.mxu0 0
  %2171 = vmatpush1.bf16.msra.mxu0 0
  %2172 = vmatprep.subr.bf16.mxu0 0
  %2173 = vmatpush1.bf16.msra.mxu0 0
  %2174 = vmatprep.mubr.bf16.mxu0 0
  %2175 = vmatmul.mubr.bf16.gmra.mrb[0].mxu0 %v2140
  %v2176 = vpop.f32.mrb[0].mxu0
  %v2177 = vadd.f32 0.0, %v2176
  %v2178 = vpop.f32.mrb[0].mxu0
  %v2179 = vadd.f32 0.0, %v2178
  %v2180 = vpop.f32.mrb[0].mxu0
  %v2181 = vpop.f32.mrb[0].mxu0
  %2182 = vdwg.mxu0
  %v2183 = vadd.f32 %v2133, %v2177
  %v2184 = vadd.f32 %v2134, %v2179
  %v2185 = vxor.u32 %v2183, 2147483648
  %v2186 = vxor.u32 %v2184, 2147483648
  %v2187 = vmul.f32 %v2185, 1.442695
  %v2188 = vpow.pop %v2187
  %v2189 = vmul.f32 %v2186, 1.442695
  %v2190 = vpow.pop %v2189
  %v2191 = vadd.f32 %v2188, 1.0
  %v2192 = vadd.f32 %v2190, 1.0
  %v2193 = vrcp.pop %v2191
  %v2194 = vmul.f32 1.0, %v2193
  %v2195 = vrcp.pop %v2192
  %v2196 = vmul.f32 1.0, %v2195
  %v2197 = vmul.f32 %v2196, 2.0
  %v2198 = vsub.f32 %v2197, 1.0
  %v2199 = vmul.f32 %v2194, %v1902
  %v2200 = vmul.f32 %v2194, %v2198
  %2202 = vrot.lane.b32.xlu0 %v2200, 64
  %v2203 = vpop.permute.xlu0 %2202
  %v2205 = vadd.f32 %v2199, %v2203
  %v2206 = vtanh.pop %v2205
  %v2207 = vmul.f32 %v2196, %v2206
  %2208 = vmatprep.subr.bf16.mxu0 %v429
  %2209 = vmatpush1.bf16.msra.mxu0 %v428
  %2210 = vmatprep.subr.bf16.mxu0 %v431
  %2211 = vmatpush1.bf16.msra.mxu0 %v430
  %2212 = vmatprep.subr.bf16.mxu0 %v433
  %2213 = vmatpush1.bf16.msra.mxu0 %v432
  %2214 = vmatprep.subr.bf16.mxu0 %v435
  %2215 = vmatpush1.bf16.msra.mxu0 %v434
  %2216 = vmatprep.subr.bf16.mxu0 0
  %2217 = vmatpush1.bf16.msra.mxu0 0
  %2218 = vmatprep.subr.bf16.mxu0 0
  %2219 = vmatpush1.bf16.msra.mxu0 0
  %2220 = vmatprep.subr.bf16.mxu0 0
  %2221 = vmatpush1.bf16.msra.mxu0 0
  %2222 = vmatprep.subr.bf16.mxu0 0
  %2223 = vmatpush1.bf16.msra.mxu0 0
  %2224 = vmatprep.subr.bf16.mxu0 0
  %2225 = vmatpush1.bf16.msra.mxu0 0
  %2226 = vmatprep.subr.bf16.mxu0 0
  %2227 = vmatpush1.bf16.msra.mxu0 0
  %2228 = vmatprep.subr.bf16.mxu0 0
  %2229 = vmatpush1.bf16.msra.mxu0 0
  %2230 = vmatprep.subr.bf16.mxu0 0
  %2231 = vmatpush1.bf16.msra.mxu0 0
  %2232 = vmatprep.subr.bf16.mxu0 0
  %2233 = vmatpush1.bf16.msra.mxu0 0
  %2234 = vmatprep.subr.bf16.mxu0 0
  %2235 = vmatpush1.bf16.msra.mxu0 0
  %2236 = vmatprep.subr.bf16.mxu0 0
  %2237 = vmatpush1.bf16.msra.mxu0 0
  %2238 = vmatprep.subr.bf16.mxu0 0
  %2239 = vmatpush1.bf16.msra.mxu0 0
  %2240 = vmatprep.mubr.bf16.mxu0 0
  %2241 = vmatmul.mubr.bf16.gmra.mrb[0].mxu0 %v2140
  %v2242 = vpop.f32.mrb[0].mxu0
  %v2243 = vadd.f32 %v397, %v2242
  %v2244 = vpop.f32.mrb[0].mxu0
  %v2245 = vadd.f32 %v401, %v2244
  %v2246 = vpop.f32.mrb[0].mxu0
  %v2247 = vpop.f32.mrb[0].mxu0
  %2248 = vdwg.mxu0
  %v2249 = vpack.c.bf16 %v2018, %v2018
  %2251 = vrot.lane.b32.xlu0 %v2249, 64
  %v2252 = vpop.permute.xlu0 %2251
  %v2254 = vsel %vm132, %v2252, 0
  %2256 = vmatprep.subr.bf16.mxu0 %v659
  %2257 = vmatpush1.bf16.msra.mxu0 %v658
  %2258 = vmatprep.subr.bf16.mxu0 %v661
  %2259 = vmatpush1.bf16.msra.mxu0 %v660
  %2260 = vmatprep.subr.bf16.mxu0 %v663
  %2261 = vmatpush1.bf16.msra.mxu0 %v662
  %2262 = vmatprep.subr.bf16.mxu0 %v665
  %2263 = vmatpush1.bf16.msra.mxu0 %v664
  %2264 = vmatprep.subr.bf16.mxu0 0
  %2265 = vmatpush1.bf16.msra.mxu0 0
  %2266 = vmatprep.subr.bf16.mxu0 0
  %2267 = vmatpush1.bf16.msra.mxu0 0
  %2268 = vmatprep.subr.bf16.mxu0 0
  %2269 = vmatpush1.bf16.msra.mxu0 0
  %2270 = vmatprep.subr.bf16.mxu0 0
  %2271 = vmatpush1.bf16.msra.mxu0 0
  %2272 = vmatprep.subr.bf16.mxu0 0
  %2273 = vmatpush1.bf16.msra.mxu0 0
  %2274 = vmatprep.subr.bf16.mxu0 0
  %2275 = vmatpush1.bf16.msra.mxu0 0
  %2276 = vmatprep.subr.bf16.mxu0 0
  %2277 = vmatpush1.bf16.msra.mxu0 0
  %2278 = vmatprep.subr.bf16.mxu0 0
  %2279 = vmatpush1.bf16.msra.mxu0 0
  %2280 = vmatprep.subr.bf16.mxu0 0
  %2281 = vmatpush1.bf16.msra.mxu0 0
  %2282 = vmatprep.subr.bf16.mxu0 0
  %2283 = vmatpush1.bf16.msra.mxu0 0
  %2284 = vmatprep.subr.bf16.mxu0 0
  %2285 = vmatpush1.bf16.msra.mxu0 0
  %2286 = vmatprep.subr.bf16.mxu0 0
  %2287 = vmatpush1.bf16.msra.mxu0 0
  %2288 = vmatprep.mubr.bf16.mxu0 0
  %2289 = vmatmul.mubr.bf16.gmra.mrb[0].mxu0 %v2254
  %v2290 = vpop.f32.mrb[0].mxu0
  %v2291 = vadd.f32 0.0, %v2290
  %v2292 = vpop.f32.mrb[0].mxu0
  %v2293 = vadd.f32 0.0, %v2292
  %v2294 = vpop.f32.mrb[0].mxu0
  %v2295 = vpop.f32.mrb[0].mxu0
  %2296 = vdwg.mxu0
  %v2297 = vadd.f32 %v2243, %v2291
  %v2298 = vadd.f32 %v2245, %v2293
  %v2299 = vxor.u32 %v2297, 2147483648
  %v2300 = vxor.u32 %v2298, 2147483648
  %v2301 = vmul.f32 %v2299, 1.442695
  %v2302 = vpow.pop %v2301
  %v2303 = vmul.f32 %v2300, 1.442695
  %v2304 = vpow.pop %v2303
  %v2305 = vadd.f32 %v2302, 1.0
  %v2306 = vadd.f32 %v2304, 1.0
  %v2307 = vrcp.pop %v2305
  %v2308 = vmul.f32 1.0, %v2307
  %v2309 = vrcp.pop %v2306
  %v2310 = vmul.f32 1.0, %v2309
  %v2311 = vmul.f32 %v2310, 2.0
  %v2312 = vsub.f32 %v2311, 1.0
  %v2313 = vmul.f32 %v2308, %v2016
  %v2314 = vmul.f32 %v2308, %v2312
  %2316 = vrot.lane.b32.xlu0 %v2314, 64
  %v2317 = vpop.permute.xlu0 %2316
  %v2319 = vadd.f32 %v2313, %v2317
  %v2320 = vtanh.pop %v2319
  %v2321 = vmul.f32 %v2310, %v2320
  %2322 = vmatprep.subr.bf16.mxu0 %v792
  %2323 = vmatpush1.bf16.msra.mxu0 %v791
  %2324 = vmatprep.subr.bf16.mxu0 %v794
  %2325 = vmatpush1.bf16.msra.mxu0 %v793
  %2326 = vmatprep.subr.bf16.mxu0 %v796
  %2327 = vmatpush1.bf16.msra.mxu0 %v795
  %2328 = vmatprep.subr.bf16.mxu0 %v798
  %2329 = vmatpush1.bf16.msra.mxu0 %v797
  %2330 = vmatprep.subr.bf16.mxu0 0
  %2331 = vmatpush1.bf16.msra.mxu0 0
  %2332 = vmatprep.subr.bf16.mxu0 0
  %2333 = vmatpush1.bf16.msra.mxu0 0
  %2334 = vmatprep.subr.bf16.mxu0 0
  %2335 = vmatpush1.bf16.msra.mxu0 0
  %2336 = vmatprep.subr.bf16.mxu0 0
  %2337 = vmatpush1.bf16.msra.mxu0 0
  %2338 = vmatprep.subr.bf16.mxu0 0
  %2339 = vmatpush1.bf16.msra.mxu0 0
  %2340 = vmatprep.subr.bf16.mxu0 0
  %2341 = vmatpush1.bf16.msra.mxu0 0
  %2342 = vmatprep.subr.bf16.mxu0 0
  %2343 = vmatpush1.bf16.msra.mxu0 0
  %2344 = vmatprep.subr.bf16.mxu0 0
  %2345 = vmatpush1.bf16.msra.mxu0 0
  %2346 = vmatprep.subr.bf16.mxu0 0
  %2347 = vmatpush1.bf16.msra.mxu0 0
  %2348 = vmatprep.subr.bf16.mxu0 0
  %2349 = vmatpush1.bf16.msra.mxu0 0
  %2350 = vmatprep.subr.bf16.mxu0 0
  %2351 = vmatpush1.bf16.msra.mxu0 0
  %2352 = vmatprep.subr.bf16.mxu0 0
  %2353 = vmatpush1.bf16.msra.mxu0 0
  %2354 = vmatprep.mubr.bf16.mxu0 0
  %2355 = vmatmul.mubr.bf16.gmra.mrb[0].mxu0 %v2254
  %v2356 = vpop.f32.mrb[0].mxu0
  %v2357 = vadd.f32 %v760, %v2356
  %v2358 = vpop.f32.mrb[0].mxu0
  %v2359 = vadd.f32 %v764, %v2358
  %v2360 = vpop.f32.mrb[0].mxu0
  %v2361 = vpop.f32.mrb[0].mxu0
  %2362 = vdwg.mxu0
  %v2363 = vpack.c.bf16 %v2132, %v2132
  %2365 = vrot.lane.b32.xlu0 %v2363, 64
  %v2366 = vpop.permute.xlu0 %2365
  %v2368 = vsel %vm132, %v2366, 0
  %2370 = vmatprep.subr.bf16.mxu0 %v1136
  %2371 = vmatpush1.bf16.msra.mxu0 %v1135
  %2372 = vmatprep.subr.bf16.mxu0 %v1138
  %2373 = vmatpush1.bf16.msra.mxu0 %v1137
  %2374 = vmatprep.subr.bf16.mxu0 %v1140
  %2375 = vmatpush1.bf16.msra.mxu0 %v1139
  %2376 = vmatprep.subr.bf16.mxu0 %v1142
  %2377 = vmatpush1.bf16.msra.mxu0 %v1141
  %2378 = vmatprep.subr.bf16.mxu0 0
  %2379 = vmatpush1.bf16.msra.mxu0 0
  %2380 = vmatprep.subr.bf16.mxu0 0
  %2381 = vmatpush1.bf16.msra.mxu0 0
  %2382 = vmatprep.subr.bf16.mxu0 0
  %2383 = vmatpush1.bf16.msra.mxu0 0
  %2384 = vmatprep.subr.bf16.mxu0 0
  %2385 = vmatpush1.bf16.msra.mxu0 0
  %2386 = vmatprep.subr.bf16.mxu0 0
  %2387 = vmatpush1.bf16.msra.mxu0 0
  %2388 = vmatprep.subr.bf16.mxu0 0
  %2389 = vmatpush1.bf16.msra.mxu0 0
  %2390 = vmatprep.subr.bf16.mxu0 0
  %2391 = vmatpush1.bf16.msra.mxu0 0
  %2392 = vmatprep.subr.bf16.mxu0 0
  %2393 = vmatpush1.bf16.msra.mxu0 0
  %2394 = vmatprep.subr.bf16.mxu0 0
  %2395 = vmatpush1.bf16.msra.mxu0 0
  %2396 = vmatprep.subr.bf16.mxu0 0
  %2397 = vmatpush1.bf16.msra.mxu0 0
  %2398 = vmatprep.subr.bf16.mxu0 0
  %2399 = vmatpush1.bf16.msra.mxu0 0
  %2400 = vmatprep.subr.bf16.mxu0 0
  %2401 = vmatpush1.bf16.msra.mxu0 0
  %2402 = vmatprep.mubr.bf16.mxu0 0
  %2403 = vmatmul.mubr.bf16.gmra.mrb[0].mxu0 %v2368
  %v2404 = vpop.f32.mrb[0].mxu0
  %v2405 = vadd.f32 0.0, %v2404
  %v2406 = vpop.f32.mrb[0].mxu0
  %v2407 = vadd.f32 0.0, %v2406
  %v2408 = vpop.f32.mrb[0].mxu0
  %v2409 = vpop.f32.mrb[0].mxu0
  %2410 = vdwg.mxu0
  %v2411 = vadd.f32 %v2357, %v2405
  %v2412 = vadd.f32 %v2359, %v2407
  %v2413 = vxor.u32 %v2411, 2147483648
  %v2414 = vxor.u32 %v2412, 2147483648
  %v2415 = vmul.f32 %v2413, 1.442695
  %v2416 = vpow.pop %v2415
  %v2417 = vmul.f32 %v2414, 1.442695
  %v2418 = vpow.pop %v2417
  %v2419 = vadd.f32 %v2416, 1.0
  %v2420 = vadd.f32 %v2418, 1.0
  %v2421 = vrcp.pop %v2419
  %v2422 = vmul.f32 1.0, %v2421
  %v2423 = vrcp.pop %v2420
  %v2424 = vmul.f32 1.0, %v2423
  %v2425 = vmul.f32 %v2424, 2.0
  %v2426 = vsub.f32 %v2425, 1.0
  %v2427 = vmul.f32 %v2422, %v2130
  %v2428 = vmul.f32 %v2422, %v2426
  %2430 = vrot.lane.b32.xlu0 %v2428, 64
  %v2431 = vpop.permute.xlu0 %2430
  %v2433 = vadd.f32 %v2427, %v2431
  %v2434 = vtanh.pop %v2433
  %v2435 = vmul.f32 %v2424, %v2434
  %v2436 = vpack.c.bf16 %v2207, %v2207
  %2438 = vrot.lane.b32.xlu0 %v2436, 64
  %v2439 = vpop.permute.xlu0 %2438
  %v2441 = vsel %vm132, %v2439, 0
  %2443 = vmatprep.subr.bf16.mxu0 %v429
  %2444 = vmatpush1.bf16.msra.mxu0 %v428
  %2445 = vmatprep.subr.bf16.mxu0 %v431
  %2446 = vmatpush1.bf16.msra.mxu0 %v430
  %2447 = vmatprep.subr.bf16.mxu0 %v433
  %2448 = vmatpush1.bf16.msra.mxu0 %v432
  %2449 = vmatprep.subr.bf16.mxu0 %v435
  %2450 = vmatpush1.bf16.msra.mxu0 %v434
  %2451 = vmatprep.subr.bf16.mxu0 0
  %2452 = vmatpush1.bf16.msra.mxu0 0
  %2453 = vmatprep.subr.bf16.mxu0 0
  %2454 = vmatpush1.bf16.msra.mxu0 0
  %2455 = vmatprep.subr.bf16.mxu0 0
  %2456 = vmatpush1.bf16.msra.mxu0 0
  %2457 = vmatprep.subr.bf16.mxu0 0
  %2458 = vmatpush1.bf16.msra.mxu0 0
  %2459 = vmatprep.subr.bf16.mxu0 0
  %2460 = vmatpush1.bf16.msra.mxu0 0
  %2461 = vmatprep.subr.bf16.mxu0 0
  %2462 = vmatpush1.bf16.msra.mxu0 0
  %2463 = vmatprep.subr.bf16.mxu0 0
  %2464 = vmatpush1.bf16.msra.mxu0 0
  %2465 = vmatprep.subr.bf16.mxu0 0
  %2466 = vmatpush1.bf16.msra.mxu0 0
  %2467 = vmatprep.subr.bf16.mxu0 0
  %2468 = vmatpush1.bf16.msra.mxu0 0
  %2469 = vmatprep.subr.bf16.mxu0 0
  %2470 = vmatpush1.bf16.msra.mxu0 0
  %2471 = vmatprep.subr.bf16.mxu0 0
  %2472 = vmatpush1.bf16.msra.mxu0 0
  %2473 = vmatprep.subr.bf16.mxu0 0
  %2474 = vmatpush1.bf16.msra.mxu0 0
  %2475 = vmatprep.mubr.bf16.mxu0 0
  %2476 = vmatmul.mubr.bf16.gmra.mrb[0].mxu0 %v2441
  %v2477 = vpop.f32.mrb[0].mxu0
  %v2478 = vadd.f32 %v397, %v2477
  %v2479 = vpop.f32.mrb[0].mxu0
  %v2480 = vadd.f32 %v401, %v2479
  %v2481 = vpop.f32.mrb[0].mxu0
  %v2482 = vpop.f32.mrb[0].mxu0
  %2483 = vdwg.mxu0
  %v2484 = vpack.c.bf16 %v2321, %v2321
  %2486 = vrot.lane.b32.xlu0 %v2484, 64
  %v2487 = vpop.permute.xlu0 %2486
  %v2489 = vsel %vm132, %v2487, 0
  %2491 = vmatprep.subr.bf16.mxu0 %v659
  %2492 = vmatpush1.bf16.msra.mxu0 %v658
  %2493 = vmatprep.subr.bf16.mxu0 %v661
  %2494 = vmatpush1.bf16.msra.mxu0 %v660
  %2495 = vmatprep.subr.bf16.mxu0 %v663
  %2496 = vmatpush1.bf16.msra.mxu0 %v662
  %2497 = vmatprep.subr.bf16.mxu0 %v665
  %2498 = vmatpush1.bf16.msra.mxu0 %v664
  %2499 = vmatprep.subr.bf16.mxu0 0
  %2500 = vmatpush1.bf16.msra.mxu0 0
  %2501 = vmatprep.subr.bf16.mxu0 0
  %2502 = vmatpush1.bf16.msra.mxu0 0
  %2503 = vmatprep.subr.bf16.mxu0 0
  %2504 = vmatpush1.bf16.msra.mxu0 0
  %2505 = vmatprep.subr.bf16.mxu0 0
  %2506 = vmatpush1.bf16.msra.mxu0 0
  %2507 = vmatprep.subr.bf16.mxu0 0
  %2508 = vmatpush1.bf16.msra.mxu0 0
  %2509 = vmatprep.subr.bf16.mxu0 0
  %2510 = vmatpush1.bf16.msra.mxu0 0
  %2511 = vmatprep.subr.bf16.mxu0 0
  %2512 = vmatpush1.bf16.msra.mxu0 0
  %2513 = vmatprep.subr.bf16.mxu0 0
  %2514 = vmatpush1.bf16.msra.mxu0 0
  %2515 = vmatprep.subr.bf16.mxu0 0
  %2516 = vmatpush1.bf16.msra.mxu0 0
  %2517 = vmatprep.subr.bf16.mxu0 0
  %2518 = vmatpush1.bf16.msra.mxu0 0
  %2519 = vmatprep.subr.bf16.mxu0 0
  %2520 = vmatpush1.bf16.msra.mxu0 0
  %2521 = vmatprep.subr.bf16.mxu0 0
  %2522 = vmatpush1.bf16.msra.mxu0 0
  %2523 = vmatprep.mubr.bf16.mxu0 0
  %2524 = vmatmul.mubr.bf16.gmra.mrb[0].mxu0 %v2489
  %v2525 = vpop.f32.mrb[0].mxu0
  %v2526 = vadd.f32 0.0, %v2525
  %v2527 = vpop.f32.mrb[0].mxu0
  %v2528 = vadd.f32 0.0, %v2527
  %v2529 = vpop.f32.mrb[0].mxu0
  %v2530 = vpop.f32.mrb[0].mxu0
  %2531 = vdwg.mxu0
  %v2532 = vadd.f32 %v2478, %v2526
  %v2533 = vadd.f32 %v2480, %v2528
  %v2534 = vxor.u32 %v2532, 2147483648
  %v2535 = vxor.u32 %v2533, 2147483648
  %v2536 = vmul.f32 %v2534, 1.442695
  %v2537 = vpow.pop %v2536
  %v2538 = vmul.f32 %v2535, 1.442695
  %v2539 = vpow.pop %v2538
  %v2540 = vadd.f32 %v2537, 1.0
  %v2541 = vadd.f32 %v2539, 1.0
  %v2542 = vrcp.pop %v2540
  %v2543 = vmul.f32 1.0, %v2542
  %v2544 = vrcp.pop %v2541
  %v2545 = vmul.f32 1.0, %v2544
  %v2546 = vmul.f32 %v2545, 2.0
  %v2547 = vsub.f32 %v2546, 1.0
  %v2548 = vmul.f32 %v2543, %v2319
  %v2549 = vmul.f32 %v2543, %v2547
  %2551 = vrot.lane.b32.xlu0 %v2549, 64
  %v2552 = vpop.permute.xlu0 %2551
  %v2554 = vadd.f32 %v2548, %v2552
  %v2555 = vtanh.pop %v2554
  %v2556 = vmul.f32 %v2545, %v2555
  %2557 = vmatprep.subr.bf16.mxu0 %v792
  %2558 = vmatpush1.bf16.msra.mxu0 %v791
  %2559 = vmatprep.subr.bf16.mxu0 %v794
  %2560 = vmatpush1.bf16.msra.mxu0 %v793
  %2561 = vmatprep.subr.bf16.mxu0 %v796
  %2562 = vmatpush1.bf16.msra.mxu0 %v795
  %2563 = vmatprep.subr.bf16.mxu0 %v798
  %2564 = vmatpush1.bf16.msra.mxu0 %v797
  %2565 = vmatprep.subr.bf16.mxu0 0
  %2566 = vmatpush1.bf16.msra.mxu0 0
  %2567 = vmatprep.subr.bf16.mxu0 0
  %2568 = vmatpush1.bf16.msra.mxu0 0
  %2569 = vmatprep.subr.bf16.mxu0 0
  %2570 = vmatpush1.bf16.msra.mxu0 0
  %2571 = vmatprep.subr.bf16.mxu0 0
  %2572 = vmatpush1.bf16.msra.mxu0 0
  %2573 = vmatprep.subr.bf16.mxu0 0
  %2574 = vmatpush1.bf16.msra.mxu0 0
  %2575 = vmatprep.subr.bf16.mxu0 0
  %2576 = vmatpush1.bf16.msra.mxu0 0
  %2577 = vmatprep.subr.bf16.mxu0 0
  %2578 = vmatpush1.bf16.msra.mxu0 0
  %2579 = vmatprep.subr.bf16.mxu0 0
  %2580 = vmatpush1.bf16.msra.mxu0 0
  %2581 = vmatprep.subr.bf16.mxu0 0
  %2582 = vmatpush1.bf16.msra.mxu0 0
  %2583 = vmatprep.subr.bf16.mxu0 0
  %2584 = vmatpush1.bf16.msra.mxu0 0
  %2585 = vmatprep.subr.bf16.mxu0 0
  %2586 = vmatpush1.bf16.msra.mxu0 0
  %2587 = vmatprep.subr.bf16.mxu0 0
  %2588 = vmatpush1.bf16.msra.mxu0 0
  %2589 = vmatprep.mubr.bf16.mxu0 0
  %2590 = vmatmul.mubr.bf16.gmra.mrb[0].mxu0 %v2489
  %v2591 = vpop.f32.mrb[0].mxu0
  %v2592 = vadd.f32 %v760, %v2591
  %v2593 = vpop.f32.mrb[0].mxu0
  %v2594 = vadd.f32 %v764, %v2593
  %v2595 = vpop.f32.mrb[0].mxu0
  %v2596 = vpop.f32.mrb[0].mxu0
  %2597 = vdwg.mxu0
  %v2598 = vpack.c.bf16 %v2435, %v2435
  %2600 = vrot.lane.b32.xlu0 %v2598, 64
  %v2601 = vpop.permute.xlu0 %2600
  %v2603 = vsel %vm132, %v2601, 0
  %2605 = vmatprep.subr.bf16.mxu0 %v1136
  %2606 = vmatpush1.bf16.msra.mxu0 %v1135
  %2607 = vmatprep.subr.bf16.mxu0 %v1138
  %2608 = vmatpush1.bf16.msra.mxu0 %v1137
  %2609 = vmatprep.subr.bf16.mxu0 %v1140
  %2610 = vmatpush1.bf16.msra.mxu0 %v1139
  %2611 = vmatprep.subr.bf16.mxu0 %v1142
  %2612 = vmatpush1.bf16.msra.mxu0 %v1141
  %2613 = vmatprep.subr.bf16.mxu0 0
  %2614 = vmatpush1.bf16.msra.mxu0 0
  %2615 = vmatprep.subr.bf16.mxu0 0
  %2616 = vmatpush1.bf16.msra.mxu0 0
  %2617 = vmatprep.subr.bf16.mxu0 0
  %2618 = vmatpush1.bf16.msra.mxu0 0
  %2619 = vmatprep.subr.bf16.mxu0 0
  %2620 = vmatpush1.bf16.msra.mxu0 0
  %2621 = vmatprep.subr.bf16.mxu0 0
  %2622 = vmatpush1.bf16.msra.mxu0 0
  %2623 = vmatprep.subr.bf16.mxu0 0
  %2624 = vmatpush1.bf16.msra.mxu0 0
  %2625 = vmatprep.subr.bf16.mxu0 0
  %2626 = vmatpush1.bf16.msra.mxu0 0
  %2627 = vmatprep.subr.bf16.mxu0 0
  %2628 = vmatpush1.bf16.msra.mxu0 0
  %2629 = vmatprep.subr.bf16.mxu0 0
  %2630 = vmatpush1.bf16.msra.mxu0 0
  %2631 = vmatprep.subr.bf16.mxu0 0
  %2632 = vmatpush1.bf16.msra.mxu0 0
  %2633 = vmatprep.subr.bf16.mxu0 0
  %2634 = vmatpush1.bf16.msra.mxu0 0
  %2635 = vmatprep.subr.bf16.mxu0 0
  %2636 = vmatpush1.bf16.msra.mxu0 0
  %2637 = vmatprep.mubr.bf16.mxu0 0
  %2638 = vmatmul.mubr.bf16.gmra.mrb[0].mxu0 %v2603
  %v2639 = vpop.f32.mrb[0].mxu0
  %v2640 = vadd.f32 0.0, %v2639
  %v2641 = vpop.f32.mrb[0].mxu0
  %v2642 = vadd.f32 0.0, %v2641
  %v2643 = vpop.f32.mrb[0].mxu0
  %v2644 = vpop.f32.mrb[0].mxu0
  %2645 = vdwg.mxu0
  %v2646 = vadd.f32 %v2592, %v2640
  %v2647 = vadd.f32 %v2594, %v2642
  %v2648 = vxor.u32 %v2646, 2147483648
  %v2649 = vxor.u32 %v2647, 2147483648
  %v2650 = vmul.f32 %v2648, 1.442695
  %v2651 = vpow.pop %v2650
  %v2652 = vmul.f32 %v2649, 1.442695
  %v2653 = vpow.pop %v2652
  %v2654 = vadd.f32 %v2651, 1.0
  %v2655 = vadd.f32 %v2653, 1.0
  %v2656 = vrcp.pop %v2654
  %v2657 = vmul.f32 1.0, %v2656
  %v2658 = vrcp.pop %v2655
  %v2659 = vmul.f32 1.0, %v2658
  %v2660 = vmul.f32 %v2659, 2.0
  %v2661 = vsub.f32 %v2660, 1.0
  %v2662 = vmul.f32 %v2657, %v2433
  %v2663 = vmul.f32 %v2657, %v2661
  %2665 = vrot.lane.b32.xlu0 %v2663, 64
  %v2666 = vpop.permute.xlu0 %2665
  %v2668 = vadd.f32 %v2662, %v2666
  %v2669 = vtanh.pop %v2668
  %v2670 = vmul.f32 %v2659, %v2669
  %v2671 = vpack.c.bf16 %v2556, %v2556
  %2673 = vrot.lane.b32.xlu0 %v2671, 64
  %v2674 = vpop.permute.xlu0 %2673
  %v2676 = vsel %vm132, %v2674, 0
  %2678 = vmatprep.subr.bf16.mxu0 %v792
  %2679 = vmatpush1.bf16.msra.mxu0 %v791
  %2680 = vmatprep.subr.bf16.mxu0 %v794
  %2681 = vmatpush1.bf16.msra.mxu0 %v793
  %2682 = vmatprep.subr.bf16.mxu0 %v796
  %2683 = vmatpush1.bf16.msra.mxu0 %v795
  %2684 = vmatprep.subr.bf16.mxu0 %v798
  %2685 = vmatpush1.bf16.msra.mxu0 %v797
  %2686 = vmatprep.subr.bf16.mxu0 0
  %2687 = vmatpush1.bf16.msra.mxu0 0
  %2688 = vmatprep.subr.bf16.mxu0 0
  %2689 = vmatpush1.bf16.msra.mxu0 0
  %2690 = vmatprep.subr.bf16.mxu0 0
  %2691 = vmatpush1.bf16.msra.mxu0 0
  %2692 = vmatprep.subr.bf16.mxu0 0
  %2693 = vmatpush1.bf16.msra.mxu0 0
  %2694 = vmatprep.subr.bf16.mxu0 0
  %2695 = vmatpush1.bf16.msra.mxu0 0
  %2696 = vmatprep.subr.bf16.mxu0 0
  %2697 = vmatpush1.bf16.msra.mxu0 0
  %2698 = vmatprep.subr.bf16.mxu0 0
  %2699 = vmatpush1.bf16.msra.mxu0 0
  %2700 = vmatprep.subr.bf16.mxu0 0
  %2701 = vmatpush1.bf16.msra.mxu0 0
  %2702 = vmatprep.subr.bf16.mxu0 0
  %2703 = vmatpush1.bf16.msra.mxu0 0
  %2704 = vmatprep.subr.bf16.mxu0 0
  %2705 = vmatpush1.bf16.msra.mxu0 0
  %2706 = vmatprep.subr.bf16.mxu0 0
  %2707 = vmatpush1.bf16.msra.mxu0 0
  %2708 = vmatprep.subr.bf16.mxu0 0
  %2709 = vmatpush1.bf16.msra.mxu0 0
  %2710 = vmatprep.mubr.bf16.mxu0 0
  %2711 = vmatmul.mubr.bf16.gmra.mrb[0].mxu0 %v2676
  %v2712 = vpop.f32.mrb[0].mxu0
  %v2713 = vadd.f32 %v760, %v2712
  %v2714 = vpop.f32.mrb[0].mxu0
  %v2715 = vadd.f32 %v764, %v2714
  %v2716 = vpop.f32.mrb[0].mxu0
  %v2717 = vpop.f32.mrb[0].mxu0
  %2718 = vdwg.mxu0
  %v2719 = vpack.c.bf16 %v2670, %v2670
  %2721 = vrot.lane.b32.xlu0 %v2719, 64
  %v2722 = vpop.permute.xlu0 %2721
  %v2724 = vsel %vm132, %v2722, 0
  %2726 = vmatprep.subr.bf16.mxu0 %v1136
  %2727 = vmatpush1.bf16.msra.mxu0 %v1135
  %2728 = vmatprep.subr.bf16.mxu0 %v1138
  %2729 = vmatpush1.bf16.msra.mxu0 %v1137
  %2730 = vmatprep.subr.bf16.mxu0 %v1140
  %2731 = vmatpush1.bf16.msra.mxu0 %v1139
  %2732 = vmatprep.subr.bf16.mxu0 %v1142
  %2733 = vmatpush1.bf16.msra.mxu0 %v1141
  %2734 = vmatprep.subr.bf16.mxu0 0
  %2735 = vmatpush1.bf16.msra.mxu0 0
  %2736 = vmatprep.subr.bf16.mxu0 0
  %2737 = vmatpush1.bf16.msra.mxu0 0
  %2738 = vmatprep.subr.bf16.mxu0 0
  %2739 = vmatpush1.bf16.msra.mxu0 0
  %2740 = vmatprep.subr.bf16.mxu0 0
  %2741 = vmatpush1.bf16.msra.mxu0 0
  %2742 = vmatprep.subr.bf16.mxu0 0
  %2743 = vmatpush1.bf16.msra.mxu0 0
  %2744 = vmatprep.subr.bf16.mxu0 0
  %2745 = vmatpush1.bf16.msra.mxu0 0
  %2746 = vmatprep.subr.bf16.mxu0 0
  %2747 = vmatpush1.bf16.msra.mxu0 0
  %2748 = vmatprep.subr.bf16.mxu0 0
  %2749 = vmatpush1.bf16.msra.mxu0 0
  %2750 = vmatprep.subr.bf16.mxu0 0
  %2751 = vmatpush1.bf16.msra.mxu0 0
  %2752 = vmatprep.subr.bf16.mxu0 0
  %2753 = vmatpush1.bf16.msra.mxu0 0
  %2754 = vmatprep.subr.bf16.mxu0 0
  %2755 = vmatpush1.bf16.msra.mxu0 0
  %2756 = vmatprep.subr.bf16.mxu0 0
  %2757 = vmatpush1.bf16.msra.mxu0 0
  %2758 = vmatprep.mubr.bf16.mxu0 0
  %2759 = vmatmul.mubr.bf16.gmra.mrb[0].mxu0 %v2724
  %v2760 = vpop.f32.mrb[0].mxu0
  %v2761 = vadd.f32 0.0, %v2760
  %v2762 = vpop.f32.mrb[0].mxu0
  %v2763 = vadd.f32 0.0, %v2762
  %v2764 = vpop.f32.mrb[0].mxu0
  %v2765 = vpop.f32.mrb[0].mxu0
  %2766 = vdwg.mxu0
  %v2767 = vadd.f32 %v2713, %v2761
  %v2768 = vadd.f32 %v2715, %v2763
  %v2769 = vxor.u32 %v2767, 2147483648
  %v2770 = vxor.u32 %v2768, 2147483648
  %v2771 = vmul.f32 %v2769, 1.442695
  %v2772 = vpow.pop %v2771
  %v2773 = vmul.f32 %v2770, 1.442695
  %v2774 = vpow.pop %v2773
  %v2775 = vadd.f32 %v2772, 1.0
  %v2776 = vadd.f32 %v2774, 1.0
  %v2777 = vrcp.pop %v2775
  %v2778 = vmul.f32 1.0, %v2777
  %v2779 = vrcp.pop %v2776
  %v2780 = vmul.f32 1.0, %v2779
  %v2781 = vmul.f32 %v2780, 2.0
  %v2782 = vsub.f32 %v2781, 1.0
  %v2783 = vmul.f32 %v2778, %v2668
  %v2784 = vmul.f32 %v2778, %v2782
  %2786 = vrot.lane.b32.xlu0 %v2784, 64
  %v2787 = vpop.permute.xlu0 %2786
  %v2789 = vadd.f32 %v2783, %v2787
  %v2790 = vtanh.pop %v2789
  %v2791 = vmul.f32 %v2780, %v2790
  %v2792 = vld [vmem:[%s10] sm:$0x1]
  %v2794 = vlaneseq
  %v2795 = vshrl.u32 %v2794, 7
  %v2796 = vsub.s32 0, %v2795
  %v2797 = vrot.slane %v2792, %v2796
  %2798 = vrot.lane.b32.xlu0 %v2797, 64
  %v2799 = vpop.permute.xlu0 %2798
  %v2801 = vmul.f32 %v2791, %v2799
  %2803 = vrot.lane.b32.xlu0 %v2801, 64
  %v2804 = vpop.permute.xlu0 %2803
  %v2806 = vsel %vm132, %v2804, 0.0
  %2807 = vadd.xlane.f32.xlu0 %v2806
  %v2808 = vpop.xlane.xlu0 %2807
  %v2809 = vld [vmem:[#allocation3] sm:$0x1]
  %v2811 = vlaneseq
  %v2812 = vshrl.u32 %v2811, 7
  %v2813 = vsub.s32 0, %v2812
  %v2814 = vrot.slane %v2809, %v2813
  %v2816 = vadd.f32 %v2808, %v2814
  %v2817 = vxor.u32 %v2816, 2147483648
  %v2818 = vmul.f32 %v2817, 1.442695
  %v2819 = vpow.pop %v2818
  %v2820 = vadd.f32 %v2819, 1.0
  %v2821 = vrcp.pop %v2820
  %v2822 = vmul.f32 1.0, %v2821
  %vm2823 = vcmask 7168
  %2824 = vst.msk [vmem:[%s12] sm:$0xff] %vm2823, %v2822
  // Predicated region
  $region50: #{baseline_lstm_forward.1} parent=0 // pred_check
    _
  $region51: #{baseline_lstm_forward.1} parent=0 // pred_check_branch
    %2826 = sbr.rel (0) target = $region53
  $region52: #{baseline_lstm_forward.1} parent=0 // pred_region
    _
  $region53: #{baseline_lstm_forward.1} parent=0 // pred_fallthru
    _
  // Predicated region
  $region54: #{baseline_lstm_forward.1} parent=0 // pred_check
    _
  $region55: #{baseline_lstm_forward.1} parent=0 // pred_check_branch
    %2828 = sbr.rel (0) target = $region57
  $region56: #{baseline_lstm_forward.1} parent=0 // pred_region
    _
  $region57: #{baseline_lstm_forward.1} parent=0 // pred_fallthru
    _

</llo_original>
